<compile_context>
chip_gen: v6e
topology: v6e:2x2x1
jax: 0.10.0
libtpu: 0.0.40
codegen_flags: <defaults>
</compile_context>

<pallas_src>
import functools

import numpy as np

import jax
import jax.numpy as jnp
from jax.experimental import pallas as pl
from jax.experimental.pallas import tpu as pltpu


def _round_up(n, m):
    return (n + m - 1) // m * m


# ---------------------------------------------------------------------------
# Kernels
# ---------------------------------------------------------------------------
def _fused_kernel(xt_ref, xb_ref, wt_ref, wb_ref, b_ref, o_ref):
    """One grid step: `bh` full input rows -> bh*s output rows, already in the
    final NHWC column order (ry, qx, rx, co).  f32 MXU accumulation."""
    acc = jnp.dot(xt_ref[...], wt_ref[...], preferred_element_type=jnp.float32)
    acc = acc + jnp.dot(xb_ref[...], wb_ref[...],
                        preferred_element_type=jnp.float32)
    o_ref[...] = (acc + b_ref[...]).astype(o_ref.dtype)


def _mm_bias_kernel(x_ref, w_ref, b_ref, o_ref):
    """Fallback tile: o = x @ w + b (f32 accumulate, stored in compute dtype)."""
    acc = jnp.dot(x_ref[...], w_ref[...], preferred_element_type=jnp.float32)
    o_ref[...] = (acc + b_ref[...]).astype(o_ref.dtype)


# ---------------------------------------------------------------------------
# Sub-pixel weight helpers
# ---------------------------------------------------------------------------
def _subpixel_taps(wt, s):
    """Returns tap(dy, dx) -> [Cin, s, s, Cout] (f32) for input offset (dy,dx).

    ConvTranspose2d(k=2s, stride=s, pad=s): output pixel (qy*s+ry, qx*s+rx)
    reads input (qy+dy, qx+dx) with kernel tap (ry + (1-dy)*s, rx + (1-dx)*s).
    """
    Cin, Cout = wt.shape[0], wt.shape[1]
    w6 = wt.reshape(Cin, Cout, 2, s, 2, s)      # ky = by*s + ry, kx = bx*s + rx

    def tap(dy, dx):
        return jnp.transpose(w6[:, :, 1 - dy, :, 1 - dx, :], (0, 2, 3, 1))

    return tap


# ---------------------------------------------------------------------------
# Fused path: no im2col, no depth-to-space pass
# ---------------------------------------------------------------------------
def _upsample_fused_path(xn, wt, bias, s, cd):
    """xn: [B,H,W,Cin] (compute dtype), wt: [Cin,Cout,2s,2s] f32, bias: [Cout].
    Returns NHWC [B,(H-1)*s,(W-1)*s,Cout] in compute dtype."""
    B, H, W, Cin = xn.shape
    Cout = wt.shape[1]
    M0 = B * (H - 1)
    WC = W * Cin
    Nbig = s * (W - 1) * s * Cout

    # ---- banded sub-pixel weights: [W*Cin, s*(W-1)*s*Cout] ------------------
    tap = _subpixel_taps(wt, s)
    e0 = jnp.eye(W, W - 1, dtype=jnp.float32)          # qx_src == qx
    e1 = jnp.eye(W, W - 1, k=-1, dtype=jnp.float32)    # qx_src == qx + 1

    def banded(t0, t1):
        w = (jnp.einsum("pq,cyxo->pcyqxo", e0, t0)
             + jnp.einsum("pq,cyxo->pcyqxo", e1, t1))
        return w.reshape(WC, Nbig).astype(cd)

    w_top = banded(tap(0, 0), tap(0, 1))   # taps (qy,   qx) / (qy,   qx+1)
    w_bot = banded(tap(1, 0), tap(1, 1))   # taps (qy+1, qx) / (qy+1, qx+1)
    bvec = jnp.tile(bias.astype(jnp.float32), s * (W - 1) * s).reshape(1, Nbig)

    # ---- row operands: one full (channels-last) input row per matmul row ----
    xt2 = xn[:, :H - 1].reshape(M0, WC)     # row qy
    xb2 = xn[:, 1:].reshape(M0, WC)         # row qy + 1

    # ---- row-tile selection (>=2 parallel blocks for v7x when possible) -----
    if M0 <= 16:
        bh = M0                                           # full dim -> legal
    else:
        bh = min(512, max(16, _round_up(pl.cdiv(M0, 2), 16)))
        cap = max(16, ((4 << 20) // (Nbig * 4)) // 16 * 16)   # bound f32 temps
        bh = min(bh, cap)
    grid_m = pl.cdiv(M0, bh)
    mpad = grid_m * bh
    if mpad > M0:                           # tiny input-side pad; output rows
        xt2 = jnp.pad(xt2, ((0, mpad - M0), (0, 0)))   # past M0 are masked on
        xb2 = jnp.pad(xb2, ((0, mpad - M0), (0, 0)))   # writeback.

    itemsize = int(cd.itemsize)
    vmem_est = (2 * (2 * bh * WC + 2 * WC * Nbig + bh * Nbig) * itemsize
                + 2 * Nbig * 4 + 3 * bh * Nbig * 4)
    flops = 2 * 2 * mpad * WC * Nbig
    bytes_accessed = ((2 * mpad * WC + 2 * WC * Nbig + M0 * Nbig) * itemsize
                      + Nbig * 4)

    out2 = pl.pallas_call(
        _fused_kernel,
        out_shape=jax.ShapeDtypeStruct((M0, Nbig), cd),
        grid_spec=pltpu.PrefetchScalarGridSpec(
            num_scalar_prefetch=0,
            grid=(grid_m,),
            in_specs=[
                pl.BlockSpec((bh, WC), lambda i: (i, 0)),
                pl.BlockSpec((bh, WC), lambda i: (i, 0)),
                pl.BlockSpec((WC, Nbig), lambda i: (0, 0)),   # resident weights
                pl.BlockSpec((WC, Nbig), lambda i: (0, 0)),
                pl.BlockSpec((1, Nbig), lambda i: (0, 0)),    # resident bias
            ],
            out_specs=pl.BlockSpec((bh, Nbig), lambda i: (i, 0)),
        ),
        compiler_params=pltpu.CompilerParams(
            dimension_semantics=("parallel",),
            vmem_limit_bytes=min(48 << 20,
                                 max(16 << 20, int(vmem_est * 3 // 2)))),
        cost_estimate=pl.CostEstimate(flops=int(flops), transcendentals=0,
                                      bytes_accessed=int(bytes_accessed)),
    )(xt2, xb2, w_top, w_bot, bvec)

    # Free (row-major bitcast) reshape: rows (b, qy) x cols (ry, qx, rx, co)
    # is exactly NHWC [B, (H-1)*s, (W-1)*s, Cout].
    return out2.reshape(B, (H - 1) * s, (W - 1) * s, Cout)


# ---------------------------------------------------------------------------
# Dense fallback (only for shapes whose banded weight would not fit in VMEM)
# ---------------------------------------------------------------------------
def _upsample_dense_path(xn, wt, bias, s, cd):
    # XLA-side (compute-dtype) im2col + one dense [M,4Cin]x[4Cin,s*s*Cout]
    # Pallas matmul with fused bias; depth-to-space done by XLA afterwards.
    # TODO(synk): tile K/N here for extremely large channel counts.
    B, H, W, Cin = xn.shape
    Cout = wt.shape[1]
    p00 = xn[:, :H - 1, :W - 1, :]
    p01 = xn[:, :H - 1, 1:, :]
    p10 = xn[:, 1:, :W - 1, :]
    p11 = xn[:, 1:, 1:, :]
    rows = jnp.concatenate([p00, p01, p10, p11], axis=-1)
    rows = rows.reshape(B * (H - 1) * (W - 1), 4 * Cin)

    tap = _subpixel_taps(wt, s)
    wm = jnp.stack([tap(0, 0), tap(0, 1), tap(1, 0), tap(1, 1)], axis=0)
    wm = wm.reshape(4 * Cin, s * s * Cout).astype(cd)
    bvec = jnp.tile(bias.astype(jnp.float32), s * s).reshape(1, s * s * Cout)

    M, K = rows.shape
    N = s * s * Cout
    tm = M if M <= 16 else min(1024, max(16, _round_up(pl.cdiv(M, 2), 16)))
    grid_m = pl.cdiv(M, tm)
    itemsize = int(cd.itemsize)

    out = pl.pallas_call(
        _mm_bias_kernel,
        out_shape=jax.ShapeDtypeStruct((M, N), cd),
        grid_spec=pltpu.PrefetchScalarGridSpec(
            num_scalar_prefetch=0,
            grid=(grid_m,),
            in_specs=[
                pl.BlockSpec((tm, K), lambda i: (i, 0)),
                pl.BlockSpec((K, N), lambda i: (0, 0)),
                pl.BlockSpec((1, N), lambda i: (0, 0)),
            ],
            out_specs=pl.BlockSpec((tm, N), lambda i: (i, 0)),
        ),
        compiler_params=pltpu.CompilerParams(
            dimension_semantics=("parallel",),
            vmem_limit_bytes=48 << 20),
        cost_estimate=pl.CostEstimate(
            flops=int(2 * grid_m * tm * K * N), transcendentals=0,
            bytes_accessed=int((grid_m * tm * K + K * N + M * N) * itemsize
                               + N * 4)),
    )(rows, wm, bvec)

    out = out.reshape(B, H - 1, W - 1, s, s, Cout)
    out = jnp.transpose(out, (0, 1, 3, 2, 4, 5))
    return out.reshape(B, (H - 1) * s, (W - 1) * s, Cout)


# ---------------------------------------------------------------------------
# Public entry point
# ---------------------------------------------------------------------------
@functools.partial(jax.jit,
                   static_argnames=("scale", "compute_dtype", "out_layout"))
def upsample_forward(x, wt, bias, *, scale, compute_dtype=jnp.bfloat16,
                     out_layout="NCHW"):
    """ConvTranspose2d(Cin, Cout, kernel=2s, stride=s, padding=s) forward.

    x: [B, Cin, H, W] (NCHW); wt: [Cin, Cout, 2s, 2s] (PyTorch layout);
    bias: [Cout].  Returns [B, Cout, (H-1)*s, (W-1)*s] (or NHWC if
    out_layout="NHWC").  Results are in `compute_dtype` (bf16 by default;
    pass jnp.float32 for full-precision output).
    """
    B, Cin, H, W = x.shape
    Cin2, Cout, kh, kw = wt.shape
    s = int(scale)
    assert Cin2 == Cin and kh == 2 * s and kw == 2 * s and H >= 2 and W >= 2
    cd = np.dtype(compute_dtype)

    # Cast FIRST: all later layout passes (transpose / row slicing) move half
    # the bytes when compute_dtype is bf16.
    xn = jnp.transpose(x.astype(cd), (0, 2, 3, 1))        # [B, H, W, Cin]
    wt32 = wt.astype(jnp.float32)

    nbig = s * (W - 1) * s * Cout
    if 2 * W * Cin * nbig * int(cd.itemsize) <= (8 << 20):
        out_nhwc = _upsample_fused_path(xn, wt32, bias, s, cd)
    else:
        out_nhwc = _upsample_dense_path(xn, wt32, bias, s, cd)

    if out_layout == "NHWC":
        return out_nhwc
    return jnp.transpose(out_nhwc, (0, 3, 1, 2))          # NCHW (one pass)


# ---------------------------------------------------------------------------
# Pure-JAX reference (PyTorch ConvTranspose2d semantics) for verification
# ---------------------------------------------------------------------------
def upsample_ref(x, wt, bias, scale):
    s = scale
    k = 2 * s
    w_eq = jnp.transpose(jnp.flip(wt, (2, 3)), (1, 0, 2, 3))  # [Cout, Cin, k, k]
    y = jax.lax.conv_general_dilated(
        x, w_eq, window_strides=(1, 1),
        padding=[(k - 1 - s, k - 1 - s)] * 2,
        lhs_dilation=(s, s),
        dimension_numbers=("NCHW", "OIHW", "NCHW"),
        precision=jax.lax.Precision.HIGHEST)
    return y + bias[None, :, None, None]


# ---------------------------------------------------------------------------
if __name__ == "__main__":
    key = jax.random.PRNGKey(0)
    kx, kw_, kb = jax.random.split(key, 3)

    B, Cin, Cout, H, W, scale = 2, 16, 16, 16, 16, 4
    x = jax.random.normal(kx, (B, Cin, H, W), jnp.float32)
    wt = jax.random.normal(kw_, (Cin, Cout, 2 * scale, 2 * scale),
                           jnp.float32) * 0.05
    b = jax.random.normal(kb, (Cout,), jnp.float32) * 0.1

    Ho, Wo = (H - 1) * scale, (W - 1) * scale
    ref = upsample_ref(x, wt, b, scale)

    # Full-precision compute path: should match the XLA reference tightly.
    out32 = upsample_forward(x, wt, b, scale=scale, compute_dtype=jnp.float32)
    jax.block_until_ready(out32)
    assert out32.shape == (B, Cout, Ho, Wo), out32.shape
    err32 = float(jnp.max(jnp.abs(out32.astype(jnp.float32) - ref)))
    assert err32 < 1e-3, f"f32 path max abs error = {err32}"

    # Default bf16 fast path.  Pre-round operands so the only delta vs the f32
    # reference is the bf16 output store.
    xq = x.astype(jnp.bfloat16).astype(jnp.float32)
    wq = wt.astype(jnp.bfloat16).astype(jnp.float32)
    refq = upsample_ref(xq, wq, b, scale)

    out = upsample_forward(xq, wq, b, scale=scale)          # bf16, NCHW
    jax.block_until_ready(out)
    assert out.shape == (B, Cout, Ho, Wo), out.shape
    assert out.dtype == jnp.bfloat16
    assert bool(jnp.all(jnp.isfinite(out.astype(jnp.float32))))
    errb = float(jnp.max(jnp.abs(out.astype(jnp.float32) - refq)))
    assert errb < 2e-2, f"bf16 path max abs error = {errb}"

    # NHWC fast path (skips the final transpose) must agree with NCHW path.
    out_nhwc = upsample_forward(xq, wq, b, scale=scale, out_layout="NHWC")
    jax.block_until_ready(out_nhwc)
    assert out_nhwc.shape == (B, Ho, Wo, Cout), out_nhwc.shape
    errl = float(jnp.max(jnp.abs(
        jnp.transpose(out_nhwc, (0, 3, 1, 2)).astype(jnp.float32)
        - out.astype(jnp.float32))))
    assert errl < 1e-6, f"NHWC/NCHW mismatch = {errl}"

    print("KERNEL_OK")
</pallas_src>

<mosaic_0001>
module attributes {stable_mosaic.version = 11 : i64} {
  func.func @_fused_kernel(%arg0: i32, %arg1: memref<16x256xf32, #tpu.memory_space<vmem>>, %arg2: memref<16x256xf32, #tpu.memory_space<vmem>>, %arg3: memref<256x3840xf32, #tpu.memory_space<vmem>>, %arg4: memref<256x3840xf32, #tpu.memory_space<vmem>>, %arg5: memref<1x3840xf32, #tpu.memory_space<vmem>>, %arg6: memref<16x3840xf32, #tpu.memory_space<vmem>>) attributes {dimension_semantics = [#tpu.dimension_semantics<parallel>], iteration_bounds = array<i64: 2>, scalar_prefetch = 0 : i64, scratch_operands = 0 : i64, tpu.core_type = #tpu.core_type<tc>, window_params = [{transform_indices = @transform_0, window_bounds = array<i64: 16, 256>}, {transform_indices = @transform_1, window_bounds = array<i64: 16, 256>}, {pipeline_mode = #tpu.pipeline_mode<synchronous>, transform_indices = @transform_2, window_bounds = array<i64: 256, 3840>}, {pipeline_mode = #tpu.pipeline_mode<synchronous>, transform_indices = @transform_3, window_bounds = array<i64: 256, 3840>}, {pipeline_mode = #tpu.pipeline_mode<synchronous>, transform_indices = @transform_4, window_bounds = array<i64: 1, 3840>}, {transform_indices = @transform_5, window_bounds = array<i64: 16, 3840>}]} {
    %c0 = arith.constant 0 : index
    %c0_0 = arith.constant 0 : index
    %0 = vector.load %arg1[%c0, %c0_0] : memref<16x256xf32, #tpu.memory_space<vmem>>, vector<16x256xf32>
    %c0_1 = arith.constant 0 : index
    %c0_2 = arith.constant 0 : index
    %1 = vector.load %arg3[%c0_1, %c0_2] : memref<256x3840xf32, #tpu.memory_space<vmem>>, vector<256x3840xf32>
    %cst = arith.constant dense<0.000000e+00> : vector<16x3840xf32>
    %2 = tpu.matmul %0, %1, %cst {dimension_numbers = #tpu.dot_dimension_numbers<[1], [0], [0], [1], [0, 0, 1, 1], [], []>} : vector<16x256xf32>, vector<256x3840xf32>, vector<16x3840xf32> -> vector<16x3840xf32>
    %c0_3 = arith.constant 0 : index
    %c0_4 = arith.constant 0 : index
    %3 = vector.load %arg2[%c0_3, %c0_4] : memref<16x256xf32, #tpu.memory_space<vmem>>, vector<16x256xf32>
    %c0_5 = arith.constant 0 : index
    %c0_6 = arith.constant 0 : index
    %4 = vector.load %arg4[%c0_5, %c0_6] : memref<256x3840xf32, #tpu.memory_space<vmem>>, vector<256x3840xf32>
    %cst_7 = arith.constant dense<0.000000e+00> : vector<16x3840xf32>
    %5 = tpu.matmul %3, %4, %cst_7 {dimension_numbers = #tpu.dot_dimension_numbers<[1], [0], [0], [1], [0, 0, 1, 1], [], []>} : vector<16x256xf32>, vector<256x3840xf32>, vector<16x3840xf32> -> vector<16x3840xf32>
    %6 = arith.addf %2, %5 : vector<16x3840xf32>
    %c0_8 = arith.constant 0 : index
    %c0_9 = arith.constant 0 : index
    %7 = vector.load %arg5[%c0_8, %c0_9] : memref<1x3840xf32, #tpu.memory_space<vmem>>, vector<1x3840xf32>
    %8 = vector.broadcast %7 : vector<1x3840xf32> to vector<16x3840xf32>
    %9 = arith.addf %6, %8 : vector<16x3840xf32>
    %c0_10 = arith.constant 0 : index
    %c0_11 = arith.constant 0 : index
    %10 = vector.load %arg6[%c0_10, %c0_11] : memref<16x3840xf32, #tpu.memory_space<vmem>>, vector<16x3840xf32>
    tpu.vector_store %arg6[%c0_10, %c0_11], %9 {strides = array<i32>} : memref<16x3840xf32, #tpu.memory_space<vmem>>, vector<16x3840xf32>,
    return
  }
  func.func @transform_0(%arg0: i32) -> (i32, i32) {
    %c0_i32 = arith.constant 0 : i32
    %c0_i32_0 = arith.constant 0 : i32
    return %arg0, %c0_i32 : i32, i32
  }
  func.func @transform_1(%arg0: i32) -> (i32, i32) {
    %c0_i32 = arith.constant 0 : i32
    %c0_i32_0 = arith.constant 0 : i32
    return %arg0, %c0_i32 : i32, i32
  }
  func.func @transform_2(%arg0: i32) -> (i32, i32) {
    %c0_i32 = arith.constant 0 : i32
    %c0_i32_0 = arith.constant 0 : i32
    %c0_i32_1 = arith.constant 0 : i32
    return %c0_i32, %c0_i32_0 : i32, i32
  }
  func.func @transform_3(%arg0: i32) -> (i32, i32) {
    %c0_i32 = arith.constant 0 : i32
    %c0_i32_0 = arith.constant 0 : i32
    %c0_i32_1 = arith.constant 0 : i32
    return %c0_i32, %c0_i32_0 : i32, i32
  }
  func.func @transform_4(%arg0: i32) -> (i32, i32) {
    %c0_i32 = arith.constant 0 : i32
    %c0_i32_0 = arith.constant 0 : i32
    %c0_i32_1 = arith.constant 0 : i32
    return %c0_i32, %c0_i32_0 : i32, i32
  }
  func.func @transform_5(%arg0: i32) -> (i32, i32) {
    %c0_i32 = arith.constant 0 : i32
    %c0_i32_0 = arith.constant 0 : i32
    return %arg0, %c0_i32 : i32, i32
  }
}

</mosaic_0001>

<llo_original>
// kernel: tile.8
$region0: #{tile.8}
  #allocation0 [shape = 's32[1]{0}', space=sflag, size = 0x4, scoped, tag = 'scoped memory for tile.8']
  %s0 = inlined_call_operand.vmem [shape: f32[16], index: 0, kind: input, shape index: {}]
  %s1 = inlined_call_operand.vmem [shape: f32[240,16], index: 1, kind: output, shape index: {}]
  // Predicated region
  $region2: #{tile.8} parent=0 // pred_check
    _
  $region3: #{tile.8} parent=0 // pred_check_branch
    %3 = sbr.rel (0) target = $region5
  $region4: #{tile.8} parent=0 // pred_region
    _
  $region5: #{tile.8} parent=0 // pred_fallthru
    _
  %v4 = vld [vmem:[%s0] ss:$0 sm:$0xff]
  %5 = vst [vmem:[%s1] sm:$0xff] %v4
  %s6 = scalar_lea.vmem %s1, 8
  %7 = vst [vmem:[%s6] sm:$0xff] %v4
  %s8 = scalar_lea.vmem %s1, 16
  %9 = vst [vmem:[%s8] sm:$0xff] %v4
  %s10 = scalar_lea.vmem %s1, 24
  %11 = vst [vmem:[%s10] sm:$0xff] %v4
  %s12 = scalar_lea.vmem %s1, 32
  %13 = vst [vmem:[%s12] sm:$0xff] %v4
  %s14 = scalar_lea.vmem %s1, 40
  %15 = vst [vmem:[%s14] sm:$0xff] %v4
  %s16 = scalar_lea.vmem %s1, 48
  %17 = vst [vmem:[%s16] sm:$0xff] %v4
  %s18 = scalar_lea.vmem %s1, 56
  %19 = vst [vmem:[%s18] sm:$0xff] %v4
  %s20 = scalar_lea.vmem %s1, 64
  %21 = vst [vmem:[%s20] sm:$0xff] %v4
  %s22 = scalar_lea.vmem %s1, 72
  %23 = vst [vmem:[%s22] sm:$0xff] %v4
  %s24 = scalar_lea.vmem %s1, 80
  %25 = vst [vmem:[%s24] sm:$0xff] %v4
  %s26 = scalar_lea.vmem %s1, 88
  %27 = vst [vmem:[%s26] sm:$0xff] %v4
  %s28 = scalar_lea.vmem %s1, 96
  %29 = vst [vmem:[%s28] sm:$0xff] %v4
  %s30 = scalar_lea.vmem %s1, 104
  %31 = vst [vmem:[%s30] sm:$0xff] %v4
  %s32 = scalar_lea.vmem %s1, 112
  %33 = vst [vmem:[%s32] sm:$0xff] %v4
  %s34 = scalar_lea.vmem %s1, 120
  %35 = vst [vmem:[%s34] sm:$0xff] %v4
  %s36 = scalar_lea.vmem %s1, 128
  %37 = vst [vmem:[%s36] sm:$0xff] %v4
  %s38 = scalar_lea.vmem %s1, 136
  %39 = vst [vmem:[%s38] sm:$0xff] %v4
  %s40 = scalar_lea.vmem %s1, 144
  %41 = vst [vmem:[%s40] sm:$0xff] %v4
  %s42 = scalar_lea.vmem %s1, 152
  %43 = vst [vmem:[%s42] sm:$0xff] %v4
  %s44 = scalar_lea.vmem %s1, 160
  %45 = vst [vmem:[%s44] sm:$0xff] %v4
  %s46 = scalar_lea.vmem %s1, 168
  %47 = vst [vmem:[%s46] sm:$0xff] %v4
  %s48 = scalar_lea.vmem %s1, 176
  %49 = vst [vmem:[%s48] sm:$0xff] %v4
  %s50 = scalar_lea.vmem %s1, 184
  %51 = vst [vmem:[%s50] sm:$0xff] %v4
  %s52 = scalar_lea.vmem %s1, 192
  %53 = vst [vmem:[%s52] sm:$0xff] %v4
  %s54 = scalar_lea.vmem %s1, 200
  %55 = vst [vmem:[%s54] sm:$0xff] %v4
  %s56 = scalar_lea.vmem %s1, 208
  %57 = vst [vmem:[%s56] sm:$0xff] %v4
  %s58 = scalar_lea.vmem %s1, 216
  %59 = vst [vmem:[%s58] sm:$0xff] %v4
  %s60 = scalar_lea.vmem %s1, 224
  %61 = vst [vmem:[%s60] sm:$0xff] %v4
  %s62 = scalar_lea.vmem %s1, 232
  %63 = vst [vmem:[%s62] sm:$0xff] %v4

// kernel: tile.9
$region0: #{tile.9}
  %s0 = inlined_call_operand.vmem [shape: f32[240,16], index: 0, kind: input, shape index: {}]
  %s1 = inlined_call_operand.vmem [shape: f32[1,3840], index: 1, kind: output, shape index: {}]
  $region1: #{tile.9} parent=0
    #allocation0 [shape = 'u8[122880]{0}', space=vmem, size = 0x1e000, scoped, tag = 'scoped mem for output reshape']
    %v2 = vld [vmem:[%s0] ss:$8 sm:$0xf]
    %v3 = vld [vmem:[%s0] ss:$8 sm:$0xf0]
    %vm4 = vcmask 1047556
    %v5 = vsel %vm4, %v3, %v2
    %vm6 = vcmask 130048
    %7 = vst.msk [vmem:[#allocation0] ss:$8 sm:$0xf] %vm6, %v5
    %8 = vst.msk [vmem:[#allocation0] ss:$8 sm:$0xf0] %vm6, %v5
    %s9 = scalar_lea.vmem %s0, 64
    %v10 = vld [vmem:[%s9] ss:$8 sm:$0xf]
    %s11 = scalar_lea.vmem %s0, 64
    %v12 = vld [vmem:[%s11] ss:$8 sm:$0xf0]
    %vm13 = vcmask 1047556
    %v14 = vsel %vm13, %v12, %v10
    %vm15 = vcmask 130048
    %s16 = scalar_lea.vmem [#allocation0], 64
    %17 = vst.msk [vmem:[%s16] ss:$8 sm:$0xf] %vm15, %v14
    %s18 = scalar_lea.vmem [#allocation0], 64
    %19 = vst.msk [vmem:[%s18] ss:$8 sm:$0xf0] %vm15, %v14
    %s20 = scalar_lea.vmem %s0, 128
    %v21 = vld [vmem:[%s20] ss:$8 sm:$0xf]
    %s22 = scalar_lea.vmem %s0, 128
    %v23 = vld [vmem:[%s22] ss:$8 sm:$0xf0]
    %vm24 = vcmask 1047556
    %v25 = vsel %vm24, %v23, %v21
    %vm26 = vcmask 130048
    %s27 = scalar_lea.vmem [#allocation0], 128
    %28 = vst.msk [vmem:[%s27] ss:$8 sm:$0xf] %vm26, %v25
    %s29 = scalar_lea.vmem [#allocation0], 128
    %30 = vst.msk [vmem:[%s29] ss:$8 sm:$0xf0] %vm26, %v25
    %s31 = scalar_lea.vmem %s0, 192
    %v32 = vld [vmem:[%s31] ss:$8 sm:$0xf]
    %s33 = scalar_lea.vmem %s0, 192
    %s34 = smov 48
    %v35 = vld [vmem:[%s33] ss:$8 sm:%s34]
    %vm36 = vcmask 1045508
    %v37 = vsel %vm36, %v35, %v32
    %vm38 = vcmask 130048
    %s39 = scalar_lea.vmem [#allocation0], 192
    %40 = vst.msk [vmem:[%s39] ss:$8 sm:$0xf] %vm38, %v37
    %s41 = scalar_lea.vmem [#allocation0], 192
    %42 = vst.msk [vmem:[%s41] ss:$8 sm:$0x30] %vm38, %v37
    %s43 = scalar_lea.vmem %s0, 7
    %v44 = vld [vmem:[%s43] ss:$8 sm:$0xf]
    %s45 = scalar_lea.vmem %s0, 7
    %v46 = vld [vmem:[%s45] ss:$8 sm:$0xf0]
    %vm47 = vcmask 1047556
    %v48 = vsel %vm47, %v46, %v44
    %49 = vrot.lane.b32.xlu0 %v48, 112
    %v50 = vpop.permute.xlu0 %49
    %vm51 = vcmask 1048448
    %52 = vst.msk [vmem:[#allocation0] ss:$8 sm:$0xf] %vm51, %v50
    %53 = vst.msk [vmem:[#allocation0] ss:$8 sm:$0xf0] %vm51, %v50
    %s54 = scalar_lea.vmem %s0, 71
    %v55 = vld [vmem:[%s54] ss:$8 sm:$0xf]
    %s56 = scalar_lea.vmem %s0, 71
    %v57 = vld [vmem:[%s56] ss:$8 sm:$0xf0]
    %vm58 = vcmask 1047556
    %v59 = vsel %vm58, %v57, %v55
    %60 = vrot.lane.b32.xlu0 %v59, 112
    %v61 = vpop.permute.xlu0 %60
    %vm62 = vcmask 1048448
    %s63 = scalar_lea.vmem [#allocation0], 64
    %64 = vst.msk [vmem:[%s63] ss:$8 sm:$0xf] %vm62, %v61
    %s65 = scalar_lea.vmem [#allocation0], 64
    %66 = vst.msk [vmem:[%s65] ss:$8 sm:$0xf0] %vm62, %v61
    %s67 = scalar_lea.vmem %s0, 135
    %v68 = vld [vmem:[%s67] ss:$8 sm:$0xf]
    %s69 = scalar_lea.vmem %s0, 135
    %v70 = vld [vmem:[%s69] ss:$8 sm:$0xf0]
    %vm71 = vcmask 1047556
    %v72 = vsel %vm71, %v70, %v68
    %73 = vrot.lane.b32.xlu0 %v72, 112
    %v74 = vpop.permute.xlu0 %73
    %vm75 = vcmask 1048448
    %s76 = scalar_lea.vmem [#allocation0], 128
    %77 = vst.msk [vmem:[%s76] ss:$8 sm:$0xf] %vm75, %v74
    %s78 = scalar_lea.vmem [#allocation0], 128
    %79 = vst.msk [vmem:[%s78] ss:$8 sm:$0xf0] %vm75, %v74
    %s80 = scalar_lea.vmem %s0, 199
    %v81 = vld [vmem:[%s80] ss:$8 sm:$0xf]
    %s82 = scalar_lea.vmem %s0, 199
    %s83 = smov 48
    %v84 = vld [vmem:[%s82] ss:$8 sm:%s83]
    %vm85 = vcmask 1045508
    %v86 = vsel %vm85, %v84, %v81
    %87 = vrot.lane.b32.xlu0 %v86, 112
    %v88 = vpop.permute.xlu0 %87
    %vm89 = vcmask 1048448
    %s90 = scalar_lea.vmem [#allocation0], 192
    %91 = vst.msk [vmem:[%s90] ss:$8 sm:$0xf] %vm89, %v88
    %s92 = scalar_lea.vmem [#allocation0], 192
    %93 = vst.msk [vmem:[%s92] ss:$8 sm:$0x30] %vm89, %v88
    %s94 = scalar_lea.vmem %s0, 6
    %v95 = vld [vmem:[%s94] ss:$8 sm:$0xf]
    %s96 = scalar_lea.vmem %s0, 6
    %v97 = vld [vmem:[%s96] ss:$8 sm:$0xf0]
    %vm98 = vcmask 1047556
    %v99 = vsel %vm98, %v97, %v95
    %100 = vrot.lane.b32.xlu0 %v99, 96
    %v101 = vpop.permute.xlu0 %100
    %vm102 = vcmask 917248
    %103 = vst.msk [vmem:[#allocation0] ss:$8 sm:$0xf] %vm102, %v101
    %104 = vst.msk [vmem:[#allocation0] ss:$8 sm:$0xf0] %vm102, %v101
    %s105 = scalar_lea.vmem %s0, 70
    %v106 = vld [vmem:[%s105] ss:$8 sm:$0xf]
    %s107 = scalar_lea.vmem %s0, 70
    %v108 = vld [vmem:[%s107] ss:$8 sm:$0xf0]
    %vm109 = vcmask 1047556
    %v110 = vsel %vm109, %v108, %v106
    %111 = vrot.lane.b32.xlu0 %v110, 96
    %v112 = vpop.permute.xlu0 %111
    %vm113 = vcmask 917248
    %s114 = scalar_lea.vmem [#allocation0], 64
    %115 = vst.msk [vmem:[%s114] ss:$8 sm:$0xf] %vm113, %v112
    %s116 = scalar_lea.vmem [#allocation0], 64
    %117 = vst.msk [vmem:[%s116] ss:$8 sm:$0xf0] %vm113, %v112
    %s118 = scalar_lea.vmem %s0, 134
    %v119 = vld [vmem:[%s118] ss:$8 sm:$0xf]
    %s120 = scalar_lea.vmem %s0, 134
    %v121 = vld [vmem:[%s120] ss:$8 sm:$0xf0]
    %vm122 = vcmask 1047556
    %v123 = vsel %vm122, %v121, %v119
    %124 = vrot.lane.b32.xlu0 %v123, 96
    %v125 = vpop.permute.xlu0 %124
    %vm126 = vcmask 917248
    %s127 = scalar_lea.vmem [#allocation0], 128
    %128 = vst.msk [vmem:[%s127] ss:$8 sm:$0xf] %vm126, %v125
    %s129 = scalar_lea.vmem [#allocation0], 128
    %130 = vst.msk [vmem:[%s129] ss:$8 sm:$0xf0] %vm126, %v125
    %s131 = scalar_lea.vmem %s0, 198
    %v132 = vld [vmem:[%s131] ss:$8 sm:$0xf]
    %s133 = scalar_lea.vmem %s0, 198
    %s134 = smov 48
    %v135 = vld [vmem:[%s133] ss:$8 sm:%s134]
    %vm136 = vcmask 1045508
    %v137 = vsel %vm136, %v135, %v132
    %138 = vrot.lane.b32.xlu0 %v137, 96
    %v139 = vpop.permute.xlu0 %138
    %vm140 = vcmask 917248
    %s141 = scalar_lea.vmem [#allocation0], 192
    %142 = vst.msk [vmem:[%s141] ss:$8 sm:$0xf] %vm140, %v139
    %s143 = scalar_lea.vmem [#allocation0], 192
    %144 = vst.msk [vmem:[%s143] ss:$8 sm:$0x30] %vm140, %v139
    %s145 = scalar_lea.vmem %s0, 5
    %v146 = vld [vmem:[%s145] ss:$8 sm:$0xf]
    %s147 = scalar_lea.vmem %s0, 5
    %v148 = vld [vmem:[%s147] ss:$8 sm:$0xf0]
    %vm149 = vcmask 1047556
    %v150 = vsel %vm149, %v148, %v146
    %151 = vrot.lane.b32.xlu0 %v150, 80
    %v152 = vpop.permute.xlu0 %151
    %vm153 = vcmask 786048
    %154 = vst.msk [vmem:[#allocation0] ss:$8 sm:$0xf] %vm153, %v152
    %155 = vst.msk [vmem:[#allocation0] ss:$8 sm:$0xf0] %vm153, %v152
    %s156 = scalar_lea.vmem %s0, 69
    %v157 = vld [vmem:[%s156] ss:$8 sm:$0xf]
    %s158 = scalar_lea.vmem %s0, 69
    %v159 = vld [vmem:[%s158] ss:$8 sm:$0xf0]
    %vm160 = vcmask 1047556
    %v161 = vsel %vm160, %v159, %v157
    %162 = vrot.lane.b32.xlu0 %v161, 80
    %v163 = vpop.permute.xlu0 %162
    %vm164 = vcmask 786048
    %s165 = scalar_lea.vmem [#allocation0], 64
    %166 = vst.msk [vmem:[%s165] ss:$8 sm:$0xf] %vm164, %v163
    %s167 = scalar_lea.vmem [#allocation0], 64
    %168 = vst.msk [vmem:[%s167] ss:$8 sm:$0xf0] %vm164, %v163
    %s169 = scalar_lea.vmem %s0, 133
    %v170 = vld [vmem:[%s169] ss:$8 sm:$0xf]
    %s171 = scalar_lea.vmem %s0, 133
    %v172 = vld [vmem:[%s171] ss:$8 sm:$0xf0]
    %vm173 = vcmask 1047556
    %v174 = vsel %vm173, %v172, %v170
    %175 = vrot.lane.b32.xlu0 %v174, 80
    %v176 = vpop.permute.xlu0 %175
    %vm177 = vcmask 786048
    %s178 = scalar_lea.vmem [#allocation0], 128
    %179 = vst.msk [vmem:[%s178] ss:$8 sm:$0xf] %vm177, %v176
    %s180 = scalar_lea.vmem [#allocation0], 128
    %181 = vst.msk [vmem:[%s180] ss:$8 sm:$0xf0] %vm177, %v176
    %s182 = scalar_lea.vmem %s0, 197
    %v183 = vld [vmem:[%s182] ss:$8 sm:$0xf]
    %s184 = scalar_lea.vmem %s0, 197
    %s185 = smov 48
    %v186 = vld [vmem:[%s184] ss:$8 sm:%s185]
    %vm187 = vcmask 1045508
    %v188 = vsel %vm187, %v186, %v183
    %189 = vrot.lane.b32.xlu0 %v188, 80
    %v190 = vpop.permute.xlu0 %189
    %vm191 = vcmask 786048
    %s192 = scalar_lea.vmem [#allocation0], 192
    %193 = vst.msk [vmem:[%s192] ss:$8 sm:$0xf] %vm191, %v190
    %s194 = scalar_lea.vmem [#allocation0], 192
    %195 = vst.msk [vmem:[%s194] ss:$8 sm:$0x30] %vm191, %v190
    %s196 = scalar_lea.vmem %s0, 4
    %v197 = vld [vmem:[%s196] ss:$8 sm:$0xf]
    %s198 = scalar_lea.vmem %s0, 4
    %v199 = vld [vmem:[%s198] ss:$8 sm:$0xf0]
    %vm200 = vcmask 1047556
    %v201 = vsel %vm200, %v199, %v197
    %202 = vrot.lane.b32.xlu0 %v201, 64
    %v203 = vpop.permute.xlu0 %202
    %vm204 = vcmask 654848
    %205 = vst.msk [vmem:[#allocation0] ss:$8 sm:$0xf] %vm204, %v203
    %206 = vst.msk [vmem:[#allocation0] ss:$8 sm:$0xf0] %vm204, %v203
    %s207 = scalar_lea.vmem %s0, 68
    %v208 = vld [vmem:[%s207] ss:$8 sm:$0xf]
    %s209 = scalar_lea.vmem %s0, 68
    %v210 = vld [vmem:[%s209] ss:$8 sm:$0xf0]
    %vm211 = vcmask 1047556
    %v212 = vsel %vm211, %v210, %v208
    %213 = vrot.lane.b32.xlu0 %v212, 64
    %v214 = vpop.permute.xlu0 %213
    %vm215 = vcmask 654848
    %s216 = scalar_lea.vmem [#allocation0], 64
    %217 = vst.msk [vmem:[%s216] ss:$8 sm:$0xf] %vm215, %v214
    %s218 = scalar_lea.vmem [#allocation0], 64
    %219 = vst.msk [vmem:[%s218] ss:$8 sm:$0xf0] %vm215, %v214
    %s220 = scalar_lea.vmem %s0, 132
    %v221 = vld [vmem:[%s220] ss:$8 sm:$0xf]
    %s222 = scalar_lea.vmem %s0, 132
    %v223 = vld [vmem:[%s222] ss:$8 sm:$0xf0]
    %vm224 = vcmask 1047556
    %v225 = vsel %vm224, %v223, %v221
    %226 = vrot.lane.b32.xlu0 %v225, 64
    %v227 = vpop.permute.xlu0 %226
    %vm228 = vcmask 654848
    %s229 = scalar_lea.vmem [#allocation0], 128
    %230 = vst.msk [vmem:[%s229] ss:$8 sm:$0xf] %vm228, %v227
    %s231 = scalar_lea.vmem [#allocation0], 128
    %232 = vst.msk [vmem:[%s231] ss:$8 sm:$0xf0] %vm228, %v227
    %s233 = scalar_lea.vmem %s0, 196
    %v234 = vld [vmem:[%s233] ss:$8 sm:$0xf]
    %s235 = scalar_lea.vmem %s0, 196
    %s236 = smov 48
    %v237 = vld [vmem:[%s235] ss:$8 sm:%s236]
    %vm238 = vcmask 1045508
    %v239 = vsel %vm238, %v237, %v234
    %240 = vrot.lane.b32.xlu0 %v239, 64
    %v241 = vpop.permute.xlu0 %240
    %vm242 = vcmask 654848
    %s243 = scalar_lea.vmem [#allocation0], 192
    %244 = vst.msk [vmem:[%s243] ss:$8 sm:$0xf] %vm242, %v241
    %s245 = scalar_lea.vmem [#allocation0], 192
    %246 = vst.msk [vmem:[%s245] ss:$8 sm:$0x30] %vm242, %v241
    %s247 = scalar_lea.vmem %s0, 3
    %v248 = vld [vmem:[%s247] ss:$8 sm:$0xf]
    %s249 = scalar_lea.vmem %s0, 3
    %v250 = vld [vmem:[%s249] ss:$8 sm:$0xf0]
    %vm251 = vcmask 1047556
    %v252 = vsel %vm251, %v250, %v248
    %253 = vrot.lane.b32.xlu0 %v252, 48
    %v254 = vpop.permute.xlu0 %253
    %vm255 = vcmask 523648
    %256 = vst.msk [vmem:[#allocation0] ss:$8 sm:$0xf] %vm255, %v254
    %257 = vst.msk [vmem:[#allocation0] ss:$8 sm:$0xf0] %vm255, %v254
    %s258 = scalar_lea.vmem %s0, 67
    %v259 = vld [vmem:[%s258] ss:$8 sm:$0xf]
    %s260 = scalar_lea.vmem %s0, 67
    %v261 = vld [vmem:[%s260] ss:$8 sm:$0xf0]
    %vm262 = vcmask 1047556
    %v263 = vsel %vm262, %v261, %v259
    %264 = vrot.lane.b32.xlu0 %v263, 48
    %v265 = vpop.permute.xlu0 %264
    %vm266 = vcmask 523648
    %s267 = scalar_lea.vmem [#allocation0], 64
    %268 = vst.msk [vmem:[%s267] ss:$8 sm:$0xf] %vm266, %v265
    %s269 = scalar_lea.vmem [#allocation0], 64
    %270 = vst.msk [vmem:[%s269] ss:$8 sm:$0xf0] %vm266, %v265
    %s271 = scalar_lea.vmem %s0, 131
    %v272 = vld [vmem:[%s271] ss:$8 sm:$0xf]
    %s273 = scalar_lea.vmem %s0, 131
    %v274 = vld [vmem:[%s273] ss:$8 sm:$0xf0]
    %vm275 = vcmask 1047556
    %v276 = vsel %vm275, %v274, %v272
    %277 = vrot.lane.b32.xlu0 %v276, 48
    %v278 = vpop.permute.xlu0 %277
    %vm279 = vcmask 523648
    %s280 = scalar_lea.vmem [#allocation0], 128
    %281 = vst.msk [vmem:[%s280] ss:$8 sm:$0xf] %vm279, %v278
    %s282 = scalar_lea.vmem [#allocation0], 128
    %283 = vst.msk [vmem:[%s282] ss:$8 sm:$0xf0] %vm279, %v278
    %s284 = scalar_lea.vmem %s0, 195
    %v285 = vld [vmem:[%s284] ss:$8 sm:$0xf]
    %s286 = scalar_lea.vmem %s0, 195
    %s287 = smov 48
    %v288 = vld [vmem:[%s286] ss:$8 sm:%s287]
    %vm289 = vcmask 1045508
    %v290 = vsel %vm289, %v288, %v285
    %291 = vrot.lane.b32.xlu0 %v290, 48
    %v292 = vpop.permute.xlu0 %291
    %vm293 = vcmask 523648
    %s294 = scalar_lea.vmem [#allocation0], 192
    %295 = vst.msk [vmem:[%s294] ss:$8 sm:$0xf] %vm293, %v292
    %s296 = scalar_lea.vmem [#allocation0], 192
    %297 = vst.msk [vmem:[%s296] ss:$8 sm:$0x30] %vm293, %v292
    %s298 = scalar_lea.vmem %s0, 2
    %v299 = vld [vmem:[%s298] ss:$8 sm:$0xf]
    %s300 = scalar_lea.vmem %s0, 2
    %v301 = vld [vmem:[%s300] ss:$8 sm:$0xf0]
    %vm302 = vcmask 1047556
    %v303 = vsel %vm302, %v301, %v299
    %304 = vrot.lane.b32.xlu0 %v303, 32
    %v305 = vpop.permute.xlu0 %304
    %vm306 = vcmask 392448
    %307 = vst.msk [vmem:[#allocation0] ss:$8 sm:$0xf] %vm306, %v305
    %308 = vst.msk [vmem:[#allocation0] ss:$8 sm:$0xf0] %vm306, %v305
    %s309 = scalar_lea.vmem %s0, 66
    %v310 = vld [vmem:[%s309] ss:$8 sm:$0xf]
    %s311 = scalar_lea.vmem %s0, 66
    %v312 = vld [vmem:[%s311] ss:$8 sm:$0xf0]
    %vm313 = vcmask 1047556
    %v314 = vsel %vm313, %v312, %v310
    %315 = vrot.lane.b32.xlu0 %v314, 32
    %v316 = vpop.permute.xlu0 %315
    %vm317 = vcmask 392448
    %s318 = scalar_lea.vmem [#allocation0], 64
    %319 = vst.msk [vmem:[%s318] ss:$8 sm:$0xf] %vm317, %v316
    %s320 = scalar_lea.vmem [#allocation0], 64
    %321 = vst.msk [vmem:[%s320] ss:$8 sm:$0xf0] %vm317, %v316
    %s322 = scalar_lea.vmem %s0, 130
    %v323 = vld [vmem:[%s322] ss:$8 sm:$0xf]
    %s324 = scalar_lea.vmem %s0, 130
    %v325 = vld [vmem:[%s324] ss:$8 sm:$0xf0]
    %vm326 = vcmask 1047556
    %v327 = vsel %vm326, %v325, %v323
    %328 = vrot.lane.b32.xlu0 %v327, 32
    %v329 = vpop.permute.xlu0 %328
    %vm330 = vcmask 392448
    %s331 = scalar_lea.vmem [#allocation0], 128
    %332 = vst.msk [vmem:[%s331] ss:$8 sm:$0xf] %vm330, %v329
    %s333 = scalar_lea.vmem [#allocation0], 128
    %334 = vst.msk [vmem:[%s333] ss:$8 sm:$0xf0] %vm330, %v329
    %s335 = scalar_lea.vmem %s0, 194
    %v336 = vld [vmem:[%s335] ss:$8 sm:$0xf]
    %s337 = scalar_lea.vmem %s0, 194
    %s338 = smov 48
    %v339 = vld [vmem:[%s337] ss:$8 sm:%s338]
    %vm340 = vcmask 1045508
    %v341 = vsel %vm340, %v339, %v336
    %342 = vrot.lane.b32.xlu0 %v341, 32
    %v343 = vpop.permute.xlu0 %342
    %vm344 = vcmask 392448
    %s345 = scalar_lea.vmem [#allocation0], 192
    %346 = vst.msk [vmem:[%s345] ss:$8 sm:$0xf] %vm344, %v343
    %s347 = scalar_lea.vmem [#allocation0], 192
    %348 = vst.msk [vmem:[%s347] ss:$8 sm:$0x30] %vm344, %v343
    %s349 = scalar_lea.vmem %s0, 1
    %v350 = vld [vmem:[%s349] ss:$8 sm:$0xf]
    %s351 = scalar_lea.vmem %s0, 1
    %v352 = vld [vmem:[%s351] ss:$8 sm:$0xf0]
    %vm353 = vcmask 1047556
    %v354 = vsel %vm353, %v352, %v350
    %355 = vrot.lane.b32.xlu0 %v354, 16
    %v356 = vpop.permute.xlu0 %355
    %vm357 = vcmask 261248
    %358 = vst.msk [vmem:[#allocation0] ss:$8 sm:$0xf] %vm357, %v356
    %359 = vst.msk [vmem:[#allocation0] ss:$8 sm:$0xf0] %vm357, %v356
    %s360 = scalar_lea.vmem %s0, 65
    %v361 = vld [vmem:[%s360] ss:$8 sm:$0xf]
    %s362 = scalar_lea.vmem %s0, 65
    %v363 = vld [vmem:[%s362] ss:$8 sm:$0xf0]
    %vm364 = vcmask 1047556
    %v365 = vsel %vm364, %v363, %v361
    %366 = vrot.lane.b32.xlu0 %v365, 16
    %v367 = vpop.permute.xlu0 %366
    %vm368 = vcmask 261248
    %s369 = scalar_lea.vmem [#allocation0], 64
    %370 = vst.msk [vmem:[%s369] ss:$8 sm:$0xf] %vm368, %v367
    %s371 = scalar_lea.vmem [#allocation0], 64
    %372 = vst.msk [vmem:[%s371] ss:$8 sm:$0xf0] %vm368, %v367
    %s373 = scalar_lea.vmem %s0, 129
    %v374 = vld [vmem:[%s373] ss:$8 sm:$0xf]
    %s375 = scalar_lea.vmem %s0, 129
    %v376 = vld [vmem:[%s375] ss:$8 sm:$0xf0]
    %vm377 = vcmask 1047556
    %v378 = vsel %vm377, %v376, %v374
    %379 = vrot.lane.b32.xlu0 %v378, 16
    %v380 = vpop.permute.xlu0 %379
    %vm381 = vcmask 261248
    %s382 = scalar_lea.vmem [#allocation0], 128
    %383 = vst.msk [vmem:[%s382] ss:$8 sm:$0xf] %vm381, %v380
    %s384 = scalar_lea.vmem [#allocation0], 128
    %385 = vst.msk [vmem:[%s384] ss:$8 sm:$0xf0] %vm381, %v380
    %s386 = scalar_lea.vmem %s0, 193
    %v387 = vld [vmem:[%s386] ss:$8 sm:$0xf]
    %s388 = scalar_lea.vmem %s0, 193
    %s389 = smov 48
    %v390 = vld [vmem:[%s388] ss:$8 sm:%s389]
    %vm391 = vcmask 1045508
    %v392 = vsel %vm391, %v390, %v387
    %393 = vrot.lane.b32.xlu0 %v392, 16
    %v394 = vpop.permute.xlu0 %393
    %vm395 = vcmask 261248
    %s396 = scalar_lea.vmem [#allocation0], 192
    %397 = vst.msk [vmem:[%s396] ss:$8 sm:$0xf] %vm395, %v394
    %s398 = scalar_lea.vmem [#allocation0], 192
    %399 = vst.msk [vmem:[%s398] ss:$8 sm:$0x30] %vm395, %v394
    %s401 = sshll.u32 1, 1
    %s402 = ssub.s32 %s401, 1
    %v404 = vld [vmem:[#allocation0] sm:%s402]
    %s405 = sshll.u32 1, 1
    %s406 = ssub.s32 %s405, 1
    %407 = vst [vmem:[%s1] sm:%s406] %v404
    %s408 = scalar_lea.vmem [#allocation0], 8
    %v409 = vld [vmem:[%s408] sm:%s402]
    %s410 = sshll.u32 1, 1
    %s411 = ssub.s32 %s410, 1
    %s412 = scalar_lea.vmem %s1, 1
    %413 = vst [vmem:[%s412] sm:%s411] %v409
    %s414 = scalar_lea.vmem [#allocation0], 16
    %v415 = vld [vmem:[%s414] sm:%s402]
    %s416 = sshll.u32 1, 1
    %s417 = ssub.s32 %s416, 1
    %s418 = smul.addr 1, 2
    %s419 = scalar_lea.vmem %s1, %s418
    %420 = vst [vmem:[%s419] sm:%s417] %v415
    %s421 = scalar_lea.vmem [#allocation0], 24
    %v422 = vld [vmem:[%s421] sm:%s402]
    %s423 = sshll.u32 1, 1
    %s424 = ssub.s32 %s423, 1
    %s425 = smul.addr 1, 3
    %s426 = scalar_lea.vmem %s1, %s425
    %427 = vst [vmem:[%s426] sm:%s424] %v422
    %s428 = scalar_lea.vmem [#allocation0], 32
    %v429 = vld [vmem:[%s428] sm:%s402]
    %s430 = sshll.u32 1, 1
    %s431 = ssub.s32 %s430, 1
    %s432 = smul.addr 1, 4
    %s433 = scalar_lea.vmem %s1, %s432
    %434 = vst [vmem:[%s433] sm:%s431] %v429
    %s435 = scalar_lea.vmem [#allocation0], 40
    %v436 = vld [vmem:[%s435] sm:%s402]
    %s437 = sshll.u32 1, 1
    %s438 = ssub.s32 %s437, 1
    %s439 = smul.addr 1, 5
    %s440 = scalar_lea.vmem %s1, %s439
    %441 = vst [vmem:[%s440] sm:%s438] %v436
    %s442 = scalar_lea.vmem [#allocation0], 48
    %v443 = vld [vmem:[%s442] sm:%s402]
    %s444 = sshll.u32 1, 1
    %s445 = ssub.s32 %s444, 1
    %s446 = smul.addr 1, 6
    %s447 = scalar_lea.vmem %s1, %s446
    %448 = vst [vmem:[%s447] sm:%s445] %v443
    %s449 = scalar_lea.vmem [#allocation0], 56
    %v450 = vld [vmem:[%s449] sm:%s402]
    %s451 = sshll.u32 1, 1
    %s452 = ssub.s32 %s451, 1
    %s453 = smul.addr 1, 7
    %s454 = scalar_lea.vmem %s1, %s453
    %455 = vst [vmem:[%s454] sm:%s452] %v450
    %s456 = scalar_lea.vmem [#allocation0], 64
    %v457 = vld [vmem:[%s456] sm:%s402]
    %s458 = sshll.u32 1, 1
    %s459 = ssub.s32 %s458, 1
    %s460 = smul.addr 1, 8
    %s461 = scalar_lea.vmem %s1, %s460
    %462 = vst [vmem:[%s461] sm:%s459] %v457
    %s463 = scalar_lea.vmem [#allocation0], 72
    %v464 = vld [vmem:[%s463] sm:%s402]
    %s465 = sshll.u32 1, 1
    %s466 = ssub.s32 %s465, 1
    %s467 = smul.addr 1, 9
    %s468 = scalar_lea.vmem %s1, %s467
    %469 = vst [vmem:[%s468] sm:%s466] %v464
    %s470 = scalar_lea.vmem [#allocation0], 80
    %v471 = vld [vmem:[%s470] sm:%s402]
    %s472 = sshll.u32 1, 1
    %s473 = ssub.s32 %s472, 1
    %s474 = smul.addr 1, 10
    %s475 = scalar_lea.vmem %s1, %s474
    %476 = vst [vmem:[%s475] sm:%s473] %v471
    %s477 = scalar_lea.vmem [#allocation0], 88
    %v478 = vld [vmem:[%s477] sm:%s402]
    %s479 = sshll.u32 1, 1
    %s480 = ssub.s32 %s479, 1
    %s481 = smul.addr 1, 11
    %s482 = scalar_lea.vmem %s1, %s481
    %483 = vst [vmem:[%s482] sm:%s480] %v478
    %s484 = scalar_lea.vmem [#allocation0], 96
    %v485 = vld [vmem:[%s484] sm:%s402]
    %s486 = sshll.u32 1, 1
    %s487 = ssub.s32 %s486, 1
    %s488 = smul.addr 1, 12
    %s489 = scalar_lea.vmem %s1, %s488
    %490 = vst [vmem:[%s489] sm:%s487] %v485
    %s491 = scalar_lea.vmem [#allocation0], 104
    %v492 = vld [vmem:[%s491] sm:%s402]
    %s493 = sshll.u32 1, 1
    %s494 = ssub.s32 %s493, 1
    %s495 = smul.addr 1, 13
    %s496 = scalar_lea.vmem %s1, %s495
    %497 = vst [vmem:[%s496] sm:%s494] %v492
    %s498 = scalar_lea.vmem [#allocation0], 112
    %v499 = vld [vmem:[%s498] sm:%s402]
    %s500 = sshll.u32 1, 1
    %s501 = ssub.s32 %s500, 1
    %s502 = smul.addr 1, 14
    %s503 = scalar_lea.vmem %s1, %s502
    %504 = vst [vmem:[%s503] sm:%s501] %v499
    %s505 = scalar_lea.vmem [#allocation0], 120
    %v506 = vld [vmem:[%s505] sm:%s402]
    %s507 = sshll.u32 1, 1
    %s508 = ssub.s32 %s507, 1
    %s509 = smul.addr 1, 15
    %s510 = scalar_lea.vmem %s1, %s509
    %511 = vst [vmem:[%s510] sm:%s508] %v506
    %s512 = scalar_lea.vmem [#allocation0], 128
    %v513 = vld [vmem:[%s512] sm:%s402]
    %s514 = sshll.u32 1, 1
    %s515 = ssub.s32 %s514, 1
    %s516 = smul.addr 1, 16
    %s517 = scalar_lea.vmem %s1, %s516
    %518 = vst [vmem:[%s517] sm:%s515] %v513
    %s519 = scalar_lea.vmem [#allocation0], 136
    %v520 = vld [vmem:[%s519] sm:%s402]
    %s521 = sshll.u32 1, 1
    %s522 = ssub.s32 %s521, 1
    %s523 = smul.addr 1, 17
    %s524 = scalar_lea.vmem %s1, %s523
    %525 = vst [vmem:[%s524] sm:%s522] %v520
    %s526 = scalar_lea.vmem [#allocation0], 144
    %v527 = vld [vmem:[%s526] sm:%s402]
    %s528 = sshll.u32 1, 1
    %s529 = ssub.s32 %s528, 1
    %s530 = smul.addr 1, 18
    %s531 = scalar_lea.vmem %s1, %s530
    %532 = vst [vmem:[%s531] sm:%s529] %v527
    %s533 = scalar_lea.vmem [#allocation0], 152
    %v534 = vld [vmem:[%s533] sm:%s402]
    %s535 = sshll.u32 1, 1
    %s536 = ssub.s32 %s535, 1
    %s537 = smul.addr 1, 19
    %s538 = scalar_lea.vmem %s1, %s537
    %539 = vst [vmem:[%s538] sm:%s536] %v534
    %s540 = scalar_lea.vmem [#allocation0], 160
    %v541 = vld [vmem:[%s540] sm:%s402]
    %s542 = sshll.u32 1, 1
    %s543 = ssub.s32 %s542, 1
    %s544 = smul.addr 1, 20
    %s545 = scalar_lea.vmem %s1, %s544
    %546 = vst [vmem:[%s545] sm:%s543] %v541
    %s547 = scalar_lea.vmem [#allocation0], 168
    %v548 = vld [vmem:[%s547] sm:%s402]
    %s549 = sshll.u32 1, 1
    %s550 = ssub.s32 %s549, 1
    %s551 = smul.addr 1, 21
    %s552 = scalar_lea.vmem %s1, %s551
    %553 = vst [vmem:[%s552] sm:%s550] %v548
    %s554 = scalar_lea.vmem [#allocation0], 176
    %v555 = vld [vmem:[%s554] sm:%s402]
    %s556 = sshll.u32 1, 1
    %s557 = ssub.s32 %s556, 1
    %s558 = smul.addr 1, 22
    %s559 = scalar_lea.vmem %s1, %s558
    %560 = vst [vmem:[%s559] sm:%s557] %v555
    %s561 = scalar_lea.vmem [#allocation0], 184
    %v562 = vld [vmem:[%s561] sm:%s402]
    %s563 = sshll.u32 1, 1
    %s564 = ssub.s32 %s563, 1
    %s565 = smul.addr 1, 23
    %s566 = scalar_lea.vmem %s1, %s565
    %567 = vst [vmem:[%s566] sm:%s564] %v562
    %s568 = scalar_lea.vmem [#allocation0], 192
    %v569 = vld [vmem:[%s568] sm:%s402]
    %s570 = sshll.u32 1, 1
    %s571 = ssub.s32 %s570, 1
    %s572 = smul.addr 1, 24
    %s573 = scalar_lea.vmem %s1, %s572
    %574 = vst [vmem:[%s573] sm:%s571] %v569
    %s575 = scalar_lea.vmem [#allocation0], 200
    %v576 = vld [vmem:[%s575] sm:%s402]
    %s577 = sshll.u32 1, 1
    %s578 = ssub.s32 %s577, 1
    %s579 = smul.addr 1, 25
    %s580 = scalar_lea.vmem %s1, %s579
    %581 = vst [vmem:[%s580] sm:%s578] %v576
    %s582 = scalar_lea.vmem [#allocation0], 208
    %v583 = vld [vmem:[%s582] sm:%s402]
    %s584 = sshll.u32 1, 1
    %s585 = ssub.s32 %s584, 1
    %s586 = smul.addr 1, 26
    %s587 = scalar_lea.vmem %s1, %s586
    %588 = vst [vmem:[%s587] sm:%s585] %v583
    %s589 = scalar_lea.vmem [#allocation0], 216
    %v590 = vld [vmem:[%s589] sm:%s402]
    %s591 = sshll.u32 1, 1
    %s592 = ssub.s32 %s591, 1
    %s593 = smul.addr 1, 27
    %s594 = scalar_lea.vmem %s1, %s593
    %595 = vst [vmem:[%s594] sm:%s592] %v590
    %s596 = scalar_lea.vmem [#allocation0], 224
    %v597 = vld [vmem:[%s596] sm:%s402]
    %s598 = sshll.u32 1, 1
    %s599 = ssub.s32 %s598, 1
    %s600 = smul.addr 1, 28
    %s601 = scalar_lea.vmem %s1, %s600
    %602 = vst [vmem:[%s601] sm:%s599] %v597
    %s603 = scalar_lea.vmem [#allocation0], 232
    %v604 = vld [vmem:[%s603] sm:%s402]
    %s605 = sshll.u32 1, 1
    %s606 = ssub.s32 %s605, 1
    %s607 = smul.addr 1, 29
    %s608 = scalar_lea.vmem %s1, %s607
    %609 = vst [vmem:[%s608] sm:%s606] %v604

// kernel: upsample_forward.1
$region0: #{upsample_forward.1}
  #allocation0 [shape = 'u32[]', space=smem, size = 0x4, offset = 0x4, fixed_abs, tag = 'smem constant byte address 0x4 - core index']
  #allocation1 [shape = 'u32[144,128]{1,0:T(1,128)}', space=vmem, size = 0x12000, scoped, tag = 'internal scratch']
  %s0 = inlined_call_operand.vmem [shape: f32[32,256], index: 0, kind: input, shape index: {}]
  %s1 = inlined_call_operand.vmem [shape: f32[32,256], index: 1, kind: input, shape index: {}]
  %s2 = inlined_call_operand.vmem [shape: f32[256,3840], index: 2, kind: input, shape index: {}]
  %s3 = inlined_call_operand.vmem [shape: f32[256,3840], index: 3, kind: input, shape index: {}]
  %s4 = inlined_call_operand.vmem [shape: f32[1,3840], index: 4, kind: input, shape index: {}]
  %s5 = inlined_call_operand.vmem [shape: f32[30,3840], index: 5, kind: output, shape index: {}]
  %s6 = sld [smem:[#allocation0]]
  $region53: #{upsample_forward.1} parent=0
    _
  %s8 = ssub.s32 1, %s6
  %s9 = scalar_select 0, %s8, %s6
  loop: start=0, step=1, limit=4
  $region2: #{upsample_forward.1} parent=0 // loop_pre_header
    _
  $region3: #{upsample_forward.1} parent=0 // loop_header
    %s11 = sphi 0, %s15
    %p12 = scmp.ge.s32.totalorder %s11, 4
    %s21 = sphi 0, %s23
    %s24 = sphi 0, %s21
    %s25 = sphi 0, %s24
    %s41 = sphi 0, %s25
    %s47 = sphi 0, %s49
    %s50 = sphi 0, %s47
    %s51 = sphi 0, %s50
    %s67 = sphi 0, %s51
    %s71 = sphi 0, %s71
    %s73 = sphi 0, %s71
    %s74 = sphi 0, %s73
    %s88 = sphi 0, %s74
    %s92 = sphi 0, %s92
    %s94 = sphi 0, %s92
    %s95 = sphi 0, %s94
    %s109 = sphi 0, %s95
    %s113 = sphi 0, %s113
    %s115 = sphi 0, %s113
    %s116 = sphi 0, %s115
    %s130 = sphi 0, %s116
    %s136 = sphi 0, %s138
    %s139 = sphi 0, %s136
    %s140 = sphi 0, %s139
    %s156 = sphi 0, %s140
  $region4: #{upsample_forward.1} parent=0 // loop_header_branch
    %14 = sbr.rel (%p12) target = $region8
  $region5: #{upsample_forward.1} parent=0 // loop_body
    %s16 = ssub.s32 %s11, 1
    %s17 = ssub.s32 %s11, 2
    %s18 = sadd.s32 %s11, 1
    %s19 = ssub.s32 %s11, %s18
    %p20 = scmp.eq.s32.totalorder %s19, 0
    %s22 = sadd.s32 %s21, 1
    %s23 = scalar_select %p20, %s21, %s22
    %p26 = pneg %p20
    %p27 = scmp.eq.s32.totalorder %s11, 1
    %p28 = por %p26, %p27
    %p29 = scmp.ne.s32.totalorder %s21, %s24
    %p30 = scmp.eq.s32.totalorder %s11, 0
    %p31 = por %p29, %p30
    %p32 = scmp.ne.s32.totalorder %s21, %s24
    %p33 = scmp.eq.s32.totalorder %s16, 1
    %p34 = por %p32, %p33
    %p35 = scmp.ne.s32.totalorder %s24, %s25
    %p36 = scmp.eq.s32.totalorder %s16, 0
    %p37 = por %p35, %p36
    %p38 = scmp.ne.s32.totalorder %s24, %s25
    %p39 = scmp.eq.s32.totalorder %s17, 1
    %p40 = por %p38, %p39
    %p42 = scmp.ne.s32.totalorder %s25, %s41
    %p43 = scmp.eq.s32.totalorder %s17, 0
    %p44 = por %p42, %p43
    %s45 = ssub.s32 %s11, %s18
    %p46 = scmp.eq.s32.totalorder %s45, 0
    %s48 = sadd.s32 %s47, 1
    %s49 = scalar_select %p46, %s47, %s48
    %p52 = pneg %p46
    %p53 = scmp.eq.s32.totalorder %s11, 1
    %p54 = por %p52, %p53
    %p55 = scmp.ne.s32.totalorder %s47, %s50
    %p56 = scmp.eq.s32.totalorder %s11, 0
    %p57 = por %p55, %p56
    %p58 = scmp.ne.s32.totalorder %s47, %s50
    %p59 = scmp.eq.s32.totalorder %s16, 1
    %p60 = por %p58, %p59
    %p61 = scmp.ne.s32.totalorder %s50, %s51
    %p62 = scmp.eq.s32.totalorder %s16, 0
    %p63 = por %p61, %p62
    %p64 = scmp.ne.s32.totalorder %s50, %s51
    %p65 = scmp.eq.s32.totalorder %s17, 1
    %p66 = por %p64, %p65
    %p68 = scmp.ne.s32.totalorder %s51, %s67
    %p69 = scmp.eq.s32.totalorder %s17, 0
    %p70 = por %p68, %p69
    %s72 = sadd.s32 %s71, 1
    %p75 = scmp.eq.s32.totalorder %s11, 1
    %p76 = scmp.ne.s32.totalorder %s71, %s73
    %p77 = scmp.eq.s32.totalorder %s11, 0
    %p78 = por %p76, %p77
    %p79 = scmp.ne.s32.totalorder %s71, %s73
    %p80 = scmp.eq.s32.totalorder %s16, 1
    %p81 = por %p79, %p80
    %p82 = scmp.ne.s32.totalorder %s73, %s74
    %p83 = scmp.eq.s32.totalorder %s16, 0
    %p84 = por %p82, %p83
    %p85 = scmp.ne.s32.totalorder %s73, %s74
    %p86 = scmp.eq.s32.totalorder %s17, 1
    %p87 = por %p85, %p86
    %p89 = scmp.ne.s32.totalorder %s74, %s88
    %p90 = scmp.eq.s32.totalorder %s17, 0
    %p91 = por %p89, %p90
    %s93 = sadd.s32 %s92, 1
    %p96 = scmp.eq.s32.totalorder %s11, 1
    %p97 = scmp.ne.s32.totalorder %s92, %s94
    %p98 = scmp.eq.s32.totalorder %s11, 0
    %p99 = por %p97, %p98
    %p100 = scmp.ne.s32.totalorder %s92, %s94
    %p101 = scmp.eq.s32.totalorder %s16, 1
    %p102 = por %p100, %p101
    %p103 = scmp.ne.s32.totalorder %s94, %s95
    %p104 = scmp.eq.s32.totalorder %s16, 0
    %p105 = por %p103, %p104
    %p106 = scmp.ne.s32.totalorder %s94, %s95
    %p107 = scmp.eq.s32.totalorder %s17, 1
    %p108 = por %p106, %p107
    %p110 = scmp.ne.s32.totalorder %s95, %s109
    %p111 = scmp.eq.s32.totalorder %s17, 0
    %p112 = por %p110, %p111
    %s114 = sadd.s32 %s113, 1
    %p117 = scmp.eq.s32.totalorder %s11, 1
    %p118 = scmp.ne.s32.totalorder %s113, %s115
    %p119 = scmp.eq.s32.totalorder %s11, 0
    %p120 = por %p118, %p119
    %p121 = scmp.ne.s32.totalorder %s113, %s115
    %p122 = scmp.eq.s32.totalorder %s16, 1
    %p123 = por %p121, %p122
    %p124 = scmp.ne.s32.totalorder %s115, %s116
    %p125 = scmp.eq.s32.totalorder %s16, 0
    %p126 = por %p124, %p125
    %p127 = scmp.ne.s32.totalorder %s115, %s116
    %p128 = scmp.eq.s32.totalorder %s17, 1
    %p129 = por %p127, %p128
    %p131 = scmp.ne.s32.totalorder %s116, %s130
    %p132 = scmp.eq.s32.totalorder %s17, 0
    %p133 = por %p131, %p132
    %s134 = ssub.s32 %s11, %s18
    %p135 = scmp.eq.s32.totalorder %s134, 0
    %s137 = sadd.s32 %s136, 1
    %s138 = scalar_select %p135, %s136, %s137
    %p141 = pneg %p135
    %p142 = scmp.eq.s32.totalorder %s11, 1
    %p143 = por %p141, %p142
    %p144 = scmp.ne.s32.totalorder %s136, %s139
    %p145 = scmp.eq.s32.totalorder %s11, 0
    %p146 = por %p144, %p145
    %p147 = scmp.ne.s32.totalorder %s136, %s139
    %p148 = scmp.eq.s32.totalorder %s16, 1
    %p149 = por %p147, %p148
    %p150 = scmp.ne.s32.totalorder %s139, %s140
    %p151 = scmp.eq.s32.totalorder %s16, 0
    %p152 = por %p150, %p151
    %p153 = scmp.ne.s32.totalorder %s139, %s140
    %p154 = scmp.eq.s32.totalorder %s17, 1
    %p155 = por %p153, %p154
    %p157 = scmp.ne.s32.totalorder %s140, %s156
    %p158 = scmp.eq.s32.totalorder %s17, 0
    %p159 = por %p157, %p158
    %p160 = scmp.le.s32.totalorder 1, %s11
    %p161 = scmp.lt.s32.totalorder %s11, 3
    %p162 = pnand %p160, %p161
    %p163 = pneg %p162
    // Predicated region
    $region9: #{upsample_forward.1} parent=5 // pred_check
      _
    $region10: #{upsample_forward.1} parent=5 // pred_check_branch
      %165 = sbr.rel (%p162) target = $region12
    $region11: #{upsample_forward.1} parent=5 // pred_region
      %s166 = ssub.s32 %s11, 1
      // Predicated region
      $region13: #{upsample_forward.1} parent=11 // pred_check
        %p167 = pneg %p84
      $region14: #{upsample_forward.1} parent=11 // pred_check_branch
        %169 = sbr.rel (%p167) target = $region16
      $region15: #{upsample_forward.1} parent=11 // pred_region
        _
      $region16: #{upsample_forward.1} parent=11 // pred_fallthru
        _
      // Predicated region
      $region17: #{upsample_forward.1} parent=11 // pred_check
        %p170 = pneg %p105
      $region18: #{upsample_forward.1} parent=11 // pred_check_branch
        %172 = sbr.rel (%p170) target = $region20
      $region19: #{upsample_forward.1} parent=11 // pred_region
        _
      $region20: #{upsample_forward.1} parent=11 // pred_fallthru
        _
      // Predicated region
      $region21: #{upsample_forward.1} parent=11 // pred_check
        %p173 = pneg %p126
      $region22: #{upsample_forward.1} parent=11 // pred_check_branch
        %175 = sbr.rel (%p173) target = $region24
      $region23: #{upsample_forward.1} parent=11 // pred_region
        _
      $region24: #{upsample_forward.1} parent=11 // pred_fallthru
        _
    $region12: #{upsample_forward.1} parent=5 // pred_fallthru
      _
    %p176 = scmp.lt.s32.totalorder %s11, 2
    // Predicated region
    $region25: #{upsample_forward.1} parent=5 // pred_check
      %p177 = pneg %p176
    $region26: #{upsample_forward.1} parent=5 // pred_check_branch
      %179 = sbr.rel (%p177) target = $region28
    $region27: #{upsample_forward.1} parent=5 // pred_region
      // Predicated region
      $region29: #{upsample_forward.1} parent=27 // pred_check
        %p180 = pneg %p31
      $region30: #{upsample_forward.1} parent=27 // pred_check_branch
        %182 = sbr.rel (%p180) target = $region32
      $region31: #{upsample_forward.1} parent=27 // pred_region
        %s183 = smul.u32 2, %s11
        %p184 = scmp.lt.s32.totalorder %s183, 3
        %s185 = scalar_select %p184, %s183, 3
        %s186 = smul.addr %s185, 2
        %s187 = smul.addr %s186, 8
        %s188 = scalar_lea.vmem %s0, %s187
        %s189 = smul.u32 2, %s11
      $region32: #{upsample_forward.1} parent=27 // pred_fallthru
        _
      // Predicated region
      $region33: #{upsample_forward.1} parent=27 // pred_check
        %p190 = pneg %p57
      $region34: #{upsample_forward.1} parent=27 // pred_check_branch
        %192 = sbr.rel (%p190) target = $region36
      $region35: #{upsample_forward.1} parent=27 // pred_region
        %s193 = smul.u32 2, %s11
        %p194 = scmp.lt.s32.totalorder %s193, 3
        %s195 = scalar_select %p194, %s193, 3
        %s196 = smul.addr %s195, 2
        %s197 = smul.addr %s196, 8
        %s198 = scalar_lea.vmem %s1, %s197
        %s199 = smul.u32 2, %s11
      $region36: #{upsample_forward.1} parent=27 // pred_fallthru
        _
    $region28: #{upsample_forward.1} parent=5 // pred_fallthru
      _
    %p200 = scmp.le.s32.totalorder 1, %s11
    %p201 = scmp.lt.s32.totalorder %s11, 3
    %p202 = pnand %p200, %p201
    %p203 = pneg %p202
    // Predicated region
    $region37: #{upsample_forward.1} parent=5 // pred_check
      _
    $region38: #{upsample_forward.1} parent=5 // pred_check_branch
      %205 = sbr.rel (%p202) target = $region40
    $region39: #{upsample_forward.1} parent=5 // pred_region
      %s206 = ssub.s32 %s11, 1
      %s207 = smul.u32 2, %s16
      %p208 = scmp.lt.s32.totalorder %s207, 3
      %s209 = scalar_select %p208, %s207, 3
      %s210 = smul.addr %s209, 2
      %s211 = smul.addr %s210, 8
      %s212 = scalar_lea.vmem %s0, %s211
      %p213 = pneg %p37
      %p214 = pneg %p34
      %s215 = smul.u32 2, %s16
      %p216 = scmp.lt.s32.totalorder %s215, 3
      %s217 = scalar_select %p216, %s215, 3
      %s218 = smul.addr %s217, 2
      %s219 = smul.addr %s218, 8
      %s220 = scalar_lea.vmem %s1, %s219
      %p221 = pneg %p63
      %p222 = pneg %p60
      %p223 = pneg %p84
      %p224 = pneg %p81
      %p225 = pneg %p105
      %p226 = pneg %p102
      %p227 = pneg %p126
      %p228 = pneg %p123
      %p229 = pneg %p152
      %p230 = pneg %p149
      %s231 = smul.u32 2, %s16
      %p232 = scmp.lt.s32.totalorder %s231, 3
      %s233 = scalar_select %p232, %s231, 3
      %s234 = smul.addr %s233, 30
      %s235 = smul.addr %s234, 8
      %s236 = scalar_lea.vmem %s5, %s235
      %s237 = smul.u32 2, %s16
      %p238 = scmp.lt.s32.totalorder %s237, 3
      %s239 = scalar_select %p238, %s237, 3
      %s240 = smul.addr %s239, 2
      %s241 = smul.addr %s240, 8
      %s242 = scalar_lea.vmem %s0, %s241
      %s243 = smul.u32 2, %s16
      %s244 = smul.u32 2, %s16
      %p245 = scmp.lt.s32.totalorder %s244, 3
      %s246 = scalar_select %p245, %s244, 3
      %s247 = smul.addr %s246, 2
      %s248 = smul.addr %s247, 8
      %s249 = scalar_lea.vmem %s1, %s248
      %s250 = smul.u32 2, %s16
      %s251 = smul.u32 2, %s16
      %p252 = scmp.lt.s32.totalorder %s251, 3
      %s253 = scalar_select %p252, %s251, 3
      %s254 = smul.addr %s253, 30
      %s255 = smul.addr %s254, 8
      %s256 = scalar_lea.vmem %s5, %s255
      %s257 = smul.u32 2, %s16
      %v258 = vld [vmem:[%s242] sm:$0xff]
      %v259 = vld [vmem:[%s242 + $0x8] sm:$0xff]
      %v260 = vld [vmem:[%s242 + $0x10] sm:$0xff]
      %v261 = vld [vmem:[%s242 + $0x18] sm:$0xff]
      %v262 = vld [vmem:[%s2] sm:$0xff]
      %v263 = vld [vmem:[%s2 + $0x8] sm:$0xff]
      %v264 = vld [vmem:[%s2 + $0x10] sm:$0xff]
      %v265 = vld [vmem:[%s2 + $0x18] sm:$0xff]
      %v266 = vld [vmem:[%s2 + $0x20] sm:$0xff]
      %v267 = vld [vmem:[%s2 + $0x28] sm:$0xff]
      %v268 = vld [vmem:[%s2 + $0x30] sm:$0xff]
      %v269 = vld [vmem:[%s2 + $0x38] sm:$0xff]
      %v270 = vld [vmem:[%s2 + $0x40] sm:$0xff]
      %v271 = vld [vmem:[%s2 + $0x48] sm:$0xff]
      %v272 = vld [vmem:[%s2 + $0x50] sm:$0xff]
      %v273 = vld [vmem:[%s2 + $0x58] sm:$0xff]
      %v274 = vld [vmem:[%s2 + $0x60] sm:$0xff]
      %v275 = vld [vmem:[%s2 + $0x68] sm:$0xff]
      %v276 = vld [vmem:[%s2 + $0x70] sm:$0xff]
      %v277 = vld [vmem:[%s2 + $0x78] sm:$0xff]
      %v278 = vld [vmem:[%s2 + $0x80] sm:$0xff]
      %v279 = vld [vmem:[%s2 + $0x88] sm:$0xff]
      %v280 = vld [vmem:[%s2 + $0x90] sm:$0xff]
      %v281 = vld [vmem:[%s2 + $0x98] sm:$0xff]
      %v282 = vld [vmem:[%s2 + $0xa0] sm:$0xff]
      %v283 = vld [vmem:[%s2 + $0xa8] sm:$0xff]
      %v284 = vld [vmem:[%s2 + $0xb0] sm:$0xff]
      %v285 = vld [vmem:[%s2 + $0xb8] sm:$0xff]
      %v286 = vld [vmem:[%s2 + $0xc0] sm:$0xff]
      %v287 = vld [vmem:[%s2 + $0xc8] sm:$0xff]
      %v288 = vld [vmem:[%s2 + $0xd0] sm:$0xff]
      %v289 = vld [vmem:[%s2 + $0xd8] sm:$0xff]
      %v290 = vld [vmem:[%s2 + $0xe0] sm:$0xff]
      %v291 = vld [vmem:[%s2 + $0xe8] sm:$0xff]
      %v292 = vld [vmem:[%s2 + $0xf0] sm:$0xff]
      %v293 = vld [vmem:[%s2 + $0xf8] sm:$0xff]
      %v294 = vld [vmem:[%s2 + $0x100] sm:$0xff]
      %v295 = vld [vmem:[%s2 + $0x108] sm:$0xff]
      %v296 = vld [vmem:[%s2 + $0x110] sm:$0xff]
      %v297 = vld [vmem:[%s2 + $0x118] sm:$0xff]
      %v298 = vld [vmem:[%s2 + $0x120] sm:$0xff]
      %v299 = vld [vmem:[%s2 + $0x128] sm:$0xff]
      %v300 = vld [vmem:[%s2 + $0x130] sm:$0xff]
      %v301 = vld [vmem:[%s2 + $0x138] sm:$0xff]
      %v302 = vld [vmem:[%s2 + $0x140] sm:$0xff]
      %v303 = vld [vmem:[%s2 + $0x148] sm:$0xff]
      %v304 = vld [vmem:[%s2 + $0x150] sm:$0xff]
      %v305 = vld [vmem:[%s2 + $0x158] sm:$0xff]
      %v306 = vld [vmem:[%s2 + $0x160] sm:$0xff]
      %v307 = vld [vmem:[%s2 + $0x168] sm:$0xff]
      %v308 = vld [vmem:[%s2 + $0x170] sm:$0xff]
      %v309 = vld [vmem:[%s2 + $0x178] sm:$0xff]
      %v310 = vld [vmem:[%s2 + $0x180] sm:$0xff]
      %v311 = vld [vmem:[%s2 + $0x188] sm:$0xff]
      %v312 = vld [vmem:[%s2 + $0x190] sm:$0xff]
      %v313 = vld [vmem:[%s2 + $0x198] sm:$0xff]
      %v314 = vld [vmem:[%s2 + $0x1a0] sm:$0xff]
      %v315 = vld [vmem:[%s2 + $0x1a8] sm:$0xff]
      %v316 = vld [vmem:[%s2 + $0x1b0] sm:$0xff]
      %v317 = vld [vmem:[%s2 + $0x1b8] sm:$0xff]
      %v318 = vld [vmem:[%s2 + $0x1c0] sm:$0xff]
      %v319 = vld [vmem:[%s2 + $0x1c8] sm:$0xff]
      %v320 = vld [vmem:[%s2 + $0x1d0] sm:$0xff]
      %v321 = vld [vmem:[%s2 + $0x1d8] sm:$0xff]
      %v322 = vld [vmem:[%s2 + $0x1e0] sm:$0xff]
      %v323 = vld [vmem:[%s2 + $0x1e8] sm:$0xff]
      %v324 = vld [vmem:[%s2 + $0x1f0] sm:$0xff]
      %v325 = vld [vmem:[%s2 + $0x1f8] sm:$0xff]
      %v326 = vld [vmem:[%s2 + $0x200] sm:$0xff]
      %v327 = vld [vmem:[%s2 + $0x208] sm:$0xff]
      %v328 = vld [vmem:[%s2 + $0x210] sm:$0xff]
      %v329 = vld [vmem:[%s2 + $0x218] sm:$0xff]
      %v330 = vld [vmem:[%s2 + $0x220] sm:$0xff]
      %v331 = vld [vmem:[%s2 + $0x228] sm:$0xff]
      %v332 = vld [vmem:[%s2 + $0x230] sm:$0xff]
      %v333 = vld [vmem:[%s2 + $0x238] sm:$0xff]
      %v334 = vld [vmem:[%s2 + $0x240] sm:$0xff]
      %v335 = vld [vmem:[%s2 + $0x248] sm:$0xff]
      %v336 = vld [vmem:[%s2 + $0x250] sm:$0xff]
      %v337 = vld [vmem:[%s2 + $0x258] sm:$0xff]
      %v338 = vld [vmem:[%s2 + $0x260] sm:$0xff]
      %v339 = vld [vmem:[%s2 + $0x268] sm:$0xff]
      %v340 = vld [vmem:[%s2 + $0x270] sm:$0xff]
      %v341 = vld [vmem:[%s2 + $0x278] sm:$0xff]
      %v342 = vld [vmem:[%s2 + $0x280] sm:$0xff]
      %v343 = vld [vmem:[%s2 + $0x288] sm:$0xff]
      %v344 = vld [vmem:[%s2 + $0x290] sm:$0xff]
      %v345 = vld [vmem:[%s2 + $0x298] sm:$0xff]
      %v346 = vld [vmem:[%s2 + $0x2a0] sm:$0xff]
      %v347 = vld [vmem:[%s2 + $0x2a8] sm:$0xff]
      %v348 = vld [vmem:[%s2 + $0x2b0] sm:$0xff]
      %v349 = vld [vmem:[%s2 + $0x2b8] sm:$0xff]
      %v350 = vld [vmem:[%s2 + $0x2c0] sm:$0xff]
      %v351 = vld [vmem:[%s2 + $0x2c8] sm:$0xff]
      %v352 = vld [vmem:[%s2 + $0x2d0] sm:$0xff]
      %v353 = vld [vmem:[%s2 + $0x2d8] sm:$0xff]
      %v354 = vld [vmem:[%s2 + $0x2e0] sm:$0xff]
      %v355 = vld [vmem:[%s2 + $0x2e8] sm:$0xff]
      %v356 = vld [vmem:[%s2 + $0x2f0] sm:$0xff]
      %v357 = vld [vmem:[%s2 + $0x2f8] sm:$0xff]
      %v358 = vld [vmem:[%s2 + $0x300] sm:$0xff]
      %v359 = vld [vmem:[%s2 + $0x308] sm:$0xff]
      %v360 = vld [vmem:[%s2 + $0x310] sm:$0xff]
      %v361 = vld [vmem:[%s2 + $0x318] sm:$0xff]
      %v362 = vld [vmem:[%s2 + $0x320] sm:$0xff]
      %v363 = vld [vmem:[%s2 + $0x328] sm:$0xff]
      %v364 = vld [vmem:[%s2 + $0x330] sm:$0xff]
      %v365 = vld [vmem:[%s2 + $0x338] sm:$0xff]
      %v366 = vld [vmem:[%s2 + $0x340] sm:$0xff]
      %v367 = vld [vmem:[%s2 + $0x348] sm:$0xff]
      %v368 = vld [vmem:[%s2 + $0x350] sm:$0xff]
      %v369 = vld [vmem:[%s2 + $0x358] sm:$0xff]
      %v370 = vld [vmem:[%s2 + $0x360] sm:$0xff]
      %v371 = vld [vmem:[%s2 + $0x368] sm:$0xff]
      %v372 = vld [vmem:[%s2 + $0x370] sm:$0xff]
      %v373 = vld [vmem:[%s2 + $0x378] sm:$0xff]
      %v374 = vld [vmem:[%s2 + $0x380] sm:$0xff]
      %v375 = vld [vmem:[%s2 + $0x388] sm:$0xff]
      %v376 = vld [vmem:[%s2 + $0x390] sm:$0xff]
      %v377 = vld [vmem:[%s2 + $0x398] sm:$0xff]
      %v378 = vld [vmem:[%s2 + $0x3a0] sm:$0xff]
      %v379 = vld [vmem:[%s2 + $0x3a8] sm:$0xff]
      %v380 = vld [vmem:[%s2 + $0x3b0] sm:$0xff]
      %v381 = vld [vmem:[%s2 + $0x3b8] sm:$0xff]
      %v382 = vld [vmem:[%s2 + $0x3c0] sm:$0xff]
      %v383 = vld [vmem:[%s2 + $0x3c8] sm:$0xff]
      %v384 = vld [vmem:[%s2 + $0x3d0] sm:$0xff]
      %v385 = vld [vmem:[%s2 + $0x3d8] sm:$0xff]
      %v386 = vld [vmem:[%s2 + $0x3e0] sm:$0xff]
      %v387 = vld [vmem:[%s2 + $0x3e8] sm:$0xff]
      %v388 = vld [vmem:[%s2 + $0x3f0] sm:$0xff]
      %v389 = vld [vmem:[%s2 + $0x3f8] sm:$0xff]
      %v390 = vld [vmem:[%s2 + $0x400] sm:$0xff]
      %v391 = vld [vmem:[%s2 + $0x408] sm:$0xff]
      %v392 = vld [vmem:[%s2 + $0x410] sm:$0xff]
      %v393 = vld [vmem:[%s2 + $0x418] sm:$0xff]
      %v394 = vld [vmem:[%s2 + $0x420] sm:$0xff]
      %v395 = vld [vmem:[%s2 + $0x428] sm:$0xff]
      %v396 = vld [vmem:[%s2 + $0x430] sm:$0xff]
      %v397 = vld [vmem:[%s2 + $0x438] sm:$0xff]
      %v398 = vld [vmem:[%s2 + $0x440] sm:$0xff]
      %v399 = vld [vmem:[%s2 + $0x448] sm:$0xff]
      %v400 = vld [vmem:[%s2 + $0x450] sm:$0xff]
      %v401 = vld [vmem:[%s2 + $0x458] sm:$0xff]
      %v402 = vld [vmem:[%s2 + $0x460] sm:$0xff]
      %v403 = vld [vmem:[%s2 + $0x468] sm:$0xff]
      %v404 = vld [vmem:[%s2 + $0x470] sm:$0xff]
      %v405 = vld [vmem:[%s2 + $0x478] sm:$0xff]
      %v406 = vld [vmem:[%s2 + $0x480] sm:$0xff]
      %v407 = vld [vmem:[%s2 + $0x488] sm:$0xff]
      %v408 = vld [vmem:[%s2 + $0x490] sm:$0xff]
      %v409 = vld [vmem:[%s2 + $0x498] sm:$0xff]
      %v410 = vld [vmem:[%s2 + $0x4a0] sm:$0xff]
      %v411 = vld [vmem:[%s2 + $0x4a8] sm:$0xff]
      %v412 = vld [vmem:[%s2 + $0x4b0] sm:$0xff]
      %v413 = vld [vmem:[%s2 + $0x4b8] sm:$0xff]
      %v414 = vld [vmem:[%s2 + $0x4c0] sm:$0xff]
      %v415 = vld [vmem:[%s2 + $0x4c8] sm:$0xff]
      %v416 = vld [vmem:[%s2 + $0x4d0] sm:$0xff]
      %v417 = vld [vmem:[%s2 + $0x4d8] sm:$0xff]
      %v418 = vld [vmem:[%s2 + $0x4e0] sm:$0xff]
      %v419 = vld [vmem:[%s2 + $0x4e8] sm:$0xff]
      %v420 = vld [vmem:[%s2 + $0x4f0] sm:$0xff]
      %v421 = vld [vmem:[%s2 + $0x4f8] sm:$0xff]
      %v422 = vld [vmem:[%s2 + $0x500] sm:$0xff]
      %v423 = vld [vmem:[%s2 + $0x508] sm:$0xff]
      %v424 = vld [vmem:[%s2 + $0x510] sm:$0xff]
      %v425 = vld [vmem:[%s2 + $0x518] sm:$0xff]
      %v426 = vld [vmem:[%s2 + $0x520] sm:$0xff]
      %v427 = vld [vmem:[%s2 + $0x528] sm:$0xff]
      %v428 = vld [vmem:[%s2 + $0x530] sm:$0xff]
      %v429 = vld [vmem:[%s2 + $0x538] sm:$0xff]
      %v430 = vld [vmem:[%s2 + $0x540] sm:$0xff]
      %v431 = vld [vmem:[%s2 + $0x548] sm:$0xff]
      %v432 = vld [vmem:[%s2 + $0x550] sm:$0xff]
      %v433 = vld [vmem:[%s2 + $0x558] sm:$0xff]
      %v434 = vld [vmem:[%s2 + $0x560] sm:$0xff]
      %v435 = vld [vmem:[%s2 + $0x568] sm:$0xff]
      %v436 = vld [vmem:[%s2 + $0x570] sm:$0xff]
      %v437 = vld [vmem:[%s2 + $0x578] sm:$0xff]
      %v438 = vld [vmem:[%s2 + $0x580] sm:$0xff]
      %v439 = vld [vmem:[%s2 + $0x588] sm:$0xff]
      %v440 = vld [vmem:[%s2 + $0x590] sm:$0xff]
      %v441 = vld [vmem:[%s2 + $0x598] sm:$0xff]
      %v442 = vld [vmem:[%s2 + $0x5a0] sm:$0xff]
      %v443 = vld [vmem:[%s2 + $0x5a8] sm:$0xff]
      %v444 = vld [vmem:[%s2 + $0x5b0] sm:$0xff]
      %v445 = vld [vmem:[%s2 + $0x5b8] sm:$0xff]
      %v446 = vld [vmem:[%s2 + $0x5c0] sm:$0xff]
      %v447 = vld [vmem:[%s2 + $0x5c8] sm:$0xff]
      %v448 = vld [vmem:[%s2 + $0x5d0] sm:$0xff]
      %v449 = vld [vmem:[%s2 + $0x5d8] sm:$0xff]
      %v450 = vld [vmem:[%s2 + $0x5e0] sm:$0xff]
      %v451 = vld [vmem:[%s2 + $0x5e8] sm:$0xff]
      %v452 = vld [vmem:[%s2 + $0x5f0] sm:$0xff]
      %v453 = vld [vmem:[%s2 + $0x5f8] sm:$0xff]
      %v454 = vld [vmem:[%s2 + $0x600] sm:$0xff]
      %v455 = vld [vmem:[%s2 + $0x608] sm:$0xff]
      %v456 = vld [vmem:[%s2 + $0x610] sm:$0xff]
      %v457 = vld [vmem:[%s2 + $0x618] sm:$0xff]
      %v458 = vld [vmem:[%s2 + $0x620] sm:$0xff]
      %v459 = vld [vmem:[%s2 + $0x628] sm:$0xff]
      %v460 = vld [vmem:[%s2 + $0x630] sm:$0xff]
      %v461 = vld [vmem:[%s2 + $0x638] sm:$0xff]
      %v462 = vld [vmem:[%s2 + $0x640] sm:$0xff]
      %v463 = vld [vmem:[%s2 + $0x648] sm:$0xff]
      %v464 = vld [vmem:[%s2 + $0x650] sm:$0xff]
      %v465 = vld [vmem:[%s2 + $0x658] sm:$0xff]
      %v466 = vld [vmem:[%s2 + $0x660] sm:$0xff]
      %v467 = vld [vmem:[%s2 + $0x668] sm:$0xff]
      %v468 = vld [vmem:[%s2 + $0x670] sm:$0xff]
      %v469 = vld [vmem:[%s2 + $0x678] sm:$0xff]
      %v470 = vld [vmem:[%s2 + $0x680] sm:$0xff]
      %v471 = vld [vmem:[%s2 + $0x688] sm:$0xff]
      %v472 = vld [vmem:[%s2 + $0x690] sm:$0xff]
      %v473 = vld [vmem:[%s2 + $0x698] sm:$0xff]
      %v474 = vld [vmem:[%s2 + $0x6a0] sm:$0xff]
      %v475 = vld [vmem:[%s2 + $0x6a8] sm:$0xff]
      %v476 = vld [vmem:[%s2 + $0x6b0] sm:$0xff]
      %v477 = vld [vmem:[%s2 + $0x6b8] sm:$0xff]
      %v478 = vld [vmem:[%s2 + $0x6c0] sm:$0xff]
      %v479 = vld [vmem:[%s2 + $0x6c8] sm:$0xff]
      %v480 = vld [vmem:[%s2 + $0x6d0] sm:$0xff]
      %v481 = vld [vmem:[%s2 + $0x6d8] sm:$0xff]
      %v482 = vld [vmem:[%s2 + $0x6e0] sm:$0xff]
      %v483 = vld [vmem:[%s2 + $0x6e8] sm:$0xff]
      %v484 = vld [vmem:[%s2 + $0x6f0] sm:$0xff]
      %v485 = vld [vmem:[%s2 + $0x6f8] sm:$0xff]
      %v486 = vld [vmem:[%s2 + $0x700] sm:$0xff]
      %v487 = vld [vmem:[%s2 + $0x708] sm:$0xff]
      %v488 = vld [vmem:[%s2 + $0x710] sm:$0xff]
      %v489 = vld [vmem:[%s2 + $0x718] sm:$0xff]
      %v490 = vld [vmem:[%s2 + $0x720] sm:$0xff]
      %v491 = vld [vmem:[%s2 + $0x728] sm:$0xff]
      %v492 = vld [vmem:[%s2 + $0x730] sm:$0xff]
      %v493 = vld [vmem:[%s2 + $0x738] sm:$0xff]
      %v494 = vld [vmem:[%s2 + $0x740] sm:$0xff]
      %v495 = vld [vmem:[%s2 + $0x748] sm:$0xff]
      %v496 = vld [vmem:[%s2 + $0x750] sm:$0xff]
      %v497 = vld [vmem:[%s2 + $0x758] sm:$0xff]
      %v498 = vld [vmem:[%s2 + $0x760] sm:$0xff]
      %v499 = vld [vmem:[%s2 + $0x768] sm:$0xff]
      %v500 = vld [vmem:[%s2 + $0x770] sm:$0xff]
      %v501 = vld [vmem:[%s2 + $0x778] sm:$0xff]
      %v502 = vld [vmem:[%s2 + $0x780] sm:$0xff]
      %v503 = vld [vmem:[%s2 + $0x788] sm:$0xff]
      %v504 = vld [vmem:[%s2 + $0x790] sm:$0xff]
      %v505 = vld [vmem:[%s2 + $0x798] sm:$0xff]
      %v506 = vld [vmem:[%s2 + $0x7a0] sm:$0xff]
      %v507 = vld [vmem:[%s2 + $0x7a8] sm:$0xff]
      %v508 = vld [vmem:[%s2 + $0x7b0] sm:$0xff]
      %v509 = vld [vmem:[%s2 + $0x7b8] sm:$0xff]
      %v510 = vld [vmem:[%s2 + $0x7c0] sm:$0xff]
      %v511 = vld [vmem:[%s2 + $0x7c8] sm:$0xff]
      %v512 = vld [vmem:[%s2 + $0x7d0] sm:$0xff]
      %v513 = vld [vmem:[%s2 + $0x7d8] sm:$0xff]
      %v514 = vld [vmem:[%s2 + $0x7e0] sm:$0xff]
      %v515 = vld [vmem:[%s2 + $0x7e8] sm:$0xff]
      %v516 = vld [vmem:[%s2 + $0x7f0] sm:$0xff]
      %v517 = vld [vmem:[%s2 + $0x7f8] sm:$0xff]
      %v518 = vld [vmem:[%s2 + $0x800] sm:$0xff]
      %v519 = vld [vmem:[%s2 + $0x808] sm:$0xff]
      %v520 = vld [vmem:[%s2 + $0x810] sm:$0xff]
      %v521 = vld [vmem:[%s2 + $0x818] sm:$0xff]
      %v522 = vld [vmem:[%s2 + $0x820] sm:$0xff]
      %v523 = vld [vmem:[%s2 + $0x828] sm:$0xff]
      %v524 = vld [vmem:[%s2 + $0x830] sm:$0xff]
      %v525 = vld [vmem:[%s2 + $0x838] sm:$0xff]
      %v526 = vld [vmem:[%s2 + $0x840] sm:$0xff]
      %v527 = vld [vmem:[%s2 + $0x848] sm:$0xff]
      %v528 = vld [vmem:[%s2 + $0x850] sm:$0xff]
      %v529 = vld [vmem:[%s2 + $0x858] sm:$0xff]
      %v530 = vld [vmem:[%s2 + $0x860] sm:$0xff]
      %v531 = vld [vmem:[%s2 + $0x868] sm:$0xff]
      %v532 = vld [vmem:[%s2 + $0x870] sm:$0xff]
      %v533 = vld [vmem:[%s2 + $0x878] sm:$0xff]
      %v534 = vld [vmem:[%s2 + $0x880] sm:$0xff]
      %v535 = vld [vmem:[%s2 + $0x888] sm:$0xff]
      %v536 = vld [vmem:[%s2 + $0x890] sm:$0xff]
      %v537 = vld [vmem:[%s2 + $0x898] sm:$0xff]
      %v538 = vld [vmem:[%s2 + $0x8a0] sm:$0xff]
      %v539 = vld [vmem:[%s2 + $0x8a8] sm:$0xff]
      %v540 = vld [vmem:[%s2 + $0x8b0] sm:$0xff]
      %v541 = vld [vmem:[%s2 + $0x8b8] sm:$0xff]
      %v542 = vld [vmem:[%s2 + $0x8c0] sm:$0xff]
      %v543 = vld [vmem:[%s2 + $0x8c8] sm:$0xff]
      %v544 = vld [vmem:[%s2 + $0x8d0] sm:$0xff]
      %v545 = vld [vmem:[%s2 + $0x8d8] sm:$0xff]
      %v546 = vld [vmem:[%s2 + $0x8e0] sm:$0xff]
      %v547 = vld [vmem:[%s2 + $0x8e8] sm:$0xff]
      %v548 = vld [vmem:[%s2 + $0x8f0] sm:$0xff]
      %v549 = vld [vmem:[%s2 + $0x8f8] sm:$0xff]
      %v550 = vld [vmem:[%s2 + $0x900] sm:$0xff]
      %v551 = vld [vmem:[%s2 + $0x908] sm:$0xff]
      %v552 = vld [vmem:[%s2 + $0x910] sm:$0xff]
      %v553 = vld [vmem:[%s2 + $0x918] sm:$0xff]
      %v554 = vld [vmem:[%s2 + $0x920] sm:$0xff]
      %v555 = vld [vmem:[%s2 + $0x928] sm:$0xff]
      %v556 = vld [vmem:[%s2 + $0x930] sm:$0xff]
      %v557 = vld [vmem:[%s2 + $0x938] sm:$0xff]
      %v558 = vld [vmem:[%s2 + $0x940] sm:$0xff]
      %v559 = vld [vmem:[%s2 + $0x948] sm:$0xff]
      %v560 = vld [vmem:[%s2 + $0x950] sm:$0xff]
      %v561 = vld [vmem:[%s2 + $0x958] sm:$0xff]
      %v562 = vld [vmem:[%s2 + $0x960] sm:$0xff]
      %v563 = vld [vmem:[%s2 + $0x968] sm:$0xff]
      %v564 = vld [vmem:[%s2 + $0x970] sm:$0xff]
      %v565 = vld [vmem:[%s2 + $0x978] sm:$0xff]
      %v566 = vld [vmem:[%s2 + $0x980] sm:$0xff]
      %v567 = vld [vmem:[%s2 + $0x988] sm:$0xff]
      %v568 = vld [vmem:[%s2 + $0x990] sm:$0xff]
      %v569 = vld [vmem:[%s2 + $0x998] sm:$0xff]
      %v570 = vld [vmem:[%s2 + $0x9a0] sm:$0xff]
      %v571 = vld [vmem:[%s2 + $0x9a8] sm:$0xff]
      %v572 = vld [vmem:[%s2 + $0x9b0] sm:$0xff]
      %v573 = vld [vmem:[%s2 + $0x9b8] sm:$0xff]
      %v574 = vld [vmem:[%s2 + $0x9c0] sm:$0xff]
      %v575 = vld [vmem:[%s2 + $0x9c8] sm:$0xff]
      %v576 = vld [vmem:[%s2 + $0x9d0] sm:$0xff]
      %v577 = vld [vmem:[%s2 + $0x9d8] sm:$0xff]
      %v578 = vld [vmem:[%s2 + $0x9e0] sm:$0xff]
      %v579 = vld [vmem:[%s2 + $0x9e8] sm:$0xff]
      %v580 = vld [vmem:[%s2 + $0x9f0] sm:$0xff]
      %v581 = vld [vmem:[%s2 + $0x9f8] sm:$0xff]
      %v582 = vld [vmem:[%s2 + $0xa00] sm:$0xff]
      %v583 = vld [vmem:[%s2 + $0xa08] sm:$0xff]
      %v584 = vld [vmem:[%s2 + $0xa10] sm:$0xff]
      %v585 = vld [vmem:[%s2 + $0xa18] sm:$0xff]
      %v586 = vld [vmem:[%s2 + $0xa20] sm:$0xff]
      %v587 = vld [vmem:[%s2 + $0xa28] sm:$0xff]
      %v588 = vld [vmem:[%s2 + $0xa30] sm:$0xff]
      %v589 = vld [vmem:[%s2 + $0xa38] sm:$0xff]
      %v590 = vld [vmem:[%s2 + $0xa40] sm:$0xff]
      %v591 = vld [vmem:[%s2 + $0xa48] sm:$0xff]
      %v592 = vld [vmem:[%s2 + $0xa50] sm:$0xff]
      %v593 = vld [vmem:[%s2 + $0xa58] sm:$0xff]
      %v594 = vld [vmem:[%s2 + $0xa60] sm:$0xff]
      %v595 = vld [vmem:[%s2 + $0xa68] sm:$0xff]
      %v596 = vld [vmem:[%s2 + $0xa70] sm:$0xff]
      %v597 = vld [vmem:[%s2 + $0xa78] sm:$0xff]
      %v598 = vld [vmem:[%s2 + $0xa80] sm:$0xff]
      %v599 = vld [vmem:[%s2 + $0xa88] sm:$0xff]
      %v600 = vld [vmem:[%s2 + $0xa90] sm:$0xff]
      %v601 = vld [vmem:[%s2 + $0xa98] sm:$0xff]
      %v602 = vld [vmem:[%s2 + $0xaa0] sm:$0xff]
      %v603 = vld [vmem:[%s2 + $0xaa8] sm:$0xff]
      %v604 = vld [vmem:[%s2 + $0xab0] sm:$0xff]
      %v605 = vld [vmem:[%s2 + $0xab8] sm:$0xff]
      %v606 = vld [vmem:[%s2 + $0xac0] sm:$0xff]
      %v607 = vld [vmem:[%s2 + $0xac8] sm:$0xff]
      %v608 = vld [vmem:[%s2 + $0xad0] sm:$0xff]
      %v609 = vld [vmem:[%s2 + $0xad8] sm:$0xff]
      %v610 = vld [vmem:[%s2 + $0xae0] sm:$0xff]
      %v611 = vld [vmem:[%s2 + $0xae8] sm:$0xff]
      %v612 = vld [vmem:[%s2 + $0xaf0] sm:$0xff]
      %v613 = vld [vmem:[%s2 + $0xaf8] sm:$0xff]
      %v614 = vld [vmem:[%s2 + $0xb00] sm:$0xff]
      %v615 = vld [vmem:[%s2 + $0xb08] sm:$0xff]
      %v616 = vld [vmem:[%s2 + $0xb10] sm:$0xff]
      %v617 = vld [vmem:[%s2 + $0xb18] sm:$0xff]
      %v618 = vld [vmem:[%s2 + $0xb20] sm:$0xff]
      %v619 = vld [vmem:[%s2 + $0xb28] sm:$0xff]
      %v620 = vld [vmem:[%s2 + $0xb30] sm:$0xff]
      %v621 = vld [vmem:[%s2 + $0xb38] sm:$0xff]
      %v622 = vld [vmem:[%s2 + $0xb40] sm:$0xff]
      %v623 = vld [vmem:[%s2 + $0xb48] sm:$0xff]
      %v624 = vld [vmem:[%s2 + $0xb50] sm:$0xff]
      %v625 = vld [vmem:[%s2 + $0xb58] sm:$0xff]
      %v626 = vld [vmem:[%s2 + $0xb60] sm:$0xff]
      %v627 = vld [vmem:[%s2 + $0xb68] sm:$0xff]
      %v628 = vld [vmem:[%s2 + $0xb70] sm:$0xff]
      %v629 = vld [vmem:[%s2 + $0xb78] sm:$0xff]
      %v630 = vld [vmem:[%s2 + $0xb80] sm:$0xff]
      %v631 = vld [vmem:[%s2 + $0xb88] sm:$0xff]
      %v632 = vld [vmem:[%s2 + $0xb90] sm:$0xff]
      %v633 = vld [vmem:[%s2 + $0xb98] sm:$0xff]
      %v634 = vld [vmem:[%s2 + $0xba0] sm:$0xff]
      %v635 = vld [vmem:[%s2 + $0xba8] sm:$0xff]
      %v636 = vld [vmem:[%s2 + $0xbb0] sm:$0xff]
      %v637 = vld [vmem:[%s2 + $0xbb8] sm:$0xff]
      %v638 = vld [vmem:[%s2 + $0xbc0] sm:$0xff]
      %v639 = vld [vmem:[%s2 + $0xbc8] sm:$0xff]
      %v640 = vld [vmem:[%s2 + $0xbd0] sm:$0xff]
      %v641 = vld [vmem:[%s2 + $0xbd8] sm:$0xff]
      %v642 = vld [vmem:[%s2 + $0xbe0] sm:$0xff]
      %v643 = vld [vmem:[%s2 + $0xbe8] sm:$0xff]
      %v644 = vld [vmem:[%s2 + $0xbf0] sm:$0xff]
      %v645 = vld [vmem:[%s2 + $0xbf8] sm:$0xff]
      %v646 = vld [vmem:[%s2 + $0xc00] sm:$0xff]
      %v647 = vld [vmem:[%s2 + $0xc08] sm:$0xff]
      %v648 = vld [vmem:[%s2 + $0xc10] sm:$0xff]
      %v649 = vld [vmem:[%s2 + $0xc18] sm:$0xff]
      %v650 = vld [vmem:[%s2 + $0xc20] sm:$0xff]
      %v651 = vld [vmem:[%s2 + $0xc28] sm:$0xff]
      %v652 = vld [vmem:[%s2 + $0xc30] sm:$0xff]
      %v653 = vld [vmem:[%s2 + $0xc38] sm:$0xff]
      %v654 = vld [vmem:[%s2 + $0xc40] sm:$0xff]
      %v655 = vld [vmem:[%s2 + $0xc48] sm:$0xff]
      %v656 = vld [vmem:[%s2 + $0xc50] sm:$0xff]
      %v657 = vld [vmem:[%s2 + $0xc58] sm:$0xff]
      %v658 = vld [vmem:[%s2 + $0xc60] sm:$0xff]
      %v659 = vld [vmem:[%s2 + $0xc68] sm:$0xff]
      %v660 = vld [vmem:[%s2 + $0xc70] sm:$0xff]
      %v661 = vld [vmem:[%s2 + $0xc78] sm:$0xff]
      %v662 = vld [vmem:[%s2 + $0xc80] sm:$0xff]
      %v663 = vld [vmem:[%s2 + $0xc88] sm:$0xff]
      %v664 = vld [vmem:[%s2 + $0xc90] sm:$0xff]
      %v665 = vld [vmem:[%s2 + $0xc98] sm:$0xff]
      %v666 = vld [vmem:[%s2 + $0xca0] sm:$0xff]
      %v667 = vld [vmem:[%s2 + $0xca8] sm:$0xff]
      %v668 = vld [vmem:[%s2 + $0xcb0] sm:$0xff]
      %v669 = vld [vmem:[%s2 + $0xcb8] sm:$0xff]
      %v670 = vld [vmem:[%s2 + $0xcc0] sm:$0xff]
      %v671 = vld [vmem:[%s2 + $0xcc8] sm:$0xff]
      %v672 = vld [vmem:[%s2 + $0xcd0] sm:$0xff]
      %v673 = vld [vmem:[%s2 + $0xcd8] sm:$0xff]
      %v674 = vld [vmem:[%s2 + $0xce0] sm:$0xff]
      %v675 = vld [vmem:[%s2 + $0xce8] sm:$0xff]
      %v676 = vld [vmem:[%s2 + $0xcf0] sm:$0xff]
      %v677 = vld [vmem:[%s2 + $0xcf8] sm:$0xff]
      %v678 = vld [vmem:[%s2 + $0xd00] sm:$0xff]
      %v679 = vld [vmem:[%s2 + $0xd08] sm:$0xff]
      %v680 = vld [vmem:[%s2 + $0xd10] sm:$0xff]
      %v681 = vld [vmem:[%s2 + $0xd18] sm:$0xff]
      %v682 = vld [vmem:[%s2 + $0xd20] sm:$0xff]
      %v683 = vld [vmem:[%s2 + $0xd28] sm:$0xff]
      %v684 = vld [vmem:[%s2 + $0xd30] sm:$0xff]
      %v685 = vld [vmem:[%s2 + $0xd38] sm:$0xff]
      %v686 = vld [vmem:[%s2 + $0xd40] sm:$0xff]
      %v687 = vld [vmem:[%s2 + $0xd48] sm:$0xff]
      %v688 = vld [vmem:[%s2 + $0xd50] sm:$0xff]
      %v689 = vld [vmem:[%s2 + $0xd58] sm:$0xff]
      %v690 = vld [vmem:[%s2 + $0xd60] sm:$0xff]
      %v691 = vld [vmem:[%s2 + $0xd68] sm:$0xff]
      %v692 = vld [vmem:[%s2 + $0xd70] sm:$0xff]
      %v693 = vld [vmem:[%s2 + $0xd78] sm:$0xff]
      %v694 = vld [vmem:[%s2 + $0xd80] sm:$0xff]
      %v695 = vld [vmem:[%s2 + $0xd88] sm:$0xff]
      %v696 = vld [vmem:[%s2 + $0xd90] sm:$0xff]
      %v697 = vld [vmem:[%s2 + $0xd98] sm:$0xff]
      %v698 = vld [vmem:[%s2 + $0xda0] sm:$0xff]
      %v699 = vld [vmem:[%s2 + $0xda8] sm:$0xff]
      %v700 = vld [vmem:[%s2 + $0xdb0] sm:$0xff]
      %v701 = vld [vmem:[%s2 + $0xdb8] sm:$0xff]
      %v702 = vld [vmem:[%s2 + $0xdc0] sm:$0xff]
      %v703 = vld [vmem:[%s2 + $0xdc8] sm:$0xff]
      %v704 = vld [vmem:[%s2 + $0xdd0] sm:$0xff]
      %v705 = vld [vmem:[%s2 + $0xdd8] sm:$0xff]
      %v706 = vld [vmem:[%s2 + $0xde0] sm:$0xff]
      %v707 = vld [vmem:[%s2 + $0xde8] sm:$0xff]
      %v708 = vld [vmem:[%s2 + $0xdf0] sm:$0xff]
      %v709 = vld [vmem:[%s2 + $0xdf8] sm:$0xff]
      %v710 = vld [vmem:[%s2 + $0xe00] sm:$0xff]
      %v711 = vld [vmem:[%s2 + $0xe08] sm:$0xff]
      %v712 = vld [vmem:[%s2 + $0xe10] sm:$0xff]
      %v713 = vld [vmem:[%s2 + $0xe18] sm:$0xff]
      %v714 = vld [vmem:[%s2 + $0xe20] sm:$0xff]
      %v715 = vld [vmem:[%s2 + $0xe28] sm:$0xff]
      %v716 = vld [vmem:[%s2 + $0xe30] sm:$0xff]
      %v717 = vld [vmem:[%s2 + $0xe38] sm:$0xff]
      %v718 = vld [vmem:[%s2 + $0xe40] sm:$0xff]
      %v719 = vld [vmem:[%s2 + $0xe48] sm:$0xff]
      %v720 = vld [vmem:[%s2 + $0xe50] sm:$0xff]
      %v721 = vld [vmem:[%s2 + $0xe58] sm:$0xff]
      %v722 = vld [vmem:[%s2 + $0xe60] sm:$0xff]
      %v723 = vld [vmem:[%s2 + $0xe68] sm:$0xff]
      %v724 = vld [vmem:[%s2 + $0xe70] sm:$0xff]
      %v725 = vld [vmem:[%s2 + $0xe78] sm:$0xff]
      %v726 = vld [vmem:[%s2 + $0xe80] sm:$0xff]
      %v727 = vld [vmem:[%s2 + $0xe88] sm:$0xff]
      %v728 = vld [vmem:[%s2 + $0xe90] sm:$0xff]
      %v729 = vld [vmem:[%s2 + $0xe98] sm:$0xff]
      %v730 = vld [vmem:[%s2 + $0xea0] sm:$0xff]
      %v731 = vld [vmem:[%s2 + $0xea8] sm:$0xff]
      %v732 = vld [vmem:[%s2 + $0xeb0] sm:$0xff]
      %v733 = vld [vmem:[%s2 + $0xeb8] sm:$0xff]
      %v734 = vld [vmem:[%s2 + $0xec0] sm:$0xff]
      %v735 = vld [vmem:[%s2 + $0xec8] sm:$0xff]
      %v736 = vld [vmem:[%s2 + $0xed0] sm:$0xff]
      %v737 = vld [vmem:[%s2 + $0xed8] sm:$0xff]
      %v738 = vld [vmem:[%s2 + $0xee0] sm:$0xff]
      %v739 = vld [vmem:[%s2 + $0xee8] sm:$0xff]
      %v740 = vld [vmem:[%s2 + $0xef0] sm:$0xff]
      %v741 = vld [vmem:[%s2 + $0xef8] sm:$0xff]
      %v742 = vld [vmem:[%s2 + $0xf00] sm:$0xff]
      %v743 = vld [vmem:[%s2 + $0xf08] sm:$0xff]
      %v744 = vld [vmem:[%s2 + $0xf10] sm:$0xff]
      %v745 = vld [vmem:[%s2 + $0xf18] sm:$0xff]
      %v746 = vld [vmem:[%s2 + $0xf20] sm:$0xff]
      %v747 = vld [vmem:[%s2 + $0xf28] sm:$0xff]
      %v748 = vld [vmem:[%s2 + $0xf30] sm:$0xff]
      %v749 = vld [vmem:[%s2 + $0xf38] sm:$0xff]
      %v750 = vld [vmem:[%s2 + $0xf40] sm:$0xff]
      %v751 = vld [vmem:[%s2 + $0xf48] sm:$0xff]
      %v752 = vld [vmem:[%s2 + $0xf50] sm:$0xff]
      %v753 = vld [vmem:[%s2 + $0xf58] sm:$0xff]
      %v754 = vld [vmem:[%s2 + $0xf60] sm:$0xff]
      %v755 = vld [vmem:[%s2 + $0xf68] sm:$0xff]
      %v756 = vld [vmem:[%s2 + $0xf70] sm:$0xff]
      %v757 = vld [vmem:[%s2 + $0xf78] sm:$0xff]
      %v758 = vld [vmem:[%s2 + $0xf80] sm:$0xff]
      %v759 = vld [vmem:[%s2 + $0xf88] sm:$0xff]
      %v760 = vld [vmem:[%s2 + $0xf90] sm:$0xff]
      %v761 = vld [vmem:[%s2 + $0xf98] sm:$0xff]
      %v762 = vld [vmem:[%s2 + $0xfa0] sm:$0xff]
      %v763 = vld [vmem:[%s2 + $0xfa8] sm:$0xff]
      %v764 = vld [vmem:[%s2 + $0xfb0] sm:$0xff]
      %v765 = vld [vmem:[%s2 + $0xfb8] sm:$0xff]
      %v766 = vld [vmem:[%s2 + $0xfc0] sm:$0xff]
      %v767 = vld [vmem:[%s2 + $0xfc8] sm:$0xff]
      %v768 = vld [vmem:[%s2 + $0xfd0] sm:$0xff]
      %v769 = vld [vmem:[%s2 + $0xfd8] sm:$0xff]
      %v770 = vld [vmem:[%s2 + $0xfe0] sm:$0xff]
      %v771 = vld [vmem:[%s2 + $0xfe8] sm:$0xff]
      %v772 = vld [vmem:[%s2 + $0xff0] sm:$0xff]
      %v773 = vld [vmem:[%s2 + $0xff8] sm:$0xff]
      %v774 = vld [vmem:[%s2 + $0x1000] sm:$0xff]
      %v775 = vld [vmem:[%s2 + $0x1008] sm:$0xff]
      %v776 = vld [vmem:[%s2 + $0x1010] sm:$0xff]
      %v777 = vld [vmem:[%s2 + $0x1018] sm:$0xff]
      %v778 = vld [vmem:[%s2 + $0x1020] sm:$0xff]
      %v779 = vld [vmem:[%s2 + $0x1028] sm:$0xff]
      %v780 = vld [vmem:[%s2 + $0x1030] sm:$0xff]
      %v781 = vld [vmem:[%s2 + $0x1038] sm:$0xff]
      %v782 = vld [vmem:[%s2 + $0x1040] sm:$0xff]
      %v783 = vld [vmem:[%s2 + $0x1048] sm:$0xff]
      %v784 = vld [vmem:[%s2 + $0x1050] sm:$0xff]
      %v785 = vld [vmem:[%s2 + $0x1058] sm:$0xff]
      %v786 = vld [vmem:[%s2 + $0x1060] sm:$0xff]
      %v787 = vld [vmem:[%s2 + $0x1068] sm:$0xff]
      %v788 = vld [vmem:[%s2 + $0x1070] sm:$0xff]
      %v789 = vld [vmem:[%s2 + $0x1078] sm:$0xff]
      %v790 = vld [vmem:[%s2 + $0x1080] sm:$0xff]
      %v791 = vld [vmem:[%s2 + $0x1088] sm:$0xff]
      %v792 = vld [vmem:[%s2 + $0x1090] sm:$0xff]
      %v793 = vld [vmem:[%s2 + $0x1098] sm:$0xff]
      %v794 = vld [vmem:[%s2 + $0x10a0] sm:$0xff]
      %v795 = vld [vmem:[%s2 + $0x10a8] sm:$0xff]
      %v796 = vld [vmem:[%s2 + $0x10b0] sm:$0xff]
      %v797 = vld [vmem:[%s2 + $0x10b8] sm:$0xff]
      %v798 = vld [vmem:[%s2 + $0x10c0] sm:$0xff]
      %v799 = vld [vmem:[%s2 + $0x10c8] sm:$0xff]
      %v800 = vld [vmem:[%s2 + $0x10d0] sm:$0xff]
      %v801 = vld [vmem:[%s2 + $0x10d8] sm:$0xff]
      %v802 = vld [vmem:[%s2 + $0x10e0] sm:$0xff]
      %v803 = vld [vmem:[%s2 + $0x10e8] sm:$0xff]
      %v804 = vld [vmem:[%s2 + $0x10f0] sm:$0xff]
      %v805 = vld [vmem:[%s2 + $0x10f8] sm:$0xff]
      %v806 = vld [vmem:[%s2 + $0x1100] sm:$0xff]
      %v807 = vld [vmem:[%s2 + $0x1108] sm:$0xff]
      %v808 = vld [vmem:[%s2 + $0x1110] sm:$0xff]
      %v809 = vld [vmem:[%s2 + $0x1118] sm:$0xff]
      %v810 = vld [vmem:[%s2 + $0x1120] sm:$0xff]
      %v811 = vld [vmem:[%s2 + $0x1128] sm:$0xff]
      %v812 = vld [vmem:[%s2 + $0x1130] sm:$0xff]
      %v813 = vld [vmem:[%s2 + $0x1138] sm:$0xff]
      %v814 = vld [vmem:[%s2 + $0x1140] sm:$0xff]
      %v815 = vld [vmem:[%s2 + $0x1148] sm:$0xff]
      %v816 = vld [vmem:[%s2 + $0x1150] sm:$0xff]
      %v817 = vld [vmem:[%s2 + $0x1158] sm:$0xff]
      %v818 = vld [vmem:[%s2 + $0x1160] sm:$0xff]
      %v819 = vld [vmem:[%s2 + $0x1168] sm:$0xff]
      %v820 = vld [vmem:[%s2 + $0x1170] sm:$0xff]
      %v821 = vld [vmem:[%s2 + $0x1178] sm:$0xff]
      %v822 = vld [vmem:[%s2 + $0x1180] sm:$0xff]
      %v823 = vld [vmem:[%s2 + $0x1188] sm:$0xff]
      %v824 = vld [vmem:[%s2 + $0x1190] sm:$0xff]
      %v825 = vld [vmem:[%s2 + $0x1198] sm:$0xff]
      %v826 = vld [vmem:[%s2 + $0x11a0] sm:$0xff]
      %v827 = vld [vmem:[%s2 + $0x11a8] sm:$0xff]
      %v828 = vld [vmem:[%s2 + $0x11b0] sm:$0xff]
      %v829 = vld [vmem:[%s2 + $0x11b8] sm:$0xff]
      %v830 = vld [vmem:[%s2 + $0x11c0] sm:$0xff]
      %v831 = vld [vmem:[%s2 + $0x11c8] sm:$0xff]
      %v832 = vld [vmem:[%s2 + $0x11d0] sm:$0xff]
      %v833 = vld [vmem:[%s2 + $0x11d8] sm:$0xff]
      %v834 = vld [vmem:[%s2 + $0x11e0] sm:$0xff]
      %v835 = vld [vmem:[%s2 + $0x11e8] sm:$0xff]
      %v836 = vld [vmem:[%s2 + $0x11f0] sm:$0xff]
      %v837 = vld [vmem:[%s2 + $0x11f8] sm:$0xff]
      %v838 = vld [vmem:[%s2 + $0x1200] sm:$0xff]
      %v839 = vld [vmem:[%s2 + $0x1208] sm:$0xff]
      %v840 = vld [vmem:[%s2 + $0x1210] sm:$0xff]
      %v841 = vld [vmem:[%s2 + $0x1218] sm:$0xff]
      %v842 = vld [vmem:[%s2 + $0x1220] sm:$0xff]
      %v843 = vld [vmem:[%s2 + $0x1228] sm:$0xff]
      %v844 = vld [vmem:[%s2 + $0x1230] sm:$0xff]
      %v845 = vld [vmem:[%s2 + $0x1238] sm:$0xff]
      %v846 = vld [vmem:[%s2 + $0x1240] sm:$0xff]
      %v847 = vld [vmem:[%s2 + $0x1248] sm:$0xff]
      %v848 = vld [vmem:[%s2 + $0x1250] sm:$0xff]
      %v849 = vld [vmem:[%s2 + $0x1258] sm:$0xff]
      %v850 = vld [vmem:[%s2 + $0x1260] sm:$0xff]
      %v851 = vld [vmem:[%s2 + $0x1268] sm:$0xff]
      %v852 = vld [vmem:[%s2 + $0x1270] sm:$0xff]
      %v853 = vld [vmem:[%s2 + $0x1278] sm:$0xff]
      %v854 = vld [vmem:[%s2 + $0x1280] sm:$0xff]
      %v855 = vld [vmem:[%s2 + $0x1288] sm:$0xff]
      %v856 = vld [vmem:[%s2 + $0x1290] sm:$0xff]
      %v857 = vld [vmem:[%s2 + $0x1298] sm:$0xff]
      %v858 = vld [vmem:[%s2 + $0x12a0] sm:$0xff]
      %v859 = vld [vmem:[%s2 + $0x12a8] sm:$0xff]
      %v860 = vld [vmem:[%s2 + $0x12b0] sm:$0xff]
      %v861 = vld [vmem:[%s2 + $0x12b8] sm:$0xff]
      %v862 = vld [vmem:[%s2 + $0x12c0] sm:$0xff]
      %v863 = vld [vmem:[%s2 + $0x12c8] sm:$0xff]
      %v864 = vld [vmem:[%s2 + $0x12d0] sm:$0xff]
      %v865 = vld [vmem:[%s2 + $0x12d8] sm:$0xff]
      %v866 = vld [vmem:[%s2 + $0x12e0] sm:$0xff]
      %v867 = vld [vmem:[%s2 + $0x12e8] sm:$0xff]
      %v868 = vld [vmem:[%s2 + $0x12f0] sm:$0xff]
      %v869 = vld [vmem:[%s2 + $0x12f8] sm:$0xff]
      %v870 = vld [vmem:[%s2 + $0x1300] sm:$0xff]
      %v871 = vld [vmem:[%s2 + $0x1308] sm:$0xff]
      %v872 = vld [vmem:[%s2 + $0x1310] sm:$0xff]
      %v873 = vld [vmem:[%s2 + $0x1318] sm:$0xff]
      %v874 = vld [vmem:[%s2 + $0x1320] sm:$0xff]
      %v875 = vld [vmem:[%s2 + $0x1328] sm:$0xff]
      %v876 = vld [vmem:[%s2 + $0x1330] sm:$0xff]
      %v877 = vld [vmem:[%s2 + $0x1338] sm:$0xff]
      %v878 = vld [vmem:[%s2 + $0x1340] sm:$0xff]
      %v879 = vld [vmem:[%s2 + $0x1348] sm:$0xff]
      %v880 = vld [vmem:[%s2 + $0x1350] sm:$0xff]
      %v881 = vld [vmem:[%s2 + $0x1358] sm:$0xff]
      %v882 = vld [vmem:[%s2 + $0x1360] sm:$0xff]
      %v883 = vld [vmem:[%s2 + $0x1368] sm:$0xff]
      %v884 = vld [vmem:[%s2 + $0x1370] sm:$0xff]
      %v885 = vld [vmem:[%s2 + $0x1378] sm:$0xff]
      %v886 = vld [vmem:[%s2 + $0x1380] sm:$0xff]
      %v887 = vld [vmem:[%s2 + $0x1388] sm:$0xff]
      %v888 = vld [vmem:[%s2 + $0x1390] sm:$0xff]
      %v889 = vld [vmem:[%s2 + $0x1398] sm:$0xff]
      %v890 = vld [vmem:[%s2 + $0x13a0] sm:$0xff]
      %v891 = vld [vmem:[%s2 + $0x13a8] sm:$0xff]
      %v892 = vld [vmem:[%s2 + $0x13b0] sm:$0xff]
      %v893 = vld [vmem:[%s2 + $0x13b8] sm:$0xff]
      %v894 = vld [vmem:[%s2 + $0x13c0] sm:$0xff]
      %v895 = vld [vmem:[%s2 + $0x13c8] sm:$0xff]
      %v896 = vld [vmem:[%s2 + $0x13d0] sm:$0xff]
      %v897 = vld [vmem:[%s2 + $0x13d8] sm:$0xff]
      %v898 = vld [vmem:[%s2 + $0x13e0] sm:$0xff]
      %v899 = vld [vmem:[%s2 + $0x13e8] sm:$0xff]
      %v900 = vld [vmem:[%s2 + $0x13f0] sm:$0xff]
      %v901 = vld [vmem:[%s2 + $0x13f8] sm:$0xff]
      %v902 = vld [vmem:[%s2 + $0x1400] sm:$0xff]
      %v903 = vld [vmem:[%s2 + $0x1408] sm:$0xff]
      %v904 = vld [vmem:[%s2 + $0x1410] sm:$0xff]
      %v905 = vld [vmem:[%s2 + $0x1418] sm:$0xff]
      %v906 = vld [vmem:[%s2 + $0x1420] sm:$0xff]
      %v907 = vld [vmem:[%s2 + $0x1428] sm:$0xff]
      %v908 = vld [vmem:[%s2 + $0x1430] sm:$0xff]
      %v909 = vld [vmem:[%s2 + $0x1438] sm:$0xff]
      %v910 = vld [vmem:[%s2 + $0x1440] sm:$0xff]
      %v911 = vld [vmem:[%s2 + $0x1448] sm:$0xff]
      %v912 = vld [vmem:[%s2 + $0x1450] sm:$0xff]
      %v913 = vld [vmem:[%s2 + $0x1458] sm:$0xff]
      %v914 = vld [vmem:[%s2 + $0x1460] sm:$0xff]
      %v915 = vld [vmem:[%s2 + $0x1468] sm:$0xff]
      %v916 = vld [vmem:[%s2 + $0x1470] sm:$0xff]
      %v917 = vld [vmem:[%s2 + $0x1478] sm:$0xff]
      %v918 = vld [vmem:[%s2 + $0x1480] sm:$0xff]
      %v919 = vld [vmem:[%s2 + $0x1488] sm:$0xff]
      %v920 = vld [vmem:[%s2 + $0x1490] sm:$0xff]
      %v921 = vld [vmem:[%s2 + $0x1498] sm:$0xff]
      %v922 = vld [vmem:[%s2 + $0x14a0] sm:$0xff]
      %v923 = vld [vmem:[%s2 + $0x14a8] sm:$0xff]
      %v924 = vld [vmem:[%s2 + $0x14b0] sm:$0xff]
      %v925 = vld [vmem:[%s2 + $0x14b8] sm:$0xff]
      %v926 = vld [vmem:[%s2 + $0x14c0] sm:$0xff]
      %v927 = vld [vmem:[%s2 + $0x14c8] sm:$0xff]
      %v928 = vld [vmem:[%s2 + $0x14d0] sm:$0xff]
      %v929 = vld [vmem:[%s2 + $0x14d8] sm:$0xff]
      %v930 = vld [vmem:[%s2 + $0x14e0] sm:$0xff]
      %v931 = vld [vmem:[%s2 + $0x14e8] sm:$0xff]
      %v932 = vld [vmem:[%s2 + $0x14f0] sm:$0xff]
      %v933 = vld [vmem:[%s2 + $0x14f8] sm:$0xff]
      %v934 = vld [vmem:[%s2 + $0x1500] sm:$0xff]
      %v935 = vld [vmem:[%s2 + $0x1508] sm:$0xff]
      %v936 = vld [vmem:[%s2 + $0x1510] sm:$0xff]
      %v937 = vld [vmem:[%s2 + $0x1518] sm:$0xff]
      %v938 = vld [vmem:[%s2 + $0x1520] sm:$0xff]
      %v939 = vld [vmem:[%s2 + $0x1528] sm:$0xff]
      %v940 = vld [vmem:[%s2 + $0x1530] sm:$0xff]
      %v941 = vld [vmem:[%s2 + $0x1538] sm:$0xff]
      %v942 = vld [vmem:[%s2 + $0x1540] sm:$0xff]
      %v943 = vld [vmem:[%s2 + $0x1548] sm:$0xff]
      %v944 = vld [vmem:[%s2 + $0x1550] sm:$0xff]
      %v945 = vld [vmem:[%s2 + $0x1558] sm:$0xff]
      %v946 = vld [vmem:[%s2 + $0x1560] sm:$0xff]
      %v947 = vld [vmem:[%s2 + $0x1568] sm:$0xff]
      %v948 = vld [vmem:[%s2 + $0x1570] sm:$0xff]
      %v949 = vld [vmem:[%s2 + $0x1578] sm:$0xff]
      %v950 = vld [vmem:[%s2 + $0x1580] sm:$0xff]
      %v951 = vld [vmem:[%s2 + $0x1588] sm:$0xff]
      %v952 = vld [vmem:[%s2 + $0x1590] sm:$0xff]
      %v953 = vld [vmem:[%s2 + $0x1598] sm:$0xff]
      %v954 = vld [vmem:[%s2 + $0x15a0] sm:$0xff]
      %v955 = vld [vmem:[%s2 + $0x15a8] sm:$0xff]
      %v956 = vld [vmem:[%s2 + $0x15b0] sm:$0xff]
      %v957 = vld [vmem:[%s2 + $0x15b8] sm:$0xff]
      %v958 = vld [vmem:[%s2 + $0x15c0] sm:$0xff]
      %v959 = vld [vmem:[%s2 + $0x15c8] sm:$0xff]
      %v960 = vld [vmem:[%s2 + $0x15d0] sm:$0xff]
      %v961 = vld [vmem:[%s2 + $0x15d8] sm:$0xff]
      %v962 = vld [vmem:[%s2 + $0x15e0] sm:$0xff]
      %v963 = vld [vmem:[%s2 + $0x15e8] sm:$0xff]
      %v964 = vld [vmem:[%s2 + $0x15f0] sm:$0xff]
      %v965 = vld [vmem:[%s2 + $0x15f8] sm:$0xff]
      %v966 = vld [vmem:[%s2 + $0x1600] sm:$0xff]
      %v967 = vld [vmem:[%s2 + $0x1608] sm:$0xff]
      %v968 = vld [vmem:[%s2 + $0x1610] sm:$0xff]
      %v969 = vld [vmem:[%s2 + $0x1618] sm:$0xff]
      %v970 = vld [vmem:[%s2 + $0x1620] sm:$0xff]
      %v971 = vld [vmem:[%s2 + $0x1628] sm:$0xff]
      %v972 = vld [vmem:[%s2 + $0x1630] sm:$0xff]
      %v973 = vld [vmem:[%s2 + $0x1638] sm:$0xff]
      %v974 = vld [vmem:[%s2 + $0x1640] sm:$0xff]
      %v975 = vld [vmem:[%s2 + $0x1648] sm:$0xff]
      %v976 = vld [vmem:[%s2 + $0x1650] sm:$0xff]
      %v977 = vld [vmem:[%s2 + $0x1658] sm:$0xff]
      %v978 = vld [vmem:[%s2 + $0x1660] sm:$0xff]
      %v979 = vld [vmem:[%s2 + $0x1668] sm:$0xff]
      %v980 = vld [vmem:[%s2 + $0x1670] sm:$0xff]
      %v981 = vld [vmem:[%s2 + $0x1678] sm:$0xff]
      %v982 = vld [vmem:[%s2 + $0x1680] sm:$0xff]
      %v983 = vld [vmem:[%s2 + $0x1688] sm:$0xff]
      %v984 = vld [vmem:[%s2 + $0x1690] sm:$0xff]
      %v985 = vld [vmem:[%s2 + $0x1698] sm:$0xff]
      %v986 = vld [vmem:[%s2 + $0x16a0] sm:$0xff]
      %v987 = vld [vmem:[%s2 + $0x16a8] sm:$0xff]
      %v988 = vld [vmem:[%s2 + $0x16b0] sm:$0xff]
      %v989 = vld [vmem:[%s2 + $0x16b8] sm:$0xff]
      %v990 = vld [vmem:[%s2 + $0x16c0] sm:$0xff]
      %v991 = vld [vmem:[%s2 + $0x16c8] sm:$0xff]
      %v992 = vld [vmem:[%s2 + $0x16d0] sm:$0xff]
      %v993 = vld [vmem:[%s2 + $0x16d8] sm:$0xff]
      %v994 = vld [vmem:[%s2 + $0x16e0] sm:$0xff]
      %v995 = vld [vmem:[%s2 + $0x16e8] sm:$0xff]
      %v996 = vld [vmem:[%s2 + $0x16f0] sm:$0xff]
      %v997 = vld [vmem:[%s2 + $0x16f8] sm:$0xff]
      %v998 = vld [vmem:[%s2 + $0x1700] sm:$0xff]
      %v999 = vld [vmem:[%s2 + $0x1708] sm:$0xff]
      %v1000 = vld [vmem:[%s2 + $0x1710] sm:$0xff]
      %v1001 = vld [vmem:[%s2 + $0x1718] sm:$0xff]
      %v1002 = vld [vmem:[%s2 + $0x1720] sm:$0xff]
      %v1003 = vld [vmem:[%s2 + $0x1728] sm:$0xff]
      %v1004 = vld [vmem:[%s2 + $0x1730] sm:$0xff]
      %v1005 = vld [vmem:[%s2 + $0x1738] sm:$0xff]
      %v1006 = vld [vmem:[%s2 + $0x1740] sm:$0xff]
      %v1007 = vld [vmem:[%s2 + $0x1748] sm:$0xff]
      %v1008 = vld [vmem:[%s2 + $0x1750] sm:$0xff]
      %v1009 = vld [vmem:[%s2 + $0x1758] sm:$0xff]
      %v1010 = vld [vmem:[%s2 + $0x1760] sm:$0xff]
      %v1011 = vld [vmem:[%s2 + $0x1768] sm:$0xff]
      %v1012 = vld [vmem:[%s2 + $0x1770] sm:$0xff]
      %v1013 = vld [vmem:[%s2 + $0x1778] sm:$0xff]
      %v1014 = vld [vmem:[%s2 + $0x1780] sm:$0xff]
      %v1015 = vld [vmem:[%s2 + $0x1788] sm:$0xff]
      %v1016 = vld [vmem:[%s2 + $0x1790] sm:$0xff]
      %v1017 = vld [vmem:[%s2 + $0x1798] sm:$0xff]
      %v1018 = vld [vmem:[%s2 + $0x17a0] sm:$0xff]
      %v1019 = vld [vmem:[%s2 + $0x17a8] sm:$0xff]
      %v1020 = vld [vmem:[%s2 + $0x17b0] sm:$0xff]
      %v1021 = vld [vmem:[%s2 + $0x17b8] sm:$0xff]
      %v1022 = vld [vmem:[%s2 + $0x17c0] sm:$0xff]
      %v1023 = vld [vmem:[%s2 + $0x17c8] sm:$0xff]
      %v1024 = vld [vmem:[%s2 + $0x17d0] sm:$0xff]
      %v1025 = vld [vmem:[%s2 + $0x17d8] sm:$0xff]
      %v1026 = vld [vmem:[%s2 + $0x17e0] sm:$0xff]
      %v1027 = vld [vmem:[%s2 + $0x17e8] sm:$0xff]
      %v1028 = vld [vmem:[%s2 + $0x17f0] sm:$0xff]
      %v1029 = vld [vmem:[%s2 + $0x17f8] sm:$0xff]
      %v1030 = vld [vmem:[%s2 + $0x1800] sm:$0xff]
      %v1031 = vld [vmem:[%s2 + $0x1808] sm:$0xff]
      %v1032 = vld [vmem:[%s2 + $0x1810] sm:$0xff]
      %v1033 = vld [vmem:[%s2 + $0x1818] sm:$0xff]
      %v1034 = vld [vmem:[%s2 + $0x1820] sm:$0xff]
      %v1035 = vld [vmem:[%s2 + $0x1828] sm:$0xff]
      %v1036 = vld [vmem:[%s2 + $0x1830] sm:$0xff]
      %v1037 = vld [vmem:[%s2 + $0x1838] sm:$0xff]
      %v1038 = vld [vmem:[%s2 + $0x1840] sm:$0xff]
      %v1039 = vld [vmem:[%s2 + $0x1848] sm:$0xff]
      %v1040 = vld [vmem:[%s2 + $0x1850] sm:$0xff]
      %v1041 = vld [vmem:[%s2 + $0x1858] sm:$0xff]
      %v1042 = vld [vmem:[%s2 + $0x1860] sm:$0xff]
      %v1043 = vld [vmem:[%s2 + $0x1868] sm:$0xff]
      %v1044 = vld [vmem:[%s2 + $0x1870] sm:$0xff]
      %v1045 = vld [vmem:[%s2 + $0x1878] sm:$0xff]
      %v1046 = vld [vmem:[%s2 + $0x1880] sm:$0xff]
      %v1047 = vld [vmem:[%s2 + $0x1888] sm:$0xff]
      %v1048 = vld [vmem:[%s2 + $0x1890] sm:$0xff]
      %v1049 = vld [vmem:[%s2 + $0x1898] sm:$0xff]
      %v1050 = vld [vmem:[%s2 + $0x18a0] sm:$0xff]
      %v1051 = vld [vmem:[%s2 + $0x18a8] sm:$0xff]
      %v1052 = vld [vmem:[%s2 + $0x18b0] sm:$0xff]
      %v1053 = vld [vmem:[%s2 + $0x18b8] sm:$0xff]
      %v1054 = vld [vmem:[%s2 + $0x18c0] sm:$0xff]
      %v1055 = vld [vmem:[%s2 + $0x18c8] sm:$0xff]
      %v1056 = vld [vmem:[%s2 + $0x18d0] sm:$0xff]
      %v1057 = vld [vmem:[%s2 + $0x18d8] sm:$0xff]
      %v1058 = vld [vmem:[%s2 + $0x18e0] sm:$0xff]
      %v1059 = vld [vmem:[%s2 + $0x18e8] sm:$0xff]
      %v1060 = vld [vmem:[%s2 + $0x18f0] sm:$0xff]
      %v1061 = vld [vmem:[%s2 + $0x18f8] sm:$0xff]
      %v1062 = vld [vmem:[%s2 + $0x1900] sm:$0xff]
      %v1063 = vld [vmem:[%s2 + $0x1908] sm:$0xff]
      %v1064 = vld [vmem:[%s2 + $0x1910] sm:$0xff]
      %v1065 = vld [vmem:[%s2 + $0x1918] sm:$0xff]
      %v1066 = vld [vmem:[%s2 + $0x1920] sm:$0xff]
      %v1067 = vld [vmem:[%s2 + $0x1928] sm:$0xff]
      %v1068 = vld [vmem:[%s2 + $0x1930] sm:$0xff]
      %v1069 = vld [vmem:[%s2 + $0x1938] sm:$0xff]
      %v1070 = vld [vmem:[%s2 + $0x1940] sm:$0xff]
      %v1071 = vld [vmem:[%s2 + $0x1948] sm:$0xff]
      %v1072 = vld [vmem:[%s2 + $0x1950] sm:$0xff]
      %v1073 = vld [vmem:[%s2 + $0x1958] sm:$0xff]
      %v1074 = vld [vmem:[%s2 + $0x1960] sm:$0xff]
      %v1075 = vld [vmem:[%s2 + $0x1968] sm:$0xff]
      %v1076 = vld [vmem:[%s2 + $0x1970] sm:$0xff]
      %v1077 = vld [vmem:[%s2 + $0x1978] sm:$0xff]
      %v1078 = vld [vmem:[%s2 + $0x1980] sm:$0xff]
      %v1079 = vld [vmem:[%s2 + $0x1988] sm:$0xff]
      %v1080 = vld [vmem:[%s2 + $0x1990] sm:$0xff]
      %v1081 = vld [vmem:[%s2 + $0x1998] sm:$0xff]
      %v1082 = vld [vmem:[%s2 + $0x19a0] sm:$0xff]
      %v1083 = vld [vmem:[%s2 + $0x19a8] sm:$0xff]
      %v1084 = vld [vmem:[%s2 + $0x19b0] sm:$0xff]
      %v1085 = vld [vmem:[%s2 + $0x19b8] sm:$0xff]
      %v1086 = vld [vmem:[%s2 + $0x19c0] sm:$0xff]
      %v1087 = vld [vmem:[%s2 + $0x19c8] sm:$0xff]
      %v1088 = vld [vmem:[%s2 + $0x19d0] sm:$0xff]
      %v1089 = vld [vmem:[%s2 + $0x19d8] sm:$0xff]
      %v1090 = vld [vmem:[%s2 + $0x19e0] sm:$0xff]
      %v1091 = vld [vmem:[%s2 + $0x19e8] sm:$0xff]
      %v1092 = vld [vmem:[%s2 + $0x19f0] sm:$0xff]
      %v1093 = vld [vmem:[%s2 + $0x19f8] sm:$0xff]
      %v1094 = vld [vmem:[%s2 + $0x1a00] sm:$0xff]
      %v1095 = vld [vmem:[%s2 + $0x1a08] sm:$0xff]
      %v1096 = vld [vmem:[%s2 + $0x1a10] sm:$0xff]
      %v1097 = vld [vmem:[%s2 + $0x1a18] sm:$0xff]
      %v1098 = vld [vmem:[%s2 + $0x1a20] sm:$0xff]
      %v1099 = vld [vmem:[%s2 + $0x1a28] sm:$0xff]
      %v1100 = vld [vmem:[%s2 + $0x1a30] sm:$0xff]
      %v1101 = vld [vmem:[%s2 + $0x1a38] sm:$0xff]
      %v1102 = vld [vmem:[%s2 + $0x1a40] sm:$0xff]
      %v1103 = vld [vmem:[%s2 + $0x1a48] sm:$0xff]
      %v1104 = vld [vmem:[%s2 + $0x1a50] sm:$0xff]
      %v1105 = vld [vmem:[%s2 + $0x1a58] sm:$0xff]
      %v1106 = vld [vmem:[%s2 + $0x1a60] sm:$0xff]
      %v1107 = vld [vmem:[%s2 + $0x1a68] sm:$0xff]
      %v1108 = vld [vmem:[%s2 + $0x1a70] sm:$0xff]
      %v1109 = vld [vmem:[%s2 + $0x1a78] sm:$0xff]
      %v1110 = vld [vmem:[%s2 + $0x1a80] sm:$0xff]
      %v1111 = vld [vmem:[%s2 + $0x1a88] sm:$0xff]
      %v1112 = vld [vmem:[%s2 + $0x1a90] sm:$0xff]
      %v1113 = vld [vmem:[%s2 + $0x1a98] sm:$0xff]
      %v1114 = vld [vmem:[%s2 + $0x1aa0] sm:$0xff]
      %v1115 = vld [vmem:[%s2 + $0x1aa8] sm:$0xff]
      %v1116 = vld [vmem:[%s2 + $0x1ab0] sm:$0xff]
      %v1117 = vld [vmem:[%s2 + $0x1ab8] sm:$0xff]
      %v1118 = vld [vmem:[%s2 + $0x1ac0] sm:$0xff]
      %v1119 = vld [vmem:[%s2 + $0x1ac8] sm:$0xff]
      %v1120 = vld [vmem:[%s2 + $0x1ad0] sm:$0xff]
      %v1121 = vld [vmem:[%s2 + $0x1ad8] sm:$0xff]
      %v1122 = vld [vmem:[%s2 + $0x1ae0] sm:$0xff]
      %v1123 = vld [vmem:[%s2 + $0x1ae8] sm:$0xff]
      %v1124 = vld [vmem:[%s2 + $0x1af0] sm:$0xff]
      %v1125 = vld [vmem:[%s2 + $0x1af8] sm:$0xff]
      %v1126 = vld [vmem:[%s2 + $0x1b00] sm:$0xff]
      %v1127 = vld [vmem:[%s2 + $0x1b08] sm:$0xff]
      %v1128 = vld [vmem:[%s2 + $0x1b10] sm:$0xff]
      %v1129 = vld [vmem:[%s2 + $0x1b18] sm:$0xff]
      %v1130 = vld [vmem:[%s2 + $0x1b20] sm:$0xff]
      %v1131 = vld [vmem:[%s2 + $0x1b28] sm:$0xff]
      %v1132 = vld [vmem:[%s2 + $0x1b30] sm:$0xff]
      %v1133 = vld [vmem:[%s2 + $0x1b38] sm:$0xff]
      %v1134 = vld [vmem:[%s2 + $0x1b40] sm:$0xff]
      %v1135 = vld [vmem:[%s2 + $0x1b48] sm:$0xff]
      %v1136 = vld [vmem:[%s2 + $0x1b50] sm:$0xff]
      %v1137 = vld [vmem:[%s2 + $0x1b58] sm:$0xff]
      %v1138 = vld [vmem:[%s2 + $0x1b60] sm:$0xff]
      %v1139 = vld [vmem:[%s2 + $0x1b68] sm:$0xff]
      %v1140 = vld [vmem:[%s2 + $0x1b70] sm:$0xff]
      %v1141 = vld [vmem:[%s2 + $0x1b78] sm:$0xff]
      %v1142 = vld [vmem:[%s2 + $0x1b80] sm:$0xff]
      %v1143 = vld [vmem:[%s2 + $0x1b88] sm:$0xff]
      %v1144 = vld [vmem:[%s2 + $0x1b90] sm:$0xff]
      %v1145 = vld [vmem:[%s2 + $0x1b98] sm:$0xff]
      %v1146 = vld [vmem:[%s2 + $0x1ba0] sm:$0xff]
      %v1147 = vld [vmem:[%s2 + $0x1ba8] sm:$0xff]
      %v1148 = vld [vmem:[%s2 + $0x1bb0] sm:$0xff]
      %v1149 = vld [vmem:[%s2 + $0x1bb8] sm:$0xff]
      %v1150 = vld [vmem:[%s2 + $0x1bc0] sm:$0xff]
      %v1151 = vld [vmem:[%s2 + $0x1bc8] sm:$0xff]
      %v1152 = vld [vmem:[%s2 + $0x1bd0] sm:$0xff]
      %v1153 = vld [vmem:[%s2 + $0x1bd8] sm:$0xff]
      %v1154 = vld [vmem:[%s2 + $0x1be0] sm:$0xff]
      %v1155 = vld [vmem:[%s2 + $0x1be8] sm:$0xff]
      %v1156 = vld [vmem:[%s2 + $0x1bf0] sm:$0xff]
      %v1157 = vld [vmem:[%s2 + $0x1bf8] sm:$0xff]
      %v1158 = vld [vmem:[%s2 + $0x1c00] sm:$0xff]
      %v1159 = vld [vmem:[%s2 + $0x1c08] sm:$0xff]
      %v1160 = vld [vmem:[%s2 + $0x1c10] sm:$0xff]
      %v1161 = vld [vmem:[%s2 + $0x1c18] sm:$0xff]
      %v1162 = vld [vmem:[%s2 + $0x1c20] sm:$0xff]
      %v1163 = vld [vmem:[%s2 + $0x1c28] sm:$0xff]
      %v1164 = vld [vmem:[%s2 + $0x1c30] sm:$0xff]
      %v1165 = vld [vmem:[%s2 + $0x1c38] sm:$0xff]
      %v1166 = vld [vmem:[%s2 + $0x1c40] sm:$0xff]
      %v1167 = vld [vmem:[%s2 + $0x1c48] sm:$0xff]
      %v1168 = vld [vmem:[%s2 + $0x1c50] sm:$0xff]
      %v1169 = vld [vmem:[%s2 + $0x1c58] sm:$0xff]
      %v1170 = vld [vmem:[%s2 + $0x1c60] sm:$0xff]
      %v1171 = vld [vmem:[%s2 + $0x1c68] sm:$0xff]
      %v1172 = vld [vmem:[%s2 + $0x1c70] sm:$0xff]
      %v1173 = vld [vmem:[%s2 + $0x1c78] sm:$0xff]
      %v1174 = vld [vmem:[%s2 + $0x1c80] sm:$0xff]
      %v1175 = vld [vmem:[%s2 + $0x1c88] sm:$0xff]
      %v1176 = vld [vmem:[%s2 + $0x1c90] sm:$0xff]
      %v1177 = vld [vmem:[%s2 + $0x1c98] sm:$0xff]
      %v1178 = vld [vmem:[%s2 + $0x1ca0] sm:$0xff]
      %v1179 = vld [vmem:[%s2 + $0x1ca8] sm:$0xff]
      %v1180 = vld [vmem:[%s2 + $0x1cb0] sm:$0xff]
      %v1181 = vld [vmem:[%s2 + $0x1cb8] sm:$0xff]
      %v1182 = vld [vmem:[%s2 + $0x1cc0] sm:$0xff]
      %v1183 = vld [vmem:[%s2 + $0x1cc8] sm:$0xff]
      %v1184 = vld [vmem:[%s2 + $0x1cd0] sm:$0xff]
      %v1185 = vld [vmem:[%s2 + $0x1cd8] sm:$0xff]
      %v1186 = vld [vmem:[%s2 + $0x1ce0] sm:$0xff]
      %v1187 = vld [vmem:[%s2 + $0x1ce8] sm:$0xff]
      %v1188 = vld [vmem:[%s2 + $0x1cf0] sm:$0xff]
      %v1189 = vld [vmem:[%s2 + $0x1cf8] sm:$0xff]
      %v1190 = vld [vmem:[%s2 + $0x1d00] sm:$0xff]
      %v1191 = vld [vmem:[%s2 + $0x1d08] sm:$0xff]
      %v1192 = vld [vmem:[%s2 + $0x1d10] sm:$0xff]
      %v1193 = vld [vmem:[%s2 + $0x1d18] sm:$0xff]
      %v1194 = vld [vmem:[%s2 + $0x1d20] sm:$0xff]
      %v1195 = vld [vmem:[%s2 + $0x1d28] sm:$0xff]
      %v1196 = vld [vmem:[%s2 + $0x1d30] sm:$0xff]
      %v1197 = vld [vmem:[%s2 + $0x1d38] sm:$0xff]
      %v1198 = vld [vmem:[%s2 + $0x1d40] sm:$0xff]
      %v1199 = vld [vmem:[%s2 + $0x1d48] sm:$0xff]
      %v1200 = vld [vmem:[%s2 + $0x1d50] sm:$0xff]
      %v1201 = vld [vmem:[%s2 + $0x1d58] sm:$0xff]
      %v1202 = vld [vmem:[%s2 + $0x1d60] sm:$0xff]
      %v1203 = vld [vmem:[%s2 + $0x1d68] sm:$0xff]
      %v1204 = vld [vmem:[%s2 + $0x1d70] sm:$0xff]
      %v1205 = vld [vmem:[%s2 + $0x1d78] sm:$0xff]
      %v1206 = vld [vmem:[%s2 + $0x1d80] sm:$0xff]
      %v1207 = vld [vmem:[%s2 + $0x1d88] sm:$0xff]
      %v1208 = vld [vmem:[%s2 + $0x1d90] sm:$0xff]
      %v1209 = vld [vmem:[%s2 + $0x1d98] sm:$0xff]
      %v1210 = vld [vmem:[%s2 + $0x1da0] sm:$0xff]
      %v1211 = vld [vmem:[%s2 + $0x1da8] sm:$0xff]
      %v1212 = vld [vmem:[%s2 + $0x1db0] sm:$0xff]
      %v1213 = vld [vmem:[%s2 + $0x1db8] sm:$0xff]
      %v1214 = vld [vmem:[%s2 + $0x1dc0] sm:$0xff]
      %v1215 = vld [vmem:[%s2 + $0x1dc8] sm:$0xff]
      %v1216 = vld [vmem:[%s2 + $0x1dd0] sm:$0xff]
      %v1217 = vld [vmem:[%s2 + $0x1dd8] sm:$0xff]
      %v1218 = vld [vmem:[%s2 + $0x1de0] sm:$0xff]
      %v1219 = vld [vmem:[%s2 + $0x1de8] sm:$0xff]
      %v1220 = vld [vmem:[%s2 + $0x1df0] sm:$0xff]
      %v1221 = vld [vmem:[%s2 + $0x1df8] sm:$0xff]
      %v1222 = vld [vmem:[%s249] sm:$0xff]
      %v1223 = vld [vmem:[%s249 + $0x8] sm:$0xff]
      %v1224 = vld [vmem:[%s249 + $0x10] sm:$0xff]
      %v1225 = vld [vmem:[%s249 + $0x18] sm:$0xff]
      %v1226 = vld [vmem:[%s3] sm:$0xff]
      %v1227 = vld [vmem:[%s3 + $0x8] sm:$0xff]
      %v1228 = vld [vmem:[%s3 + $0x10] sm:$0xff]
      %v1229 = vld [vmem:[%s3 + $0x18] sm:$0xff]
      %v1230 = vld [vmem:[%s3 + $0x20] sm:$0xff]
      %v1231 = vld [vmem:[%s3 + $0x28] sm:$0xff]
      %v1232 = vld [vmem:[%s3 + $0x30] sm:$0xff]
      %v1233 = vld [vmem:[%s3 + $0x38] sm:$0xff]
      %v1234 = vld [vmem:[%s3 + $0x40] sm:$0xff]
      %v1235 = vld [vmem:[%s3 + $0x48] sm:$0xff]
      %v1236 = vld [vmem:[%s3 + $0x50] sm:$0xff]
      %v1237 = vld [vmem:[%s3 + $0x58] sm:$0xff]
      %v1238 = vld [vmem:[%s3 + $0x60] sm:$0xff]
      %v1239 = vld [vmem:[%s3 + $0x68] sm:$0xff]
      %v1240 = vld [vmem:[%s3 + $0x70] sm:$0xff]
      %v1241 = vld [vmem:[%s3 + $0x78] sm:$0xff]
      %v1242 = vld [vmem:[%s3 + $0x80] sm:$0xff]
      %v1243 = vld [vmem:[%s3 + $0x88] sm:$0xff]
      %v1244 = vld [vmem:[%s3 + $0x90] sm:$0xff]
      %v1245 = vld [vmem:[%s3 + $0x98] sm:$0xff]
      %v1246 = vld [vmem:[%s3 + $0xa0] sm:$0xff]
      %v1247 = vld [vmem:[%s3 + $0xa8] sm:$0xff]
      %v1248 = vld [vmem:[%s3 + $0xb0] sm:$0xff]
      %v1249 = vld [vmem:[%s3 + $0xb8] sm:$0xff]
      %v1250 = vld [vmem:[%s3 + $0xc0] sm:$0xff]
      %v1251 = vld [vmem:[%s3 + $0xc8] sm:$0xff]
      %v1252 = vld [vmem:[%s3 + $0xd0] sm:$0xff]
      %v1253 = vld [vmem:[%s3 + $0xd8] sm:$0xff]
      %v1254 = vld [vmem:[%s3 + $0xe0] sm:$0xff]
      %v1255 = vld [vmem:[%s3 + $0xe8] sm:$0xff]
      %v1256 = vld [vmem:[%s3 + $0xf0] sm:$0xff]
      %v1257 = vld [vmem:[%s3 + $0xf8] sm:$0xff]
      %v1258 = vld [vmem:[%s3 + $0x100] sm:$0xff]
      %v1259 = vld [vmem:[%s3 + $0x108] sm:$0xff]
      %v1260 = vld [vmem:[%s3 + $0x110] sm:$0xff]
      %v1261 = vld [vmem:[%s3 + $0x118] sm:$0xff]
      %v1262 = vld [vmem:[%s3 + $0x120] sm:$0xff]
      %v1263 = vld [vmem:[%s3 + $0x128] sm:$0xff]
      %v1264 = vld [vmem:[%s3 + $0x130] sm:$0xff]
      %v1265 = vld [vmem:[%s3 + $0x138] sm:$0xff]
      %v1266 = vld [vmem:[%s3 + $0x140] sm:$0xff]
      %v1267 = vld [vmem:[%s3 + $0x148] sm:$0xff]
      %v1268 = vld [vmem:[%s3 + $0x150] sm:$0xff]
      %v1269 = vld [vmem:[%s3 + $0x158] sm:$0xff]
      %v1270 = vld [vmem:[%s3 + $0x160] sm:$0xff]
      %v1271 = vld [vmem:[%s3 + $0x168] sm:$0xff]
      %v1272 = vld [vmem:[%s3 + $0x170] sm:$0xff]
      %v1273 = vld [vmem:[%s3 + $0x178] sm:$0xff]
      %v1274 = vld [vmem:[%s3 + $0x180] sm:$0xff]
      %v1275 = vld [vmem:[%s3 + $0x188] sm:$0xff]
      %v1276 = vld [vmem:[%s3 + $0x190] sm:$0xff]
      %v1277 = vld [vmem:[%s3 + $0x198] sm:$0xff]
      %v1278 = vld [vmem:[%s3 + $0x1a0] sm:$0xff]
      %v1279 = vld [vmem:[%s3 + $0x1a8] sm:$0xff]
      %v1280 = vld [vmem:[%s3 + $0x1b0] sm:$0xff]
      %v1281 = vld [vmem:[%s3 + $0x1b8] sm:$0xff]
      %v1282 = vld [vmem:[%s3 + $0x1c0] sm:$0xff]
      %v1283 = vld [vmem:[%s3 + $0x1c8] sm:$0xff]
      %v1284 = vld [vmem:[%s3 + $0x1d0] sm:$0xff]
      %v1285 = vld [vmem:[%s3 + $0x1d8] sm:$0xff]
      %v1286 = vld [vmem:[%s3 + $0x1e0] sm:$0xff]
      %v1287 = vld [vmem:[%s3 + $0x1e8] sm:$0xff]
      %v1288 = vld [vmem:[%s3 + $0x1f0] sm:$0xff]
      %v1289 = vld [vmem:[%s3 + $0x1f8] sm:$0xff]
      %v1290 = vld [vmem:[%s3 + $0x200] sm:$0xff]
      %v1291 = vld [vmem:[%s3 + $0x208] sm:$0xff]
      %v1292 = vld [vmem:[%s3 + $0x210] sm:$0xff]
      %v1293 = vld [vmem:[%s3 + $0x218] sm:$0xff]
      %v1294 = vld [vmem:[%s3 + $0x220] sm:$0xff]
      %v1295 = vld [vmem:[%s3 + $0x228] sm:$0xff]
      %v1296 = vld [vmem:[%s3 + $0x230] sm:$0xff]
      %v1297 = vld [vmem:[%s3 + $0x238] sm:$0xff]
      %v1298 = vld [vmem:[%s3 + $0x240] sm:$0xff]
      %v1299 = vld [vmem:[%s3 + $0x248] sm:$0xff]
      %v1300 = vld [vmem:[%s3 + $0x250] sm:$0xff]
      %v1301 = vld [vmem:[%s3 + $0x258] sm:$0xff]
      %v1302 = vld [vmem:[%s3 + $0x260] sm:$0xff]
      %v1303 = vld [vmem:[%s3 + $0x268] sm:$0xff]
      %v1304 = vld [vmem:[%s3 + $0x270] sm:$0xff]
      %v1305 = vld [vmem:[%s3 + $0x278] sm:$0xff]
      %v1306 = vld [vmem:[%s3 + $0x280] sm:$0xff]
      %v1307 = vld [vmem:[%s3 + $0x288] sm:$0xff]
      %v1308 = vld [vmem:[%s3 + $0x290] sm:$0xff]
      %v1309 = vld [vmem:[%s3 + $0x298] sm:$0xff]
      %v1310 = vld [vmem:[%s3 + $0x2a0] sm:$0xff]
      %v1311 = vld [vmem:[%s3 + $0x2a8] sm:$0xff]
      %v1312 = vld [vmem:[%s3 + $0x2b0] sm:$0xff]
      %v1313 = vld [vmem:[%s3 + $0x2b8] sm:$0xff]
      %v1314 = vld [vmem:[%s3 + $0x2c0] sm:$0xff]
      %v1315 = vld [vmem:[%s3 + $0x2c8] sm:$0xff]
      %v1316 = vld [vmem:[%s3 + $0x2d0] sm:$0xff]
      %v1317 = vld [vmem:[%s3 + $0x2d8] sm:$0xff]
      %v1318 = vld [vmem:[%s3 + $0x2e0] sm:$0xff]
      %v1319 = vld [vmem:[%s3 + $0x2e8] sm:$0xff]
      %v1320 = vld [vmem:[%s3 + $0x2f0] sm:$0xff]
      %v1321 = vld [vmem:[%s3 + $0x2f8] sm:$0xff]
      %v1322 = vld [vmem:[%s3 + $0x300] sm:$0xff]
      %v1323 = vld [vmem:[%s3 + $0x308] sm:$0xff]
      %v1324 = vld [vmem:[%s3 + $0x310] sm:$0xff]
      %v1325 = vld [vmem:[%s3 + $0x318] sm:$0xff]
      %v1326 = vld [vmem:[%s3 + $0x320] sm:$0xff]
      %v1327 = vld [vmem:[%s3 + $0x328] sm:$0xff]
      %v1328 = vld [vmem:[%s3 + $0x330] sm:$0xff]
      %v1329 = vld [vmem:[%s3 + $0x338] sm:$0xff]
      %v1330 = vld [vmem:[%s3 + $0x340] sm:$0xff]
      %v1331 = vld [vmem:[%s3 + $0x348] sm:$0xff]
      %v1332 = vld [vmem:[%s3 + $0x350] sm:$0xff]
      %v1333 = vld [vmem:[%s3 + $0x358] sm:$0xff]
      %v1334 = vld [vmem:[%s3 + $0x360] sm:$0xff]
      %v1335 = vld [vmem:[%s3 + $0x368] sm:$0xff]
      %v1336 = vld [vmem:[%s3 + $0x370] sm:$0xff]
      %v1337 = vld [vmem:[%s3 + $0x378] sm:$0xff]
      %v1338 = vld [vmem:[%s3 + $0x380] sm:$0xff]
      %v1339 = vld [vmem:[%s3 + $0x388] sm:$0xff]
      %v1340 = vld [vmem:[%s3 + $0x390] sm:$0xff]
      %v1341 = vld [vmem:[%s3 + $0x398] sm:$0xff]
      %v1342 = vld [vmem:[%s3 + $0x3a0] sm:$0xff]
      %v1343 = vld [vmem:[%s3 + $0x3a8] sm:$0xff]
      %v1344 = vld [vmem:[%s3 + $0x3b0] sm:$0xff]
      %v1345 = vld [vmem:[%s3 + $0x3b8] sm:$0xff]
      %v1346 = vld [vmem:[%s3 + $0x3c0] sm:$0xff]
      %v1347 = vld [vmem:[%s3 + $0x3c8] sm:$0xff]
      %v1348 = vld [vmem:[%s3 + $0x3d0] sm:$0xff]
      %v1349 = vld [vmem:[%s3 + $0x3d8] sm:$0xff]
      %v1350 = vld [vmem:[%s3 + $0x3e0] sm:$0xff]
      %v1351 = vld [vmem:[%s3 + $0x3e8] sm:$0xff]
      %v1352 = vld [vmem:[%s3 + $0x3f0] sm:$0xff]
      %v1353 = vld [vmem:[%s3 + $0x3f8] sm:$0xff]
      %v1354 = vld [vmem:[%s3 + $0x400] sm:$0xff]
      %v1355 = vld [vmem:[%s3 + $0x408] sm:$0xff]
      %v1356 = vld [vmem:[%s3 + $0x410] sm:$0xff]
      %v1357 = vld [vmem:[%s3 + $0x418] sm:$0xff]
      %v1358 = vld [vmem:[%s3 + $0x420] sm:$0xff]
      %v1359 = vld [vmem:[%s3 + $0x428] sm:$0xff]
      %v1360 = vld [vmem:[%s3 + $0x430] sm:$0xff]
      %v1361 = vld [vmem:[%s3 + $0x438] sm:$0xff]
      %v1362 = vld [vmem:[%s3 + $0x440] sm:$0xff]
      %v1363 = vld [vmem:[%s3 + $0x448] sm:$0xff]
      %v1364 = vld [vmem:[%s3 + $0x450] sm:$0xff]
      %v1365 = vld [vmem:[%s3 + $0x458] sm:$0xff]
      %v1366 = vld [vmem:[%s3 + $0x460] sm:$0xff]
      %v1367 = vld [vmem:[%s3 + $0x468] sm:$0xff]
      %v1368 = vld [vmem:[%s3 + $0x470] sm:$0xff]
      %v1369 = vld [vmem:[%s3 + $0x478] sm:$0xff]
      %v1370 = vld [vmem:[%s3 + $0x480] sm:$0xff]
      %v1371 = vld [vmem:[%s3 + $0x488] sm:$0xff]
      %v1372 = vld [vmem:[%s3 + $0x490] sm:$0xff]
      %v1373 = vld [vmem:[%s3 + $0x498] sm:$0xff]
      %v1374 = vld [vmem:[%s3 + $0x4a0] sm:$0xff]
      %v1375 = vld [vmem:[%s3 + $0x4a8] sm:$0xff]
      %v1376 = vld [vmem:[%s3 + $0x4b0] sm:$0xff]
      %v1377 = vld [vmem:[%s3 + $0x4b8] sm:$0xff]
      %v1378 = vld [vmem:[%s3 + $0x4c0] sm:$0xff]
      %v1379 = vld [vmem:[%s3 + $0x4c8] sm:$0xff]
      %v1380 = vld [vmem:[%s3 + $0x4d0] sm:$0xff]
      %v1381 = vld [vmem:[%s3 + $0x4d8] sm:$0xff]
      %v1382 = vld [vmem:[%s3 + $0x4e0] sm:$0xff]
      %v1383 = vld [vmem:[%s3 + $0x4e8] sm:$0xff]
      %v1384 = vld [vmem:[%s3 + $0x4f0] sm:$0xff]
      %v1385 = vld [vmem:[%s3 + $0x4f8] sm:$0xff]
      %v1386 = vld [vmem:[%s3 + $0x500] sm:$0xff]
      %v1387 = vld [vmem:[%s3 + $0x508] sm:$0xff]
      %v1388 = vld [vmem:[%s3 + $0x510] sm:$0xff]
      %v1389 = vld [vmem:[%s3 + $0x518] sm:$0xff]
      %v1390 = vld [vmem:[%s3 + $0x520] sm:$0xff]
      %v1391 = vld [vmem:[%s3 + $0x528] sm:$0xff]
      %v1392 = vld [vmem:[%s3 + $0x530] sm:$0xff]
      %v1393 = vld [vmem:[%s3 + $0x538] sm:$0xff]
      %v1394 = vld [vmem:[%s3 + $0x540] sm:$0xff]
      %v1395 = vld [vmem:[%s3 + $0x548] sm:$0xff]
      %v1396 = vld [vmem:[%s3 + $0x550] sm:$0xff]
      %v1397 = vld [vmem:[%s3 + $0x558] sm:$0xff]
      %v1398 = vld [vmem:[%s3 + $0x560] sm:$0xff]
      %v1399 = vld [vmem:[%s3 + $0x568] sm:$0xff]
      %v1400 = vld [vmem:[%s3 + $0x570] sm:$0xff]
      %v1401 = vld [vmem:[%s3 + $0x578] sm:$0xff]
      %v1402 = vld [vmem:[%s3 + $0x580] sm:$0xff]
      %v1403 = vld [vmem:[%s3 + $0x588] sm:$0xff]
      %v1404 = vld [vmem:[%s3 + $0x590] sm:$0xff]
      %v1405 = vld [vmem:[%s3 + $0x598] sm:$0xff]
      %v1406 = vld [vmem:[%s3 + $0x5a0] sm:$0xff]
      %v1407 = vld [vmem:[%s3 + $0x5a8] sm:$0xff]
      %v1408 = vld [vmem:[%s3 + $0x5b0] sm:$0xff]
      %v1409 = vld [vmem:[%s3 + $0x5b8] sm:$0xff]
      %v1410 = vld [vmem:[%s3 + $0x5c0] sm:$0xff]
      %v1411 = vld [vmem:[%s3 + $0x5c8] sm:$0xff]
      %v1412 = vld [vmem:[%s3 + $0x5d0] sm:$0xff]
      %v1413 = vld [vmem:[%s3 + $0x5d8] sm:$0xff]
      %v1414 = vld [vmem:[%s3 + $0x5e0] sm:$0xff]
      %v1415 = vld [vmem:[%s3 + $0x5e8] sm:$0xff]
      %v1416 = vld [vmem:[%s3 + $0x5f0] sm:$0xff]
      %v1417 = vld [vmem:[%s3 + $0x5f8] sm:$0xff]
      %v1418 = vld [vmem:[%s3 + $0x600] sm:$0xff]
      %v1419 = vld [vmem:[%s3 + $0x608] sm:$0xff]
      %v1420 = vld [vmem:[%s3 + $0x610] sm:$0xff]
      %v1421 = vld [vmem:[%s3 + $0x618] sm:$0xff]
      %v1422 = vld [vmem:[%s3 + $0x620] sm:$0xff]
      %v1423 = vld [vmem:[%s3 + $0x628] sm:$0xff]
      %v1424 = vld [vmem:[%s3 + $0x630] sm:$0xff]
      %v1425 = vld [vmem:[%s3 + $0x638] sm:$0xff]
      %v1426 = vld [vmem:[%s3 + $0x640] sm:$0xff]
      %v1427 = vld [vmem:[%s3 + $0x648] sm:$0xff]
      %v1428 = vld [vmem:[%s3 + $0x650] sm:$0xff]
      %v1429 = vld [vmem:[%s3 + $0x658] sm:$0xff]
      %v1430 = vld [vmem:[%s3 + $0x660] sm:$0xff]
      %v1431 = vld [vmem:[%s3 + $0x668] sm:$0xff]
      %v1432 = vld [vmem:[%s3 + $0x670] sm:$0xff]
      %v1433 = vld [vmem:[%s3 + $0x678] sm:$0xff]
      %v1434 = vld [vmem:[%s3 + $0x680] sm:$0xff]
      %v1435 = vld [vmem:[%s3 + $0x688] sm:$0xff]
      %v1436 = vld [vmem:[%s3 + $0x690] sm:$0xff]
      %v1437 = vld [vmem:[%s3 + $0x698] sm:$0xff]
      %v1438 = vld [vmem:[%s3 + $0x6a0] sm:$0xff]
      %v1439 = vld [vmem:[%s3 + $0x6a8] sm:$0xff]
      %v1440 = vld [vmem:[%s3 + $0x6b0] sm:$0xff]
      %v1441 = vld [vmem:[%s3 + $0x6b8] sm:$0xff]
      %v1442 = vld [vmem:[%s3 + $0x6c0] sm:$0xff]
      %v1443 = vld [vmem:[%s3 + $0x6c8] sm:$0xff]
      %v1444 = vld [vmem:[%s3 + $0x6d0] sm:$0xff]
      %v1445 = vld [vmem:[%s3 + $0x6d8] sm:$0xff]
      %v1446 = vld [vmem:[%s3 + $0x6e0] sm:$0xff]
      %v1447 = vld [vmem:[%s3 + $0x6e8] sm:$0xff]
      %v1448 = vld [vmem:[%s3 + $0x6f0] sm:$0xff]
      %v1449 = vld [vmem:[%s3 + $0x6f8] sm:$0xff]
      %v1450 = vld [vmem:[%s3 + $0x700] sm:$0xff]
      %v1451 = vld [vmem:[%s3 + $0x708] sm:$0xff]
      %v1452 = vld [vmem:[%s3 + $0x710] sm:$0xff]
      %v1453 = vld [vmem:[%s3 + $0x718] sm:$0xff]
      %v1454 = vld [vmem:[%s3 + $0x720] sm:$0xff]
      %v1455 = vld [vmem:[%s3 + $0x728] sm:$0xff]
      %v1456 = vld [vmem:[%s3 + $0x730] sm:$0xff]
      %v1457 = vld [vmem:[%s3 + $0x738] sm:$0xff]
      %v1458 = vld [vmem:[%s3 + $0x740] sm:$0xff]
      %v1459 = vld [vmem:[%s3 + $0x748] sm:$0xff]
      %v1460 = vld [vmem:[%s3 + $0x750] sm:$0xff]
      %v1461 = vld [vmem:[%s3 + $0x758] sm:$0xff]
      %v1462 = vld [vmem:[%s3 + $0x760] sm:$0xff]
      %v1463 = vld [vmem:[%s3 + $0x768] sm:$0xff]
      %v1464 = vld [vmem:[%s3 + $0x770] sm:$0xff]
      %v1465 = vld [vmem:[%s3 + $0x778] sm:$0xff]
      %v1466 = vld [vmem:[%s3 + $0x780] sm:$0xff]
      %v1467 = vld [vmem:[%s3 + $0x788] sm:$0xff]
      %v1468 = vld [vmem:[%s3 + $0x790] sm:$0xff]
      %v1469 = vld [vmem:[%s3 + $0x798] sm:$0xff]
      %v1470 = vld [vmem:[%s3 + $0x7a0] sm:$0xff]
      %v1471 = vld [vmem:[%s3 + $0x7a8] sm:$0xff]
      %v1472 = vld [vmem:[%s3 + $0x7b0] sm:$0xff]
      %v1473 = vld [vmem:[%s3 + $0x7b8] sm:$0xff]
      %v1474 = vld [vmem:[%s3 + $0x7c0] sm:$0xff]
      %v1475 = vld [vmem:[%s3 + $0x7c8] sm:$0xff]
      %v1476 = vld [vmem:[%s3 + $0x7d0] sm:$0xff]
      %v1477 = vld [vmem:[%s3 + $0x7d8] sm:$0xff]
      %v1478 = vld [vmem:[%s3 + $0x7e0] sm:$0xff]
      %v1479 = vld [vmem:[%s3 + $0x7e8] sm:$0xff]
      %v1480 = vld [vmem:[%s3 + $0x7f0] sm:$0xff]
      %v1481 = vld [vmem:[%s3 + $0x7f8] sm:$0xff]
      %v1482 = vld [vmem:[%s3 + $0x800] sm:$0xff]
      %v1483 = vld [vmem:[%s3 + $0x808] sm:$0xff]
      %v1484 = vld [vmem:[%s3 + $0x810] sm:$0xff]
      %v1485 = vld [vmem:[%s3 + $0x818] sm:$0xff]
      %v1486 = vld [vmem:[%s3 + $0x820] sm:$0xff]
      %v1487 = vld [vmem:[%s3 + $0x828] sm:$0xff]
      %v1488 = vld [vmem:[%s3 + $0x830] sm:$0xff]
      %v1489 = vld [vmem:[%s3 + $0x838] sm:$0xff]
      %v1490 = vld [vmem:[%s3 + $0x840] sm:$0xff]
      %v1491 = vld [vmem:[%s3 + $0x848] sm:$0xff]
      %v1492 = vld [vmem:[%s3 + $0x850] sm:$0xff]
      %v1493 = vld [vmem:[%s3 + $0x858] sm:$0xff]
      %v1494 = vld [vmem:[%s3 + $0x860] sm:$0xff]
      %v1495 = vld [vmem:[%s3 + $0x868] sm:$0xff]
      %v1496 = vld [vmem:[%s3 + $0x870] sm:$0xff]
      %v1497 = vld [vmem:[%s3 + $0x878] sm:$0xff]
      %v1498 = vld [vmem:[%s3 + $0x880] sm:$0xff]
      %v1499 = vld [vmem:[%s3 + $0x888] sm:$0xff]
      %v1500 = vld [vmem:[%s3 + $0x890] sm:$0xff]
      %v1501 = vld [vmem:[%s3 + $0x898] sm:$0xff]
      %v1502 = vld [vmem:[%s3 + $0x8a0] sm:$0xff]
      %v1503 = vld [vmem:[%s3 + $0x8a8] sm:$0xff]
      %v1504 = vld [vmem:[%s3 + $0x8b0] sm:$0xff]
      %v1505 = vld [vmem:[%s3 + $0x8b8] sm:$0xff]
      %v1506 = vld [vmem:[%s3 + $0x8c0] sm:$0xff]
      %v1507 = vld [vmem:[%s3 + $0x8c8] sm:$0xff]
      %v1508 = vld [vmem:[%s3 + $0x8d0] sm:$0xff]
      %v1509 = vld [vmem:[%s3 + $0x8d8] sm:$0xff]
      %v1510 = vld [vmem:[%s3 + $0x8e0] sm:$0xff]
      %v1511 = vld [vmem:[%s3 + $0x8e8] sm:$0xff]
      %v1512 = vld [vmem:[%s3 + $0x8f0] sm:$0xff]
      %v1513 = vld [vmem:[%s3 + $0x8f8] sm:$0xff]
      %v1514 = vld [vmem:[%s3 + $0x900] sm:$0xff]
      %v1515 = vld [vmem:[%s3 + $0x908] sm:$0xff]
      %v1516 = vld [vmem:[%s3 + $0x910] sm:$0xff]
      %v1517 = vld [vmem:[%s3 + $0x918] sm:$0xff]
      %v1518 = vld [vmem:[%s3 + $0x920] sm:$0xff]
      %v1519 = vld [vmem:[%s3 + $0x928] sm:$0xff]
      %v1520 = vld [vmem:[%s3 + $0x930] sm:$0xff]
      %v1521 = vld [vmem:[%s3 + $0x938] sm:$0xff]
      %v1522 = vld [vmem:[%s3 + $0x940] sm:$0xff]
      %v1523 = vld [vmem:[%s3 + $0x948] sm:$0xff]
      %v1524 = vld [vmem:[%s3 + $0x950] sm:$0xff]
      %v1525 = vld [vmem:[%s3 + $0x958] sm:$0xff]
      %v1526 = vld [vmem:[%s3 + $0x960] sm:$0xff]
      %v1527 = vld [vmem:[%s3 + $0x968] sm:$0xff]
      %v1528 = vld [vmem:[%s3 + $0x970] sm:$0xff]
      %v1529 = vld [vmem:[%s3 + $0x978] sm:$0xff]
      %v1530 = vld [vmem:[%s3 + $0x980] sm:$0xff]
      %v1531 = vld [vmem:[%s3 + $0x988] sm:$0xff]
      %v1532 = vld [vmem:[%s3 + $0x990] sm:$0xff]
      %v1533 = vld [vmem:[%s3 + $0x998] sm:$0xff]
      %v1534 = vld [vmem:[%s3 + $0x9a0] sm:$0xff]
      %v1535 = vld [vmem:[%s3 + $0x9a8] sm:$0xff]
      %v1536 = vld [vmem:[%s3 + $0x9b0] sm:$0xff]
      %v1537 = vld [vmem:[%s3 + $0x9b8] sm:$0xff]
      %v1538 = vld [vmem:[%s3 + $0x9c0] sm:$0xff]
      %v1539 = vld [vmem:[%s3 + $0x9c8] sm:$0xff]
      %v1540 = vld [vmem:[%s3 + $0x9d0] sm:$0xff]
      %v1541 = vld [vmem:[%s3 + $0x9d8] sm:$0xff]
      %v1542 = vld [vmem:[%s3 + $0x9e0] sm:$0xff]
      %v1543 = vld [vmem:[%s3 + $0x9e8] sm:$0xff]
      %v1544 = vld [vmem:[%s3 + $0x9f0] sm:$0xff]
      %v1545 = vld [vmem:[%s3 + $0x9f8] sm:$0xff]
      %v1546 = vld [vmem:[%s3 + $0xa00] sm:$0xff]
      %v1547 = vld [vmem:[%s3 + $0xa08] sm:$0xff]
      %v1548 = vld [vmem:[%s3 + $0xa10] sm:$0xff]
      %v1549 = vld [vmem:[%s3 + $0xa18] sm:$0xff]
      %v1550 = vld [vmem:[%s3 + $0xa20] sm:$0xff]
      %v1551 = vld [vmem:[%s3 + $0xa28] sm:$0xff]
      %v1552 = vld [vmem:[%s3 + $0xa30] sm:$0xff]
      %v1553 = vld [vmem:[%s3 + $0xa38] sm:$0xff]
      %v1554 = vld [vmem:[%s3 + $0xa40] sm:$0xff]
      %v1555 = vld [vmem:[%s3 + $0xa48] sm:$0xff]
      %v1556 = vld [vmem:[%s3 + $0xa50] sm:$0xff]
      %v1557 = vld [vmem:[%s3 + $0xa58] sm:$0xff]
      %v1558 = vld [vmem:[%s3 + $0xa60] sm:$0xff]
      %v1559 = vld [vmem:[%s3 + $0xa68] sm:$0xff]
      %v1560 = vld [vmem:[%s3 + $0xa70] sm:$0xff]
      %v1561 = vld [vmem:[%s3 + $0xa78] sm:$0xff]
      %v1562 = vld [vmem:[%s3 + $0xa80] sm:$0xff]
      %v1563 = vld [vmem:[%s3 + $0xa88] sm:$0xff]
      %v1564 = vld [vmem:[%s3 + $0xa90] sm:$0xff]
      %v1565 = vld [vmem:[%s3 + $0xa98] sm:$0xff]
      %v1566 = vld [vmem:[%s3 + $0xaa0] sm:$0xff]
      %v1567 = vld [vmem:[%s3 + $0xaa8] sm:$0xff]
      %v1568 = vld [vmem:[%s3 + $0xab0] sm:$0xff]
      %v1569 = vld [vmem:[%s3 + $0xab8] sm:$0xff]
      %v1570 = vld [vmem:[%s3 + $0xac0] sm:$0xff]
      %v1571 = vld [vmem:[%s3 + $0xac8] sm:$0xff]
      %v1572 = vld [vmem:[%s3 + $0xad0] sm:$0xff]
      %v1573 = vld [vmem:[%s3 + $0xad8] sm:$0xff]
      %v1574 = vld [vmem:[%s3 + $0xae0] sm:$0xff]
      %v1575 = vld [vmem:[%s3 + $0xae8] sm:$0xff]
      %v1576 = vld [vmem:[%s3 + $0xaf0] sm:$0xff]
      %v1577 = vld [vmem:[%s3 + $0xaf8] sm:$0xff]
      %v1578 = vld [vmem:[%s3 + $0xb00] sm:$0xff]
      %v1579 = vld [vmem:[%s3 + $0xb08] sm:$0xff]
      %v1580 = vld [vmem:[%s3 + $0xb10] sm:$0xff]
      %v1581 = vld [vmem:[%s3 + $0xb18] sm:$0xff]
      %v1582 = vld [vmem:[%s3 + $0xb20] sm:$0xff]
      %v1583 = vld [vmem:[%s3 + $0xb28] sm:$0xff]
      %v1584 = vld [vmem:[%s3 + $0xb30] sm:$0xff]
      %v1585 = vld [vmem:[%s3 + $0xb38] sm:$0xff]
      %v1586 = vld [vmem:[%s3 + $0xb40] sm:$0xff]
      %v1587 = vld [vmem:[%s3 + $0xb48] sm:$0xff]
      %v1588 = vld [vmem:[%s3 + $0xb50] sm:$0xff]
      %v1589 = vld [vmem:[%s3 + $0xb58] sm:$0xff]
      %v1590 = vld [vmem:[%s3 + $0xb60] sm:$0xff]
      %v1591 = vld [vmem:[%s3 + $0xb68] sm:$0xff]
      %v1592 = vld [vmem:[%s3 + $0xb70] sm:$0xff]
      %v1593 = vld [vmem:[%s3 + $0xb78] sm:$0xff]
      %v1594 = vld [vmem:[%s3 + $0xb80] sm:$0xff]
      %v1595 = vld [vmem:[%s3 + $0xb88] sm:$0xff]
      %v1596 = vld [vmem:[%s3 + $0xb90] sm:$0xff]
      %v1597 = vld [vmem:[%s3 + $0xb98] sm:$0xff]
      %v1598 = vld [vmem:[%s3 + $0xba0] sm:$0xff]
      %v1599 = vld [vmem:[%s3 + $0xba8] sm:$0xff]
      %v1600 = vld [vmem:[%s3 + $0xbb0] sm:$0xff]
      %v1601 = vld [vmem:[%s3 + $0xbb8] sm:$0xff]
      %v1602 = vld [vmem:[%s3 + $0xbc0] sm:$0xff]
      %v1603 = vld [vmem:[%s3 + $0xbc8] sm:$0xff]
      %v1604 = vld [vmem:[%s3 + $0xbd0] sm:$0xff]
      %v1605 = vld [vmem:[%s3 + $0xbd8] sm:$0xff]
      %v1606 = vld [vmem:[%s3 + $0xbe0] sm:$0xff]
      %v1607 = vld [vmem:[%s3 + $0xbe8] sm:$0xff]
      %v1608 = vld [vmem:[%s3 + $0xbf0] sm:$0xff]
      %v1609 = vld [vmem:[%s3 + $0xbf8] sm:$0xff]
      %v1610 = vld [vmem:[%s3 + $0xc00] sm:$0xff]
      %v1611 = vld [vmem:[%s3 + $0xc08] sm:$0xff]
      %v1612 = vld [vmem:[%s3 + $0xc10] sm:$0xff]
      %v1613 = vld [vmem:[%s3 + $0xc18] sm:$0xff]
      %v1614 = vld [vmem:[%s3 + $0xc20] sm:$0xff]
      %v1615 = vld [vmem:[%s3 + $0xc28] sm:$0xff]
      %v1616 = vld [vmem:[%s3 + $0xc30] sm:$0xff]
      %v1617 = vld [vmem:[%s3 + $0xc38] sm:$0xff]
      %v1618 = vld [vmem:[%s3 + $0xc40] sm:$0xff]
      %v1619 = vld [vmem:[%s3 + $0xc48] sm:$0xff]
      %v1620 = vld [vmem:[%s3 + $0xc50] sm:$0xff]
      %v1621 = vld [vmem:[%s3 + $0xc58] sm:$0xff]
      %v1622 = vld [vmem:[%s3 + $0xc60] sm:$0xff]
      %v1623 = vld [vmem:[%s3 + $0xc68] sm:$0xff]
      %v1624 = vld [vmem:[%s3 + $0xc70] sm:$0xff]
      %v1625 = vld [vmem:[%s3 + $0xc78] sm:$0xff]
      %v1626 = vld [vmem:[%s3 + $0xc80] sm:$0xff]
      %v1627 = vld [vmem:[%s3 + $0xc88] sm:$0xff]
      %v1628 = vld [vmem:[%s3 + $0xc90] sm:$0xff]
      %v1629 = vld [vmem:[%s3 + $0xc98] sm:$0xff]
      %v1630 = vld [vmem:[%s3 + $0xca0] sm:$0xff]
      %v1631 = vld [vmem:[%s3 + $0xca8] sm:$0xff]
      %v1632 = vld [vmem:[%s3 + $0xcb0] sm:$0xff]
      %v1633 = vld [vmem:[%s3 + $0xcb8] sm:$0xff]
      %v1634 = vld [vmem:[%s3 + $0xcc0] sm:$0xff]
      %v1635 = vld [vmem:[%s3 + $0xcc8] sm:$0xff]
      %v1636 = vld [vmem:[%s3 + $0xcd0] sm:$0xff]
      %v1637 = vld [vmem:[%s3 + $0xcd8] sm:$0xff]
      %v1638 = vld [vmem:[%s3 + $0xce0] sm:$0xff]
      %v1639 = vld [vmem:[%s3 + $0xce8] sm:$0xff]
      %v1640 = vld [vmem:[%s3 + $0xcf0] sm:$0xff]
      %v1641 = vld [vmem:[%s3 + $0xcf8] sm:$0xff]
      %v1642 = vld [vmem:[%s3 + $0xd00] sm:$0xff]
      %v1643 = vld [vmem:[%s3 + $0xd08] sm:$0xff]
      %v1644 = vld [vmem:[%s3 + $0xd10] sm:$0xff]
      %v1645 = vld [vmem:[%s3 + $0xd18] sm:$0xff]
      %v1646 = vld [vmem:[%s3 + $0xd20] sm:$0xff]
      %v1647 = vld [vmem:[%s3 + $0xd28] sm:$0xff]
      %v1648 = vld [vmem:[%s3 + $0xd30] sm:$0xff]
      %v1649 = vld [vmem:[%s3 + $0xd38] sm:$0xff]
      %v1650 = vld [vmem:[%s3 + $0xd40] sm:$0xff]
      %v1651 = vld [vmem:[%s3 + $0xd48] sm:$0xff]
      %v1652 = vld [vmem:[%s3 + $0xd50] sm:$0xff]
      %v1653 = vld [vmem:[%s3 + $0xd58] sm:$0xff]
      %v1654 = vld [vmem:[%s3 + $0xd60] sm:$0xff]
      %v1655 = vld [vmem:[%s3 + $0xd68] sm:$0xff]
      %v1656 = vld [vmem:[%s3 + $0xd70] sm:$0xff]
      %v1657 = vld [vmem:[%s3 + $0xd78] sm:$0xff]
      %v1658 = vld [vmem:[%s3 + $0xd80] sm:$0xff]
      %v1659 = vld [vmem:[%s3 + $0xd88] sm:$0xff]
      %v1660 = vld [vmem:[%s3 + $0xd90] sm:$0xff]
      %v1661 = vld [vmem:[%s3 + $0xd98] sm:$0xff]
      %v1662 = vld [vmem:[%s3 + $0xda0] sm:$0xff]
      %v1663 = vld [vmem:[%s3 + $0xda8] sm:$0xff]
      %v1664 = vld [vmem:[%s3 + $0xdb0] sm:$0xff]
      %v1665 = vld [vmem:[%s3 + $0xdb8] sm:$0xff]
      %v1666 = vld [vmem:[%s3 + $0xdc0] sm:$0xff]
      %v1667 = vld [vmem:[%s3 + $0xdc8] sm:$0xff]
      %v1668 = vld [vmem:[%s3 + $0xdd0] sm:$0xff]
      %v1669 = vld [vmem:[%s3 + $0xdd8] sm:$0xff]
      %v1670 = vld [vmem:[%s3 + $0xde0] sm:$0xff]
      %v1671 = vld [vmem:[%s3 + $0xde8] sm:$0xff]
      %v1672 = vld [vmem:[%s3 + $0xdf0] sm:$0xff]
      %v1673 = vld [vmem:[%s3 + $0xdf8] sm:$0xff]
      %v1674 = vld [vmem:[%s3 + $0xe00] sm:$0xff]
      %v1675 = vld [vmem:[%s3 + $0xe08] sm:$0xff]
      %v1676 = vld [vmem:[%s3 + $0xe10] sm:$0xff]
      %v1677 = vld [vmem:[%s3 + $0xe18] sm:$0xff]
      %v1678 = vld [vmem:[%s3 + $0xe20] sm:$0xff]
      %v1679 = vld [vmem:[%s3 + $0xe28] sm:$0xff]
      %v1680 = vld [vmem:[%s3 + $0xe30] sm:$0xff]
      %v1681 = vld [vmem:[%s3 + $0xe38] sm:$0xff]
      %v1682 = vld [vmem:[%s3 + $0xe40] sm:$0xff]
      %v1683 = vld [vmem:[%s3 + $0xe48] sm:$0xff]
      %v1684 = vld [vmem:[%s3 + $0xe50] sm:$0xff]
      %v1685 = vld [vmem:[%s3 + $0xe58] sm:$0xff]
      %v1686 = vld [vmem:[%s3 + $0xe60] sm:$0xff]
      %v1687 = vld [vmem:[%s3 + $0xe68] sm:$0xff]
      %v1688 = vld [vmem:[%s3 + $0xe70] sm:$0xff]
      %v1689 = vld [vmem:[%s3 + $0xe78] sm:$0xff]
      %v1690 = vld [vmem:[%s3 + $0xe80] sm:$0xff]
      %v1691 = vld [vmem:[%s3 + $0xe88] sm:$0xff]
      %v1692 = vld [vmem:[%s3 + $0xe90] sm:$0xff]
      %v1693 = vld [vmem:[%s3 + $0xe98] sm:$0xff]
      %v1694 = vld [vmem:[%s3 + $0xea0] sm:$0xff]
      %v1695 = vld [vmem:[%s3 + $0xea8] sm:$0xff]
      %v1696 = vld [vmem:[%s3 + $0xeb0] sm:$0xff]
      %v1697 = vld [vmem:[%s3 + $0xeb8] sm:$0xff]
      %v1698 = vld [vmem:[%s3 + $0xec0] sm:$0xff]
      %v1699 = vld [vmem:[%s3 + $0xec8] sm:$0xff]
      %v1700 = vld [vmem:[%s3 + $0xed0] sm:$0xff]
      %v1701 = vld [vmem:[%s3 + $0xed8] sm:$0xff]
      %v1702 = vld [vmem:[%s3 + $0xee0] sm:$0xff]
      %v1703 = vld [vmem:[%s3 + $0xee8] sm:$0xff]
      %v1704 = vld [vmem:[%s3 + $0xef0] sm:$0xff]
      %v1705 = vld [vmem:[%s3 + $0xef8] sm:$0xff]
      %v1706 = vld [vmem:[%s3 + $0xf00] sm:$0xff]
      %v1707 = vld [vmem:[%s3 + $0xf08] sm:$0xff]
      %v1708 = vld [vmem:[%s3 + $0xf10] sm:$0xff]
      %v1709 = vld [vmem:[%s3 + $0xf18] sm:$0xff]
      %v1710 = vld [vmem:[%s3 + $0xf20] sm:$0xff]
      %v1711 = vld [vmem:[%s3 + $0xf28] sm:$0xff]
      %v1712 = vld [vmem:[%s3 + $0xf30] sm:$0xff]
      %v1713 = vld [vmem:[%s3 + $0xf38] sm:$0xff]
      %v1714 = vld [vmem:[%s3 + $0xf40] sm:$0xff]
      %v1715 = vld [vmem:[%s3 + $0xf48] sm:$0xff]
      %v1716 = vld [vmem:[%s3 + $0xf50] sm:$0xff]
      %v1717 = vld [vmem:[%s3 + $0xf58] sm:$0xff]
      %v1718 = vld [vmem:[%s3 + $0xf60] sm:$0xff]
      %v1719 = vld [vmem:[%s3 + $0xf68] sm:$0xff]
      %v1720 = vld [vmem:[%s3 + $0xf70] sm:$0xff]
      %v1721 = vld [vmem:[%s3 + $0xf78] sm:$0xff]
      %v1722 = vld [vmem:[%s3 + $0xf80] sm:$0xff]
      %v1723 = vld [vmem:[%s3 + $0xf88] sm:$0xff]
      %v1724 = vld [vmem:[%s3 + $0xf90] sm:$0xff]
      %v1725 = vld [vmem:[%s3 + $0xf98] sm:$0xff]
      %v1726 = vld [vmem:[%s3 + $0xfa0] sm:$0xff]
      %v1727 = vld [vmem:[%s3 + $0xfa8] sm:$0xff]
      %v1728 = vld [vmem:[%s3 + $0xfb0] sm:$0xff]
      %v1729 = vld [vmem:[%s3 + $0xfb8] sm:$0xff]
      %v1730 = vld [vmem:[%s3 + $0xfc0] sm:$0xff]
      %v1731 = vld [vmem:[%s3 + $0xfc8] sm:$0xff]
      %v1732 = vld [vmem:[%s3 + $0xfd0] sm:$0xff]
      %v1733 = vld [vmem:[%s3 + $0xfd8] sm:$0xff]
      %v1734 = vld [vmem:[%s3 + $0xfe0] sm:$0xff]
      %v1735 = vld [vmem:[%s3 + $0xfe8] sm:$0xff]
      %v1736 = vld [vmem:[%s3 + $0xff0] sm:$0xff]
      %v1737 = vld [vmem:[%s3 + $0xff8] sm:$0xff]
      %v1738 = vld [vmem:[%s3 + $0x1000] sm:$0xff]
      %v1739 = vld [vmem:[%s3 + $0x1008] sm:$0xff]
      %v1740 = vld [vmem:[%s3 + $0x1010] sm:$0xff]
      %v1741 = vld [vmem:[%s3 + $0x1018] sm:$0xff]
      %v1742 = vld [vmem:[%s3 + $0x1020] sm:$0xff]
      %v1743 = vld [vmem:[%s3 + $0x1028] sm:$0xff]
      %v1744 = vld [vmem:[%s3 + $0x1030] sm:$0xff]
      %v1745 = vld [vmem:[%s3 + $0x1038] sm:$0xff]
      %v1746 = vld [vmem:[%s3 + $0x1040] sm:$0xff]
      %v1747 = vld [vmem:[%s3 + $0x1048] sm:$0xff]
      %v1748 = vld [vmem:[%s3 + $0x1050] sm:$0xff]
      %v1749 = vld [vmem:[%s3 + $0x1058] sm:$0xff]
      %v1750 = vld [vmem:[%s3 + $0x1060] sm:$0xff]
      %v1751 = vld [vmem:[%s3 + $0x1068] sm:$0xff]
      %v1752 = vld [vmem:[%s3 + $0x1070] sm:$0xff]
      %v1753 = vld [vmem:[%s3 + $0x1078] sm:$0xff]
      %v1754 = vld [vmem:[%s3 + $0x1080] sm:$0xff]
      %v1755 = vld [vmem:[%s3 + $0x1088] sm:$0xff]
      %v1756 = vld [vmem:[%s3 + $0x1090] sm:$0xff]
      %v1757 = vld [vmem:[%s3 + $0x1098] sm:$0xff]
      %v1758 = vld [vmem:[%s3 + $0x10a0] sm:$0xff]
      %v1759 = vld [vmem:[%s3 + $0x10a8] sm:$0xff]
      %v1760 = vld [vmem:[%s3 + $0x10b0] sm:$0xff]
      %v1761 = vld [vmem:[%s3 + $0x10b8] sm:$0xff]
      %v1762 = vld [vmem:[%s3 + $0x10c0] sm:$0xff]
      %v1763 = vld [vmem:[%s3 + $0x10c8] sm:$0xff]
      %v1764 = vld [vmem:[%s3 + $0x10d0] sm:$0xff]
      %v1765 = vld [vmem:[%s3 + $0x10d8] sm:$0xff]
      %v1766 = vld [vmem:[%s3 + $0x10e0] sm:$0xff]
      %v1767 = vld [vmem:[%s3 + $0x10e8] sm:$0xff]
      %v1768 = vld [vmem:[%s3 + $0x10f0] sm:$0xff]
      %v1769 = vld [vmem:[%s3 + $0x10f8] sm:$0xff]
      %v1770 = vld [vmem:[%s3 + $0x1100] sm:$0xff]
      %v1771 = vld [vmem:[%s3 + $0x1108] sm:$0xff]
      %v1772 = vld [vmem:[%s3 + $0x1110] sm:$0xff]
      %v1773 = vld [vmem:[%s3 + $0x1118] sm:$0xff]
      %v1774 = vld [vmem:[%s3 + $0x1120] sm:$0xff]
      %v1775 = vld [vmem:[%s3 + $0x1128] sm:$0xff]
      %v1776 = vld [vmem:[%s3 + $0x1130] sm:$0xff]
      %v1777 = vld [vmem:[%s3 + $0x1138] sm:$0xff]
      %v1778 = vld [vmem:[%s3 + $0x1140] sm:$0xff]
      %v1779 = vld [vmem:[%s3 + $0x1148] sm:$0xff]
      %v1780 = vld [vmem:[%s3 + $0x1150] sm:$0xff]
      %v1781 = vld [vmem:[%s3 + $0x1158] sm:$0xff]
      %v1782 = vld [vmem:[%s3 + $0x1160] sm:$0xff]
      %v1783 = vld [vmem:[%s3 + $0x1168] sm:$0xff]
      %v1784 = vld [vmem:[%s3 + $0x1170] sm:$0xff]
      %v1785 = vld [vmem:[%s3 + $0x1178] sm:$0xff]
      %v1786 = vld [vmem:[%s3 + $0x1180] sm:$0xff]
      %v1787 = vld [vmem:[%s3 + $0x1188] sm:$0xff]
      %v1788 = vld [vmem:[%s3 + $0x1190] sm:$0xff]
      %v1789 = vld [vmem:[%s3 + $0x1198] sm:$0xff]
      %v1790 = vld [vmem:[%s3 + $0x11a0] sm:$0xff]
      %v1791 = vld [vmem:[%s3 + $0x11a8] sm:$0xff]
      %v1792 = vld [vmem:[%s3 + $0x11b0] sm:$0xff]
      %v1793 = vld [vmem:[%s3 + $0x11b8] sm:$0xff]
      %v1794 = vld [vmem:[%s3 + $0x11c0] sm:$0xff]
      %v1795 = vld [vmem:[%s3 + $0x11c8] sm:$0xff]
      %v1796 = vld [vmem:[%s3 + $0x11d0] sm:$0xff]
      %v1797 = vld [vmem:[%s3 + $0x11d8] sm:$0xff]
      %v1798 = vld [vmem:[%s3 + $0x11e0] sm:$0xff]
      %v1799 = vld [vmem:[%s3 + $0x11e8] sm:$0xff]
      %v1800 = vld [vmem:[%s3 + $0x11f0] sm:$0xff]
      %v1801 = vld [vmem:[%s3 + $0x11f8] sm:$0xff]
      %v1802 = vld [vmem:[%s3 + $0x1200] sm:$0xff]
      %v1803 = vld [vmem:[%s3 + $0x1208] sm:$0xff]
      %v1804 = vld [vmem:[%s3 + $0x1210] sm:$0xff]
      %v1805 = vld [vmem:[%s3 + $0x1218] sm:$0xff]
      %v1806 = vld [vmem:[%s3 + $0x1220] sm:$0xff]
      %v1807 = vld [vmem:[%s3 + $0x1228] sm:$0xff]
      %v1808 = vld [vmem:[%s3 + $0x1230] sm:$0xff]
      %v1809 = vld [vmem:[%s3 + $0x1238] sm:$0xff]
      %v1810 = vld [vmem:[%s3 + $0x1240] sm:$0xff]
      %v1811 = vld [vmem:[%s3 + $0x1248] sm:$0xff]
      %v1812 = vld [vmem:[%s3 + $0x1250] sm:$0xff]
      %v1813 = vld [vmem:[%s3 + $0x1258] sm:$0xff]
      %v1814 = vld [vmem:[%s3 + $0x1260] sm:$0xff]
      %v1815 = vld [vmem:[%s3 + $0x1268] sm:$0xff]
      %v1816 = vld [vmem:[%s3 + $0x1270] sm:$0xff]
      %v1817 = vld [vmem:[%s3 + $0x1278] sm:$0xff]
      %v1818 = vld [vmem:[%s3 + $0x1280] sm:$0xff]
      %v1819 = vld [vmem:[%s3 + $0x1288] sm:$0xff]
      %v1820 = vld [vmem:[%s3 + $0x1290] sm:$0xff]
      %v1821 = vld [vmem:[%s3 + $0x1298] sm:$0xff]
      %v1822 = vld [vmem:[%s3 + $0x12a0] sm:$0xff]
      %v1823 = vld [vmem:[%s3 + $0x12a8] sm:$0xff]
      %v1824 = vld [vmem:[%s3 + $0x12b0] sm:$0xff]
      %v1825 = vld [vmem:[%s3 + $0x12b8] sm:$0xff]
      %v1826 = vld [vmem:[%s3 + $0x12c0] sm:$0xff]
      %v1827 = vld [vmem:[%s3 + $0x12c8] sm:$0xff]
      %v1828 = vld [vmem:[%s3 + $0x12d0] sm:$0xff]
      %v1829 = vld [vmem:[%s3 + $0x12d8] sm:$0xff]
      %v1830 = vld [vmem:[%s3 + $0x12e0] sm:$0xff]
      %v1831 = vld [vmem:[%s3 + $0x12e8] sm:$0xff]
      %v1832 = vld [vmem:[%s3 + $0x12f0] sm:$0xff]
      %v1833 = vld [vmem:[%s3 + $0x12f8] sm:$0xff]
      %v1834 = vld [vmem:[%s3 + $0x1300] sm:$0xff]
      %v1835 = vld [vmem:[%s3 + $0x1308] sm:$0xff]
      %v1836 = vld [vmem:[%s3 + $0x1310] sm:$0xff]
      %v1837 = vld [vmem:[%s3 + $0x1318] sm:$0xff]
      %v1838 = vld [vmem:[%s3 + $0x1320] sm:$0xff]
      %v1839 = vld [vmem:[%s3 + $0x1328] sm:$0xff]
      %v1840 = vld [vmem:[%s3 + $0x1330] sm:$0xff]
      %v1841 = vld [vmem:[%s3 + $0x1338] sm:$0xff]
      %v1842 = vld [vmem:[%s3 + $0x1340] sm:$0xff]
      %v1843 = vld [vmem:[%s3 + $0x1348] sm:$0xff]
      %v1844 = vld [vmem:[%s3 + $0x1350] sm:$0xff]
      %v1845 = vld [vmem:[%s3 + $0x1358] sm:$0xff]
      %v1846 = vld [vmem:[%s3 + $0x1360] sm:$0xff]
      %v1847 = vld [vmem:[%s3 + $0x1368] sm:$0xff]
      %v1848 = vld [vmem:[%s3 + $0x1370] sm:$0xff]
      %v1849 = vld [vmem:[%s3 + $0x1378] sm:$0xff]
      %v1850 = vld [vmem:[%s3 + $0x1380] sm:$0xff]
      %v1851 = vld [vmem:[%s3 + $0x1388] sm:$0xff]
      %v1852 = vld [vmem:[%s3 + $0x1390] sm:$0xff]
      %v1853 = vld [vmem:[%s3 + $0x1398] sm:$0xff]
      %v1854 = vld [vmem:[%s3 + $0x13a0] sm:$0xff]
      %v1855 = vld [vmem:[%s3 + $0x13a8] sm:$0xff]
      %v1856 = vld [vmem:[%s3 + $0x13b0] sm:$0xff]
      %v1857 = vld [vmem:[%s3 + $0x13b8] sm:$0xff]
      %v1858 = vld [vmem:[%s3 + $0x13c0] sm:$0xff]
      %v1859 = vld [vmem:[%s3 + $0x13c8] sm:$0xff]
      %v1860 = vld [vmem:[%s3 + $0x13d0] sm:$0xff]
      %v1861 = vld [vmem:[%s3 + $0x13d8] sm:$0xff]
      %v1862 = vld [vmem:[%s3 + $0x13e0] sm:$0xff]
      %v1863 = vld [vmem:[%s3 + $0x13e8] sm:$0xff]
      %v1864 = vld [vmem:[%s3 + $0x13f0] sm:$0xff]
      %v1865 = vld [vmem:[%s3 + $0x13f8] sm:$0xff]
      %v1866 = vld [vmem:[%s3 + $0x1400] sm:$0xff]
      %v1867 = vld [vmem:[%s3 + $0x1408] sm:$0xff]
      %v1868 = vld [vmem:[%s3 + $0x1410] sm:$0xff]
      %v1869 = vld [vmem:[%s3 + $0x1418] sm:$0xff]
      %v1870 = vld [vmem:[%s3 + $0x1420] sm:$0xff]
      %v1871 = vld [vmem:[%s3 + $0x1428] sm:$0xff]
      %v1872 = vld [vmem:[%s3 + $0x1430] sm:$0xff]
      %v1873 = vld [vmem:[%s3 + $0x1438] sm:$0xff]
      %v1874 = vld [vmem:[%s3 + $0x1440] sm:$0xff]
      %v1875 = vld [vmem:[%s3 + $0x1448] sm:$0xff]
      %v1876 = vld [vmem:[%s3 + $0x1450] sm:$0xff]
      %v1877 = vld [vmem:[%s3 + $0x1458] sm:$0xff]
      %v1878 = vld [vmem:[%s3 + $0x1460] sm:$0xff]
      %v1879 = vld [vmem:[%s3 + $0x1468] sm:$0xff]
      %v1880 = vld [vmem:[%s3 + $0x1470] sm:$0xff]
      %v1881 = vld [vmem:[%s3 + $0x1478] sm:$0xff]
      %v1882 = vld [vmem:[%s3 + $0x1480] sm:$0xff]
      %v1883 = vld [vmem:[%s3 + $0x1488] sm:$0xff]
      %v1884 = vld [vmem:[%s3 + $0x1490] sm:$0xff]
      %v1885 = vld [vmem:[%s3 + $0x1498] sm:$0xff]
      %v1886 = vld [vmem:[%s3 + $0x14a0] sm:$0xff]
      %v1887 = vld [vmem:[%s3 + $0x14a8] sm:$0xff]
      %v1888 = vld [vmem:[%s3 + $0x14b0] sm:$0xff]
      %v1889 = vld [vmem:[%s3 + $0x14b8] sm:$0xff]
      %v1890 = vld [vmem:[%s3 + $0x14c0] sm:$0xff]
      %v1891 = vld [vmem:[%s3 + $0x14c8] sm:$0xff]
      %v1892 = vld [vmem:[%s3 + $0x14d0] sm:$0xff]
      %v1893 = vld [vmem:[%s3 + $0x14d8] sm:$0xff]
      %v1894 = vld [vmem:[%s3 + $0x14e0] sm:$0xff]
      %v1895 = vld [vmem:[%s3 + $0x14e8] sm:$0xff]
      %v1896 = vld [vmem:[%s3 + $0x14f0] sm:$0xff]
      %v1897 = vld [vmem:[%s3 + $0x14f8] sm:$0xff]
      %v1898 = vld [vmem:[%s3 + $0x1500] sm:$0xff]
      %v1899 = vld [vmem:[%s3 + $0x1508] sm:$0xff]
      %v1900 = vld [vmem:[%s3 + $0x1510] sm:$0xff]
      %v1901 = vld [vmem:[%s3 + $0x1518] sm:$0xff]
      %v1902 = vld [vmem:[%s3 + $0x1520] sm:$0xff]
      %v1903 = vld [vmem:[%s3 + $0x1528] sm:$0xff]
      %v1904 = vld [vmem:[%s3 + $0x1530] sm:$0xff]
      %v1905 = vld [vmem:[%s3 + $0x1538] sm:$0xff]
      %v1906 = vld [vmem:[%s3 + $0x1540] sm:$0xff]
      %v1907 = vld [vmem:[%s3 + $0x1548] sm:$0xff]
      %v1908 = vld [vmem:[%s3 + $0x1550] sm:$0xff]
      %v1909 = vld [vmem:[%s3 + $0x1558] sm:$0xff]
      %v1910 = vld [vmem:[%s3 + $0x1560] sm:$0xff]
      %v1911 = vld [vmem:[%s3 + $0x1568] sm:$0xff]
      %v1912 = vld [vmem:[%s3 + $0x1570] sm:$0xff]
      %v1913 = vld [vmem:[%s3 + $0x1578] sm:$0xff]
      %v1914 = vld [vmem:[%s3 + $0x1580] sm:$0xff]
      %v1915 = vld [vmem:[%s3 + $0x1588] sm:$0xff]
      %v1916 = vld [vmem:[%s3 + $0x1590] sm:$0xff]
      %v1917 = vld [vmem:[%s3 + $0x1598] sm:$0xff]
      %v1918 = vld [vmem:[%s3 + $0x15a0] sm:$0xff]
      %v1919 = vld [vmem:[%s3 + $0x15a8] sm:$0xff]
      %v1920 = vld [vmem:[%s3 + $0x15b0] sm:$0xff]
      %v1921 = vld [vmem:[%s3 + $0x15b8] sm:$0xff]
      %v1922 = vld [vmem:[%s3 + $0x15c0] sm:$0xff]
      %v1923 = vld [vmem:[%s3 + $0x15c8] sm:$0xff]
      %v1924 = vld [vmem:[%s3 + $0x15d0] sm:$0xff]
      %v1925 = vld [vmem:[%s3 + $0x15d8] sm:$0xff]
      %v1926 = vld [vmem:[%s3 + $0x15e0] sm:$0xff]
      %v1927 = vld [vmem:[%s3 + $0x15e8] sm:$0xff]
      %v1928 = vld [vmem:[%s3 + $0x15f0] sm:$0xff]
      %v1929 = vld [vmem:[%s3 + $0x15f8] sm:$0xff]
      %v1930 = vld [vmem:[%s3 + $0x1600] sm:$0xff]
      %v1931 = vld [vmem:[%s3 + $0x1608] sm:$0xff]
      %v1932 = vld [vmem:[%s3 + $0x1610] sm:$0xff]
      %v1933 = vld [vmem:[%s3 + $0x1618] sm:$0xff]
      %v1934 = vld [vmem:[%s3 + $0x1620] sm:$0xff]
      %v1935 = vld [vmem:[%s3 + $0x1628] sm:$0xff]
      %v1936 = vld [vmem:[%s3 + $0x1630] sm:$0xff]
      %v1937 = vld [vmem:[%s3 + $0x1638] sm:$0xff]
      %v1938 = vld [vmem:[%s3 + $0x1640] sm:$0xff]
      %v1939 = vld [vmem:[%s3 + $0x1648] sm:$0xff]
      %v1940 = vld [vmem:[%s3 + $0x1650] sm:$0xff]
      %v1941 = vld [vmem:[%s3 + $0x1658] sm:$0xff]
      %v1942 = vld [vmem:[%s3 + $0x1660] sm:$0xff]
      %v1943 = vld [vmem:[%s3 + $0x1668] sm:$0xff]
      %v1944 = vld [vmem:[%s3 + $0x1670] sm:$0xff]
      %v1945 = vld [vmem:[%s3 + $0x1678] sm:$0xff]
      %v1946 = vld [vmem:[%s3 + $0x1680] sm:$0xff]
      %v1947 = vld [vmem:[%s3 + $0x1688] sm:$0xff]
      %v1948 = vld [vmem:[%s3 + $0x1690] sm:$0xff]
      %v1949 = vld [vmem:[%s3 + $0x1698] sm:$0xff]
      %v1950 = vld [vmem:[%s3 + $0x16a0] sm:$0xff]
      %v1951 = vld [vmem:[%s3 + $0x16a8] sm:$0xff]
      %v1952 = vld [vmem:[%s3 + $0x16b0] sm:$0xff]
      %v1953 = vld [vmem:[%s3 + $0x16b8] sm:$0xff]
      %v1954 = vld [vmem:[%s3 + $0x16c0] sm:$0xff]
      %v1955 = vld [vmem:[%s3 + $0x16c8] sm:$0xff]
      %v1956 = vld [vmem:[%s3 + $0x16d0] sm:$0xff]
      %v1957 = vld [vmem:[%s3 + $0x16d8] sm:$0xff]
      %v1958 = vld [vmem:[%s3 + $0x16e0] sm:$0xff]
      %v1959 = vld [vmem:[%s3 + $0x16e8] sm:$0xff]
      %v1960 = vld [vmem:[%s3 + $0x16f0] sm:$0xff]
      %v1961 = vld [vmem:[%s3 + $0x16f8] sm:$0xff]
      %v1962 = vld [vmem:[%s3 + $0x1700] sm:$0xff]
      %v1963 = vld [vmem:[%s3 + $0x1708] sm:$0xff]
      %v1964 = vld [vmem:[%s3 + $0x1710] sm:$0xff]
      %v1965 = vld [vmem:[%s3 + $0x1718] sm:$0xff]
      %v1966 = vld [vmem:[%s3 + $0x1720] sm:$0xff]
      %v1967 = vld [vmem:[%s3 + $0x1728] sm:$0xff]
      %v1968 = vld [vmem:[%s3 + $0x1730] sm:$0xff]
      %v1969 = vld [vmem:[%s3 + $0x1738] sm:$0xff]
      %v1970 = vld [vmem:[%s3 + $0x1740] sm:$0xff]
      %v1971 = vld [vmem:[%s3 + $0x1748] sm:$0xff]
      %v1972 = vld [vmem:[%s3 + $0x1750] sm:$0xff]
      %v1973 = vld [vmem:[%s3 + $0x1758] sm:$0xff]
      %v1974 = vld [vmem:[%s3 + $0x1760] sm:$0xff]
      %v1975 = vld [vmem:[%s3 + $0x1768] sm:$0xff]
      %v1976 = vld [vmem:[%s3 + $0x1770] sm:$0xff]
      %v1977 = vld [vmem:[%s3 + $0x1778] sm:$0xff]
      %v1978 = vld [vmem:[%s3 + $0x1780] sm:$0xff]
      %v1979 = vld [vmem:[%s3 + $0x1788] sm:$0xff]
      %v1980 = vld [vmem:[%s3 + $0x1790] sm:$0xff]
      %v1981 = vld [vmem:[%s3 + $0x1798] sm:$0xff]
      %v1982 = vld [vmem:[%s3 + $0x17a0] sm:$0xff]
      %v1983 = vld [vmem:[%s3 + $0x17a8] sm:$0xff]
      %v1984 = vld [vmem:[%s3 + $0x17b0] sm:$0xff]
      %v1985 = vld [vmem:[%s3 + $0x17b8] sm:$0xff]
      %v1986 = vld [vmem:[%s3 + $0x17c0] sm:$0xff]
      %v1987 = vld [vmem:[%s3 + $0x17c8] sm:$0xff]
      %v1988 = vld [vmem:[%s3 + $0x17d0] sm:$0xff]
      %v1989 = vld [vmem:[%s3 + $0x17d8] sm:$0xff]
      %v1990 = vld [vmem:[%s3 + $0x17e0] sm:$0xff]
      %v1991 = vld [vmem:[%s3 + $0x17e8] sm:$0xff]
      %v1992 = vld [vmem:[%s3 + $0x17f0] sm:$0xff]
      %v1993 = vld [vmem:[%s3 + $0x17f8] sm:$0xff]
      %v1994 = vld [vmem:[%s3 + $0x1800] sm:$0xff]
      %v1995 = vld [vmem:[%s3 + $0x1808] sm:$0xff]
      %v1996 = vld [vmem:[%s3 + $0x1810] sm:$0xff]
      %v1997 = vld [vmem:[%s3 + $0x1818] sm:$0xff]
      %v1998 = vld [vmem:[%s3 + $0x1820] sm:$0xff]
      %v1999 = vld [vmem:[%s3 + $0x1828] sm:$0xff]
      %v2000 = vld [vmem:[%s3 + $0x1830] sm:$0xff]
      %v2001 = vld [vmem:[%s3 + $0x1838] sm:$0xff]
      %v2002 = vld [vmem:[%s3 + $0x1840] sm:$0xff]
      %v2003 = vld [vmem:[%s3 + $0x1848] sm:$0xff]
      %v2004 = vld [vmem:[%s3 + $0x1850] sm:$0xff]
      %v2005 = vld [vmem:[%s3 + $0x1858] sm:$0xff]
      %v2006 = vld [vmem:[%s3 + $0x1860] sm:$0xff]
      %v2007 = vld [vmem:[%s3 + $0x1868] sm:$0xff]
      %v2008 = vld [vmem:[%s3 + $0x1870] sm:$0xff]
      %v2009 = vld [vmem:[%s3 + $0x1878] sm:$0xff]
      %v2010 = vld [vmem:[%s3 + $0x1880] sm:$0xff]
      %v2011 = vld [vmem:[%s3 + $0x1888] sm:$0xff]
      %v2012 = vld [vmem:[%s3 + $0x1890] sm:$0xff]
      %v2013 = vld [vmem:[%s3 + $0x1898] sm:$0xff]
      %v2014 = vld [vmem:[%s3 + $0x18a0] sm:$0xff]
      %v2015 = vld [vmem:[%s3 + $0x18a8] sm:$0xff]
      %v2016 = vld [vmem:[%s3 + $0x18b0] sm:$0xff]
      %v2017 = vld [vmem:[%s3 + $0x18b8] sm:$0xff]
      %v2018 = vld [vmem:[%s3 + $0x18c0] sm:$0xff]
      %v2019 = vld [vmem:[%s3 + $0x18c8] sm:$0xff]
      %v2020 = vld [vmem:[%s3 + $0x18d0] sm:$0xff]
      %v2021 = vld [vmem:[%s3 + $0x18d8] sm:$0xff]
      %v2022 = vld [vmem:[%s3 + $0x18e0] sm:$0xff]
      %v2023 = vld [vmem:[%s3 + $0x18e8] sm:$0xff]
      %v2024 = vld [vmem:[%s3 + $0x18f0] sm:$0xff]
      %v2025 = vld [vmem:[%s3 + $0x18f8] sm:$0xff]
      %v2026 = vld [vmem:[%s3 + $0x1900] sm:$0xff]
      %v2027 = vld [vmem:[%s3 + $0x1908] sm:$0xff]
      %v2028 = vld [vmem:[%s3 + $0x1910] sm:$0xff]
      %v2029 = vld [vmem:[%s3 + $0x1918] sm:$0xff]
      %v2030 = vld [vmem:[%s3 + $0x1920] sm:$0xff]
      %v2031 = vld [vmem:[%s3 + $0x1928] sm:$0xff]
      %v2032 = vld [vmem:[%s3 + $0x1930] sm:$0xff]
      %v2033 = vld [vmem:[%s3 + $0x1938] sm:$0xff]
      %v2034 = vld [vmem:[%s3 + $0x1940] sm:$0xff]
      %v2035 = vld [vmem:[%s3 + $0x1948] sm:$0xff]
      %v2036 = vld [vmem:[%s3 + $0x1950] sm:$0xff]
      %v2037 = vld [vmem:[%s3 + $0x1958] sm:$0xff]
      %v2038 = vld [vmem:[%s3 + $0x1960] sm:$0xff]
      %v2039 = vld [vmem:[%s3 + $0x1968] sm:$0xff]
      %v2040 = vld [vmem:[%s3 + $0x1970] sm:$0xff]
      %v2041 = vld [vmem:[%s3 + $0x1978] sm:$0xff]
      %v2042 = vld [vmem:[%s3 + $0x1980] sm:$0xff]
      %v2043 = vld [vmem:[%s3 + $0x1988] sm:$0xff]
      %v2044 = vld [vmem:[%s3 + $0x1990] sm:$0xff]
      %v2045 = vld [vmem:[%s3 + $0x1998] sm:$0xff]
      %v2046 = vld [vmem:[%s3 + $0x19a0] sm:$0xff]
      %v2047 = vld [vmem:[%s3 + $0x19a8] sm:$0xff]
      %v2048 = vld [vmem:[%s3 + $0x19b0] sm:$0xff]
      %v2049 = vld [vmem:[%s3 + $0x19b8] sm:$0xff]
      %v2050 = vld [vmem:[%s3 + $0x19c0] sm:$0xff]
      %v2051 = vld [vmem:[%s3 + $0x19c8] sm:$0xff]
      %v2052 = vld [vmem:[%s3 + $0x19d0] sm:$0xff]
      %v2053 = vld [vmem:[%s3 + $0x19d8] sm:$0xff]
      %v2054 = vld [vmem:[%s3 + $0x19e0] sm:$0xff]
      %v2055 = vld [vmem:[%s3 + $0x19e8] sm:$0xff]
      %v2056 = vld [vmem:[%s3 + $0x19f0] sm:$0xff]
      %v2057 = vld [vmem:[%s3 + $0x19f8] sm:$0xff]
      %v2058 = vld [vmem:[%s3 + $0x1a00] sm:$0xff]
      %v2059 = vld [vmem:[%s3 + $0x1a08] sm:$0xff]
      %v2060 = vld [vmem:[%s3 + $0x1a10] sm:$0xff]
      %v2061 = vld [vmem:[%s3 + $0x1a18] sm:$0xff]
      %v2062 = vld [vmem:[%s3 + $0x1a20] sm:$0xff]
      %v2063 = vld [vmem:[%s3 + $0x1a28] sm:$0xff]
      %v2064 = vld [vmem:[%s3 + $0x1a30] sm:$0xff]
      %v2065 = vld [vmem:[%s3 + $0x1a38] sm:$0xff]
      %v2066 = vld [vmem:[%s3 + $0x1a40] sm:$0xff]
      %v2067 = vld [vmem:[%s3 + $0x1a48] sm:$0xff]
      %v2068 = vld [vmem:[%s3 + $0x1a50] sm:$0xff]
      %v2069 = vld [vmem:[%s3 + $0x1a58] sm:$0xff]
      %v2070 = vld [vmem:[%s3 + $0x1a60] sm:$0xff]
      %v2071 = vld [vmem:[%s3 + $0x1a68] sm:$0xff]
      %v2072 = vld [vmem:[%s3 + $0x1a70] sm:$0xff]
      %v2073 = vld [vmem:[%s3 + $0x1a78] sm:$0xff]
      %v2074 = vld [vmem:[%s3 + $0x1a80] sm:$0xff]
      %v2075 = vld [vmem:[%s3 + $0x1a88] sm:$0xff]
      %v2076 = vld [vmem:[%s3 + $0x1a90] sm:$0xff]
      %v2077 = vld [vmem:[%s3 + $0x1a98] sm:$0xff]
      %v2078 = vld [vmem:[%s3 + $0x1aa0] sm:$0xff]
      %v2079 = vld [vmem:[%s3 + $0x1aa8] sm:$0xff]
      %v2080 = vld [vmem:[%s3 + $0x1ab0] sm:$0xff]
      %v2081 = vld [vmem:[%s3 + $0x1ab8] sm:$0xff]
      %v2082 = vld [vmem:[%s3 + $0x1ac0] sm:$0xff]
      %v2083 = vld [vmem:[%s3 + $0x1ac8] sm:$0xff]
      %v2084 = vld [vmem:[%s3 + $0x1ad0] sm:$0xff]
      %v2085 = vld [vmem:[%s3 + $0x1ad8] sm:$0xff]
      %v2086 = vld [vmem:[%s3 + $0x1ae0] sm:$0xff]
      %v2087 = vld [vmem:[%s3 + $0x1ae8] sm:$0xff]
      %v2088 = vld [vmem:[%s3 + $0x1af0] sm:$0xff]
      %v2089 = vld [vmem:[%s3 + $0x1af8] sm:$0xff]
      %v2090 = vld [vmem:[%s3 + $0x1b00] sm:$0xff]
      %v2091 = vld [vmem:[%s3 + $0x1b08] sm:$0xff]
      %v2092 = vld [vmem:[%s3 + $0x1b10] sm:$0xff]
      %v2093 = vld [vmem:[%s3 + $0x1b18] sm:$0xff]
      %v2094 = vld [vmem:[%s3 + $0x1b20] sm:$0xff]
      %v2095 = vld [vmem:[%s3 + $0x1b28] sm:$0xff]
      %v2096 = vld [vmem:[%s3 + $0x1b30] sm:$0xff]
      %v2097 = vld [vmem:[%s3 + $0x1b38] sm:$0xff]
      %v2098 = vld [vmem:[%s3 + $0x1b40] sm:$0xff]
      %v2099 = vld [vmem:[%s3 + $0x1b48] sm:$0xff]
      %v2100 = vld [vmem:[%s3 + $0x1b50] sm:$0xff]
      %v2101 = vld [vmem:[%s3 + $0x1b58] sm:$0xff]
      %v2102 = vld [vmem:[%s3 + $0x1b60] sm:$0xff]
      %v2103 = vld [vmem:[%s3 + $0x1b68] sm:$0xff]
      %v2104 = vld [vmem:[%s3 + $0x1b70] sm:$0xff]
      %v2105 = vld [vmem:[%s3 + $0x1b78] sm:$0xff]
      %v2106 = vld [vmem:[%s3 + $0x1b80] sm:$0xff]
      %v2107 = vld [vmem:[%s3 + $0x1b88] sm:$0xff]
      %v2108 = vld [vmem:[%s3 + $0x1b90] sm:$0xff]
      %v2109 = vld [vmem:[%s3 + $0x1b98] sm:$0xff]
      %v2110 = vld [vmem:[%s3 + $0x1ba0] sm:$0xff]
      %v2111 = vld [vmem:[%s3 + $0x1ba8] sm:$0xff]
      %v2112 = vld [vmem:[%s3 + $0x1bb0] sm:$0xff]
      %v2113 = vld [vmem:[%s3 + $0x1bb8] sm:$0xff]
      %v2114 = vld [vmem:[%s3 + $0x1bc0] sm:$0xff]
      %v2115 = vld [vmem:[%s3 + $0x1bc8] sm:$0xff]
      %v2116 = vld [vmem:[%s3 + $0x1bd0] sm:$0xff]
      %v2117 = vld [vmem:[%s3 + $0x1bd8] sm:$0xff]
      %v2118 = vld [vmem:[%s3 + $0x1be0] sm:$0xff]
      %v2119 = vld [vmem:[%s3 + $0x1be8] sm:$0xff]
      %v2120 = vld [vmem:[%s3 + $0x1bf0] sm:$0xff]
      %v2121 = vld [vmem:[%s3 + $0x1bf8] sm:$0xff]
      %v2122 = vld [vmem:[%s3 + $0x1c00] sm:$0xff]
      %v2123 = vld [vmem:[%s3 + $0x1c08] sm:$0xff]
      %v2124 = vld [vmem:[%s3 + $0x1c10] sm:$0xff]
      %v2125 = vld [vmem:[%s3 + $0x1c18] sm:$0xff]
      %v2126 = vld [vmem:[%s3 + $0x1c20] sm:$0xff]
      %v2127 = vld [vmem:[%s3 + $0x1c28] sm:$0xff]
      %v2128 = vld [vmem:[%s3 + $0x1c30] sm:$0xff]
      %v2129 = vld [vmem:[%s3 + $0x1c38] sm:$0xff]
      %v2130 = vld [vmem:[%s3 + $0x1c40] sm:$0xff]
      %v2131 = vld [vmem:[%s3 + $0x1c48] sm:$0xff]
      %v2132 = vld [vmem:[%s3 + $0x1c50] sm:$0xff]
      %v2133 = vld [vmem:[%s3 + $0x1c58] sm:$0xff]
      %v2134 = vld [vmem:[%s3 + $0x1c60] sm:$0xff]
      %v2135 = vld [vmem:[%s3 + $0x1c68] sm:$0xff]
      %v2136 = vld [vmem:[%s3 + $0x1c70] sm:$0xff]
      %v2137 = vld [vmem:[%s3 + $0x1c78] sm:$0xff]
      %v2138 = vld [vmem:[%s3 + $0x1c80] sm:$0xff]
      %v2139 = vld [vmem:[%s3 + $0x1c88] sm:$0xff]
      %v2140 = vld [vmem:[%s3 + $0x1c90] sm:$0xff]
      %v2141 = vld [vmem:[%s3 + $0x1c98] sm:$0xff]
      %v2142 = vld [vmem:[%s3 + $0x1ca0] sm:$0xff]
      %v2143 = vld [vmem:[%s3 + $0x1ca8] sm:$0xff]
      %v2144 = vld [vmem:[%s3 + $0x1cb0] sm:$0xff]
      %v2145 = vld [vmem:[%s3 + $0x1cb8] sm:$0xff]
      %v2146 = vld [vmem:[%s3 + $0x1cc0] sm:$0xff]
      %v2147 = vld [vmem:[%s3 + $0x1cc8] sm:$0xff]
      %v2148 = vld [vmem:[%s3 + $0x1cd0] sm:$0xff]
      %v2149 = vld [vmem:[%s3 + $0x1cd8] sm:$0xff]
      %v2150 = vld [vmem:[%s3 + $0x1ce0] sm:$0xff]
      %v2151 = vld [vmem:[%s3 + $0x1ce8] sm:$0xff]
      %v2152 = vld [vmem:[%s3 + $0x1cf0] sm:$0xff]
      %v2153 = vld [vmem:[%s3 + $0x1cf8] sm:$0xff]
      %v2154 = vld [vmem:[%s3 + $0x1d00] sm:$0xff]
      %v2155 = vld [vmem:[%s3 + $0x1d08] sm:$0xff]
      %v2156 = vld [vmem:[%s3 + $0x1d10] sm:$0xff]
      %v2157 = vld [vmem:[%s3 + $0x1d18] sm:$0xff]
      %v2158 = vld [vmem:[%s3 + $0x1d20] sm:$0xff]
      %v2159 = vld [vmem:[%s3 + $0x1d28] sm:$0xff]
      %v2160 = vld [vmem:[%s3 + $0x1d30] sm:$0xff]
      %v2161 = vld [vmem:[%s3 + $0x1d38] sm:$0xff]
      %v2162 = vld [vmem:[%s3 + $0x1d40] sm:$0xff]
      %v2163 = vld [vmem:[%s3 + $0x1d48] sm:$0xff]
      %v2164 = vld [vmem:[%s3 + $0x1d50] sm:$0xff]
      %v2165 = vld [vmem:[%s3 + $0x1d58] sm:$0xff]
      %v2166 = vld [vmem:[%s3 + $0x1d60] sm:$0xff]
      %v2167 = vld [vmem:[%s3 + $0x1d68] sm:$0xff]
      %v2168 = vld [vmem:[%s3 + $0x1d70] sm:$0xff]
      %v2169 = vld [vmem:[%s3 + $0x1d78] sm:$0xff]
      %v2170 = vld [vmem:[%s3 + $0x1d80] sm:$0xff]
      %v2171 = vld [vmem:[%s3 + $0x1d88] sm:$0xff]
      %v2172 = vld [vmem:[%s3 + $0x1d90] sm:$0xff]
      %v2173 = vld [vmem:[%s3 + $0x1d98] sm:$0xff]
      %v2174 = vld [vmem:[%s3 + $0x1da0] sm:$0xff]
      %v2175 = vld [vmem:[%s3 + $0x1da8] sm:$0xff]
      %v2176 = vld [vmem:[%s3 + $0x1db0] sm:$0xff]
      %v2177 = vld [vmem:[%s3 + $0x1db8] sm:$0xff]
      %v2178 = vld [vmem:[%s3 + $0x1dc0] sm:$0xff]
      %v2179 = vld [vmem:[%s3 + $0x1dc8] sm:$0xff]
      %v2180 = vld [vmem:[%s3 + $0x1dd0] sm:$0xff]
      %v2181 = vld [vmem:[%s3 + $0x1dd8] sm:$0xff]
      %v2182 = vld [vmem:[%s3 + $0x1de0] sm:$0xff]
      %v2183 = vld [vmem:[%s3 + $0x1de8] sm:$0xff]
      %v2184 = vld [vmem:[%s3 + $0x1df0] sm:$0xff]
      %v2185 = vld [vmem:[%s3 + $0x1df8] sm:$0xff]
      %2186 = vmatprep.subr.mxu0 %v1677
      %2187 = vmatpush1.msra.mxu0 %v1676
      %2188 = vmatprep.subr.mxu0 %v1647
      %2189 = vmatpush1.msra.mxu0 %v1646
      %2190 = vmatprep.subr.mxu0 %v1617
      %2191 = vmatpush1.msra.mxu0 %v1616
      %2192 = vmatprep.subr.mxu0 %v1587
      %2193 = vmatpush1.msra.mxu0 %v1586
      %2194 = vmatprep.subr.mxu0 %v1557
      %2195 = vmatpush1.msra.mxu0 %v1556
      %2196 = vmatprep.subr.mxu0 %v1527
      %2197 = vmatpush1.msra.mxu0 %v1526
      %2198 = vmatprep.subr.mxu0 %v1497
      %2199 = vmatpush1.msra.mxu0 %v1496
      %2200 = vmatprep.subr.mxu0 %v1467
      %2201 = vmatpush1.msra.mxu0 %v1466
      %2202 = vmatprep.subr.mxu0 %v1437
      %2203 = vmatpush1.msra.mxu0 %v1436
      %2204 = vmatprep.subr.mxu0 %v1407
      %2205 = vmatpush1.msra.mxu0 %v1406
      %2206 = vmatprep.subr.mxu0 %v1377
      %2207 = vmatpush1.msra.mxu0 %v1376
      %2208 = vmatprep.subr.mxu0 %v1347
      %2209 = vmatpush1.msra.mxu0 %v1346
      %2210 = vmatprep.subr.mxu0 %v1317
      %2211 = vmatpush1.msra.mxu0 %v1316
      %2212 = vmatprep.subr.mxu0 %v1287
      %2213 = vmatpush1.msra.mxu0 %v1286
      %2214 = vmatprep.subr.mxu0 %v1257
      %2215 = vmatpush1.msra.mxu0 %v1256
      %2216 = vmatprep.subr.mxu0 %v1227
      %2217 = vmatpush1.msra.mxu0 %v1226
      %2218 = vmatprep.subr.mxu0 %v2157
      %2219 = vmatpush2.msra.mxu0 %v2156
      %2220 = vmatprep.subr.mxu0 %v2127
      %2221 = vmatpush2.msra.mxu0 %v2126
      %2222 = vmatprep.subr.mxu0 %v2097
      %2223 = vmatpush2.msra.mxu0 %v2096
      %2224 = vmatprep.subr.mxu0 %v2067
      %2225 = vmatpush2.msra.mxu0 %v2066
      %2226 = vmatprep.subr.mxu0 %v2037
      %2227 = vmatpush2.msra.mxu0 %v2036
      %2228 = vmatprep.subr.mxu0 %v2007
      %2229 = vmatpush2.msra.mxu0 %v2006
      %2230 = vmatprep.subr.mxu0 %v1977
      %2231 = vmatpush2.msra.mxu0 %v1976
      %2232 = vmatprep.subr.mxu0 %v1947
      %2233 = vmatpush2.msra.mxu0 %v1946
      %2234 = vmatprep.subr.mxu0 %v1917
      %2235 = vmatpush2.msra.mxu0 %v1916
      %2236 = vmatprep.subr.mxu0 %v1887
      %2237 = vmatpush2.msra.mxu0 %v1886
      %2238 = vmatprep.subr.mxu0 %v1857
      %2239 = vmatpush2.msra.mxu0 %v1856
      %2240 = vmatprep.subr.mxu0 %v1827
      %2241 = vmatpush2.msra.mxu0 %v1826
      %2242 = vmatprep.subr.mxu0 %v1797
      %2243 = vmatpush2.msra.mxu0 %v1796
      %2244 = vmatprep.subr.mxu0 %v1767
      %2245 = vmatpush2.msra.mxu0 %v1766
      %2246 = vmatprep.subr.mxu0 %v1737
      %2247 = vmatpush2.msra.mxu0 %v1736
      %2248 = vmatprep.subr.mxu0 %v1707
      %2249 = vmatpush2.msra.mxu0 %v1706
      %2250 = vmatprep.mubr.f32.mxu0 %v1223
      %2251 = vmatmul.mubr.f32.gmra.mxu0 %v1222
      %v2252 = vpop.f32.mrf.mxu0
      %v2253 = vadd.f32 0.0, %v2252
      %v2254 = vpop.f32.mrf.mxu0
      %v2255 = vadd.f32 0.0, %v2254
      %2256 = vmatprep.mubr.f32.mxu0 %v1225
      %2257 = vmatmul.mubr.f32.gmra.mxu0 %v1224
      %v2258 = vpop.f32.mrf.mxu0
      %v2259 = vadd.f32 0.0, %v2258
      %v2260 = vpop.f32.mrf.mxu0
      %v2261 = vadd.f32 0.0, %v2260
      %2262 = vdwg.mxu0
      %2263 = vmatprep.subr.mxu0 %v1679
      %2264 = vmatpush1.msra.mxu0 %v1678
      %2265 = vmatprep.subr.mxu0 %v1649
      %2266 = vmatpush1.msra.mxu0 %v1648
      %2267 = vmatprep.subr.mxu0 %v1619
      %2268 = vmatpush1.msra.mxu0 %v1618
      %2269 = vmatprep.subr.mxu0 %v1589
      %2270 = vmatpush1.msra.mxu0 %v1588
      %2271 = vmatprep.subr.mxu0 %v1559
      %2272 = vmatpush1.msra.mxu0 %v1558
      %2273 = vmatprep.subr.mxu0 %v1529
      %2274 = vmatpush1.msra.mxu0 %v1528
      %2275 = vmatprep.subr.mxu0 %v1499
      %2276 = vmatpush1.msra.mxu0 %v1498
      %2277 = vmatprep.subr.mxu0 %v1469
      %2278 = vmatpush1.msra.mxu0 %v1468
      %2279 = vmatprep.subr.mxu0 %v1439
      %2280 = vmatpush1.msra.mxu0 %v1438
      %2281 = vmatprep.subr.mxu0 %v1409
      %2282 = vmatpush1.msra.mxu0 %v1408
      %2283 = vmatprep.subr.mxu0 %v1379
      %2284 = vmatpush1.msra.mxu0 %v1378
      %2285 = vmatprep.subr.mxu0 %v1349
      %2286 = vmatpush1.msra.mxu0 %v1348
      %2287 = vmatprep.subr.mxu0 %v1319
      %2288 = vmatpush1.msra.mxu0 %v1318
      %2289 = vmatprep.subr.mxu0 %v1289
      %2290 = vmatpush1.msra.mxu0 %v1288
      %2291 = vmatprep.subr.mxu0 %v1259
      %2292 = vmatpush1.msra.mxu0 %v1258
      %2293 = vmatprep.subr.mxu0 %v1229
      %2294 = vmatpush1.msra.mxu0 %v1228
      %2295 = vmatprep.subr.mxu0 %v2159
      %2296 = vmatpush2.msra.mxu0 %v2158
      %2297 = vmatprep.subr.mxu0 %v2129
      %2298 = vmatpush2.msra.mxu0 %v2128
      %2299 = vmatprep.subr.mxu0 %v2099
      %2300 = vmatpush2.msra.mxu0 %v2098
      %2301 = vmatprep.subr.mxu0 %v2069
      %2302 = vmatpush2.msra.mxu0 %v2068
      %2303 = vmatprep.subr.mxu0 %v2039
      %2304 = vmatpush2.msra.mxu0 %v2038
      %2305 = vmatprep.subr.mxu0 %v2009
      %2306 = vmatpush2.msra.mxu0 %v2008
      %2307 = vmatprep.subr.mxu0 %v1979
      %2308 = vmatpush2.msra.mxu0 %v1978
      %2309 = vmatprep.subr.mxu0 %v1949
      %2310 = vmatpush2.msra.mxu0 %v1948
      %2311 = vmatprep.subr.mxu0 %v1919
      %2312 = vmatpush2.msra.mxu0 %v1918
      %2313 = vmatprep.subr.mxu0 %v1889
      %2314 = vmatpush2.msra.mxu0 %v1888
      %2315 = vmatprep.subr.mxu0 %v1859
      %2316 = vmatpush2.msra.mxu0 %v1858
      %2317 = vmatprep.subr.mxu0 %v1829
      %2318 = vmatpush2.msra.mxu0 %v1828
      %2319 = vmatprep.subr.mxu0 %v1799
      %2320 = vmatpush2.msra.mxu0 %v1798
      %2321 = vmatprep.subr.mxu0 %v1769
      %2322 = vmatpush2.msra.mxu0 %v1768
      %2323 = vmatprep.subr.mxu0 %v1739
      %2324 = vmatpush2.msra.mxu0 %v1738
      %2325 = vmatprep.subr.mxu0 %v1709
      %2326 = vmatpush2.msra.mxu0 %v1708
      %2327 = vmatprep.mubr.f32.mxu0 %v1223
      %2328 = vmatmul.mubr.f32.gmra.mxu0 %v1222
      %v2329 = vpop.f32.mrf.mxu0
      %v2330 = vadd.f32 0.0, %v2329
      %v2331 = vpop.f32.mrf.mxu0
      %v2332 = vadd.f32 0.0, %v2331
      %2333 = vmatprep.mubr.f32.mxu0 %v1225
      %2334 = vmatmul.mubr.f32.gmra.mxu0 %v1224
      %v2335 = vpop.f32.mrf.mxu0
      %v2336 = vadd.f32 0.0, %v2335
      %v2337 = vpop.f32.mrf.mxu0
      %v2338 = vadd.f32 0.0, %v2337
      %2339 = vdwg.mxu0
      %2340 = vmatprep.subr.mxu0 %v1681
      %2341 = vmatpush1.msra.mxu0 %v1680
      %2342 = vmatprep.subr.mxu0 %v1651
      %2343 = vmatpush1.msra.mxu0 %v1650
      %2344 = vmatprep.subr.mxu0 %v1621
      %2345 = vmatpush1.msra.mxu0 %v1620
      %2346 = vmatprep.subr.mxu0 %v1591
      %2347 = vmatpush1.msra.mxu0 %v1590
      %2348 = vmatprep.subr.mxu0 %v1561
      %2349 = vmatpush1.msra.mxu0 %v1560
      %2350 = vmatprep.subr.mxu0 %v1531
      %2351 = vmatpush1.msra.mxu0 %v1530
      %2352 = vmatprep.subr.mxu0 %v1501
      %2353 = vmatpush1.msra.mxu0 %v1500
      %2354 = vmatprep.subr.mxu0 %v1471
      %2355 = vmatpush1.msra.mxu0 %v1470
      %2356 = vmatprep.subr.mxu0 %v1441
      %2357 = vmatpush1.msra.mxu0 %v1440
      %2358 = vmatprep.subr.mxu0 %v1411
      %2359 = vmatpush1.msra.mxu0 %v1410
      %2360 = vmatprep.subr.mxu0 %v1381
      %2361 = vmatpush1.msra.mxu0 %v1380
      %2362 = vmatprep.subr.mxu0 %v1351
      %2363 = vmatpush1.msra.mxu0 %v1350
      %2364 = vmatprep.subr.mxu0 %v1321
      %2365 = vmatpush1.msra.mxu0 %v1320
      %2366 = vmatprep.subr.mxu0 %v1291
      %2367 = vmatpush1.msra.mxu0 %v1290
      %2368 = vmatprep.subr.mxu0 %v1261
      %2369 = vmatpush1.msra.mxu0 %v1260
      %2370 = vmatprep.subr.mxu0 %v1231
      %2371 = vmatpush1.msra.mxu0 %v1230
      %2372 = vmatprep.subr.mxu0 %v2161
      %2373 = vmatpush2.msra.mxu0 %v2160
      %2374 = vmatprep.subr.mxu0 %v2131
      %2375 = vmatpush2.msra.mxu0 %v2130
      %2376 = vmatprep.subr.mxu0 %v2101
      %2377 = vmatpush2.msra.mxu0 %v2100
      %2378 = vmatprep.subr.mxu0 %v2071
      %2379 = vmatpush2.msra.mxu0 %v2070
      %2380 = vmatprep.subr.mxu0 %v2041
      %2381 = vmatpush2.msra.mxu0 %v2040
      %2382 = vmatprep.subr.mxu0 %v2011
      %2383 = vmatpush2.msra.mxu0 %v2010
      %2384 = vmatprep.subr.mxu0 %v1981
      %2385 = vmatpush2.msra.mxu0 %v1980
      %2386 = vmatprep.subr.mxu0 %v1951
      %2387 = vmatpush2.msra.mxu0 %v1950
      %2388 = vmatprep.subr.mxu0 %v1921
      %2389 = vmatpush2.msra.mxu0 %v1920
      %2390 = vmatprep.subr.mxu0 %v1891
      %2391 = vmatpush2.msra.mxu0 %v1890
      %2392 = vmatprep.subr.mxu0 %v1861
      %2393 = vmatpush2.msra.mxu0 %v1860
      %2394 = vmatprep.subr.mxu0 %v1831
      %2395 = vmatpush2.msra.mxu0 %v1830
      %2396 = vmatprep.subr.mxu0 %v1801
      %2397 = vmatpush2.msra.mxu0 %v1800
      %2398 = vmatprep.subr.mxu0 %v1771
      %2399 = vmatpush2.msra.mxu0 %v1770
      %2400 = vmatprep.subr.mxu0 %v1741
      %2401 = vmatpush2.msra.mxu0 %v1740
      %2402 = vmatprep.subr.mxu0 %v1711
      %2403 = vmatpush2.msra.mxu0 %v1710
      %2404 = vmatprep.mubr.f32.mxu0 %v1223
      %2405 = vmatmul.mubr.f32.gmra.mxu0 %v1222
      %v2406 = vpop.f32.mrf.mxu0
      %v2407 = vadd.f32 0.0, %v2406
      %v2408 = vpop.f32.mrf.mxu0
      %v2409 = vadd.f32 0.0, %v2408
      %2410 = vmatprep.mubr.f32.mxu0 %v1225
      %2411 = vmatmul.mubr.f32.gmra.mxu0 %v1224
      %v2412 = vpop.f32.mrf.mxu0
      %v2413 = vadd.f32 0.0, %v2412
      %v2414 = vpop.f32.mrf.mxu0
      %v2415 = vadd.f32 0.0, %v2414
      %2416 = vdwg.mxu0
      %2417 = vmatprep.subr.mxu0 %v1683
      %2418 = vmatpush1.msra.mxu0 %v1682
      %2419 = vmatprep.subr.mxu0 %v1653
      %2420 = vmatpush1.msra.mxu0 %v1652
      %2421 = vmatprep.subr.mxu0 %v1623
      %2422 = vmatpush1.msra.mxu0 %v1622
      %2423 = vmatprep.subr.mxu0 %v1593
      %2424 = vmatpush1.msra.mxu0 %v1592
      %2425 = vmatprep.subr.mxu0 %v1563
      %2426 = vmatpush1.msra.mxu0 %v1562
      %2427 = vmatprep.subr.mxu0 %v1533
      %2428 = vmatpush1.msra.mxu0 %v1532
      %2429 = vmatprep.subr.mxu0 %v1503
      %2430 = vmatpush1.msra.mxu0 %v1502
      %2431 = vmatprep.subr.mxu0 %v1473
      %2432 = vmatpush1.msra.mxu0 %v1472
      %2433 = vmatprep.subr.mxu0 %v1443
      %2434 = vmatpush1.msra.mxu0 %v1442
      %2435 = vmatprep.subr.mxu0 %v1413
      %2436 = vmatpush1.msra.mxu0 %v1412
      %2437 = vmatprep.subr.mxu0 %v1383
      %2438 = vmatpush1.msra.mxu0 %v1382
      %2439 = vmatprep.subr.mxu0 %v1353
      %2440 = vmatpush1.msra.mxu0 %v1352
      %2441 = vmatprep.subr.mxu0 %v1323
      %2442 = vmatpush1.msra.mxu0 %v1322
      %2443 = vmatprep.subr.mxu0 %v1293
      %2444 = vmatpush1.msra.mxu0 %v1292
      %2445 = vmatprep.subr.mxu0 %v1263
      %2446 = vmatpush1.msra.mxu0 %v1262
      %2447 = vmatprep.subr.mxu0 %v1233
      %2448 = vmatpush1.msra.mxu0 %v1232
      %2449 = vmatprep.subr.mxu0 %v2163
      %2450 = vmatpush2.msra.mxu0 %v2162
      %2451 = vmatprep.subr.mxu0 %v2133
      %2452 = vmatpush2.msra.mxu0 %v2132
      %2453 = vmatprep.subr.mxu0 %v2103
      %2454 = vmatpush2.msra.mxu0 %v2102
      %2455 = vmatprep.subr.mxu0 %v2073
      %2456 = vmatpush2.msra.mxu0 %v2072
      %2457 = vmatprep.subr.mxu0 %v2043
      %2458 = vmatpush2.msra.mxu0 %v2042
      %2459 = vmatprep.subr.mxu0 %v2013
      %2460 = vmatpush2.msra.mxu0 %v2012
      %2461 = vmatprep.subr.mxu0 %v1983
      %2462 = vmatpush2.msra.mxu0 %v1982
      %2463 = vmatprep.subr.mxu0 %v1953
      %2464 = vmatpush2.msra.mxu0 %v1952
      %2465 = vmatprep.subr.mxu0 %v1923
      %2466 = vmatpush2.msra.mxu0 %v1922
      %2467 = vmatprep.subr.mxu0 %v1893
      %2468 = vmatpush2.msra.mxu0 %v1892
      %2469 = vmatprep.subr.mxu0 %v1863
      %2470 = vmatpush2.msra.mxu0 %v1862
      %2471 = vmatprep.subr.mxu0 %v1833
      %2472 = vmatpush2.msra.mxu0 %v1832
      %2473 = vmatprep.subr.mxu0 %v1803
      %2474 = vmatpush2.msra.mxu0 %v1802
      %2475 = vmatprep.subr.mxu0 %v1773
      %2476 = vmatpush2.msra.mxu0 %v1772
      %2477 = vmatprep.subr.mxu0 %v1743
      %2478 = vmatpush2.msra.mxu0 %v1742
      %2479 = vmatprep.subr.mxu0 %v1713
      %2480 = vmatpush2.msra.mxu0 %v1712
      %2481 = vmatprep.mubr.f32.mxu0 %v1223
      %2482 = vmatmul.mubr.f32.gmra.mxu0 %v1222
      %v2483 = vpop.f32.mrf.mxu0
      %v2484 = vadd.f32 0.0, %v2483
      %v2485 = vpop.f32.mrf.mxu0
      %v2486 = vadd.f32 0.0, %v2485
      %2487 = vmatprep.mubr.f32.mxu0 %v1225
      %2488 = vmatmul.mubr.f32.gmra.mxu0 %v1224
      %v2489 = vpop.f32.mrf.mxu0
      %v2490 = vadd.f32 0.0, %v2489
      %v2491 = vpop.f32.mrf.mxu0
      %v2492 = vadd.f32 0.0, %v2491
      %2493 = vdwg.mxu0
      %2494 = vmatprep.subr.mxu0 %v1685
      %2495 = vmatpush1.msra.mxu0 %v1684
      %2496 = vmatprep.subr.mxu0 %v1655
      %2497 = vmatpush1.msra.mxu0 %v1654
      %2498 = vmatprep.subr.mxu0 %v1625
      %2499 = vmatpush1.msra.mxu0 %v1624
      %2500 = vmatprep.subr.mxu0 %v1595
      %2501 = vmatpush1.msra.mxu0 %v1594
      %2502 = vmatprep.subr.mxu0 %v1565
      %2503 = vmatpush1.msra.mxu0 %v1564
      %2504 = vmatprep.subr.mxu0 %v1535
      %2505 = vmatpush1.msra.mxu0 %v1534
      %2506 = vmatprep.subr.mxu0 %v1505
      %2507 = vmatpush1.msra.mxu0 %v1504
      %2508 = vmatprep.subr.mxu0 %v1475
      %2509 = vmatpush1.msra.mxu0 %v1474
      %2510 = vmatprep.subr.mxu0 %v1445
      %2511 = vmatpush1.msra.mxu0 %v1444
      %2512 = vmatprep.subr.mxu0 %v1415
      %2513 = vmatpush1.msra.mxu0 %v1414
      %2514 = vmatprep.subr.mxu0 %v1385
      %2515 = vmatpush1.msra.mxu0 %v1384
      %2516 = vmatprep.subr.mxu0 %v1355
      %2517 = vmatpush1.msra.mxu0 %v1354
      %2518 = vmatprep.subr.mxu0 %v1325
      %2519 = vmatpush1.msra.mxu0 %v1324
      %2520 = vmatprep.subr.mxu0 %v1295
      %2521 = vmatpush1.msra.mxu0 %v1294
      %2522 = vmatprep.subr.mxu0 %v1265
      %2523 = vmatpush1.msra.mxu0 %v1264
      %2524 = vmatprep.subr.mxu0 %v1235
      %2525 = vmatpush1.msra.mxu0 %v1234
      %2526 = vmatprep.subr.mxu0 %v2165
      %2527 = vmatpush2.msra.mxu0 %v2164
      %2528 = vmatprep.subr.mxu0 %v2135
      %2529 = vmatpush2.msra.mxu0 %v2134
      %2530 = vmatprep.subr.mxu0 %v2105
      %2531 = vmatpush2.msra.mxu0 %v2104
      %2532 = vmatprep.subr.mxu0 %v2075
      %2533 = vmatpush2.msra.mxu0 %v2074
      %2534 = vmatprep.subr.mxu0 %v2045
      %2535 = vmatpush2.msra.mxu0 %v2044
      %2536 = vmatprep.subr.mxu0 %v2015
      %2537 = vmatpush2.msra.mxu0 %v2014
      %2538 = vmatprep.subr.mxu0 %v1985
      %2539 = vmatpush2.msra.mxu0 %v1984
      %2540 = vmatprep.subr.mxu0 %v1955
      %2541 = vmatpush2.msra.mxu0 %v1954
      %2542 = vmatprep.subr.mxu0 %v1925
      %2543 = vmatpush2.msra.mxu0 %v1924
      %2544 = vmatprep.subr.mxu0 %v1895
      %2545 = vmatpush2.msra.mxu0 %v1894
      %2546 = vmatprep.subr.mxu0 %v1865
      %2547 = vmatpush2.msra.mxu0 %v1864
      %2548 = vmatprep.subr.mxu0 %v1835
      %2549 = vmatpush2.msra.mxu0 %v1834
      %2550 = vmatprep.subr.mxu0 %v1805
      %2551 = vmatpush2.msra.mxu0 %v1804
      %2552 = vmatprep.subr.mxu0 %v1775
      %2553 = vmatpush2.msra.mxu0 %v1774
      %2554 = vmatprep.subr.mxu0 %v1745
      %2555 = vmatpush2.msra.mxu0 %v1744
      %2556 = vmatprep.subr.mxu0 %v1715
      %2557 = vmatpush2.msra.mxu0 %v1714
      %2558 = vmatprep.mubr.f32.mxu0 %v1223
      %2559 = vmatmul.mubr.f32.gmra.mxu0 %v1222
      %v2560 = vpop.f32.mrf.mxu0
      %v2561 = vadd.f32 0.0, %v2560
      %v2562 = vpop.f32.mrf.mxu0
      %v2563 = vadd.f32 0.0, %v2562
      %2564 = vmatprep.mubr.f32.mxu0 %v1225
      %2565 = vmatmul.mubr.f32.gmra.mxu0 %v1224
      %v2566 = vpop.f32.mrf.mxu0
      %v2567 = vadd.f32 0.0, %v2566
      %v2568 = vpop.f32.mrf.mxu0
      %v2569 = vadd.f32 0.0, %v2568
      %2570 = vdwg.mxu0
      %2571 = vmatprep.subr.mxu0 %v1687
      %2572 = vmatpush1.msra.mxu0 %v1686
      %2573 = vmatprep.subr.mxu0 %v1657
      %2574 = vmatpush1.msra.mxu0 %v1656
      %2575 = vmatprep.subr.mxu0 %v1627
      %2576 = vmatpush1.msra.mxu0 %v1626
      %2577 = vmatprep.subr.mxu0 %v1597
      %2578 = vmatpush1.msra.mxu0 %v1596
      %2579 = vmatprep.subr.mxu0 %v1567
      %2580 = vmatpush1.msra.mxu0 %v1566
      %2581 = vmatprep.subr.mxu0 %v1537
      %2582 = vmatpush1.msra.mxu0 %v1536
      %2583 = vmatprep.subr.mxu0 %v1507
      %2584 = vmatpush1.msra.mxu0 %v1506
      %2585 = vmatprep.subr.mxu0 %v1477
      %2586 = vmatpush1.msra.mxu0 %v1476
      %2587 = vmatprep.subr.mxu0 %v1447
      %2588 = vmatpush1.msra.mxu0 %v1446
      %2589 = vmatprep.subr.mxu0 %v1417
      %2590 = vmatpush1.msra.mxu0 %v1416
      %2591 = vmatprep.subr.mxu0 %v1387
      %2592 = vmatpush1.msra.mxu0 %v1386
      %2593 = vmatprep.subr.mxu0 %v1357
      %2594 = vmatpush1.msra.mxu0 %v1356
      %2595 = vmatprep.subr.mxu0 %v1327
      %2596 = vmatpush1.msra.mxu0 %v1326
      %2597 = vmatprep.subr.mxu0 %v1297
      %2598 = vmatpush1.msra.mxu0 %v1296
      %2599 = vmatprep.subr.mxu0 %v1267
      %2600 = vmatpush1.msra.mxu0 %v1266
      %2601 = vmatprep.subr.mxu0 %v1237
      %2602 = vmatpush1.msra.mxu0 %v1236
      %2603 = vmatprep.subr.mxu0 %v2167
      %2604 = vmatpush2.msra.mxu0 %v2166
      %2605 = vmatprep.subr.mxu0 %v2137
      %2606 = vmatpush2.msra.mxu0 %v2136
      %2607 = vmatprep.subr.mxu0 %v2107
      %2608 = vmatpush2.msra.mxu0 %v2106
      %2609 = vmatprep.subr.mxu0 %v2077
      %2610 = vmatpush2.msra.mxu0 %v2076
      %2611 = vmatprep.subr.mxu0 %v2047
      %2612 = vmatpush2.msra.mxu0 %v2046
      %2613 = vmatprep.subr.mxu0 %v2017
      %2614 = vmatpush2.msra.mxu0 %v2016
      %2615 = vmatprep.subr.mxu0 %v1987
      %2616 = vmatpush2.msra.mxu0 %v1986
      %2617 = vmatprep.subr.mxu0 %v1957
      %2618 = vmatpush2.msra.mxu0 %v1956
      %2619 = vmatprep.subr.mxu0 %v1927
      %2620 = vmatpush2.msra.mxu0 %v1926
      %2621 = vmatprep.subr.mxu0 %v1897
      %2622 = vmatpush2.msra.mxu0 %v1896
      %2623 = vmatprep.subr.mxu0 %v1867
      %2624 = vmatpush2.msra.mxu0 %v1866
      %2625 = vmatprep.subr.mxu0 %v1837
      %2626 = vmatpush2.msra.mxu0 %v1836
      %2627 = vmatprep.subr.mxu0 %v1807
      %2628 = vmatpush2.msra.mxu0 %v1806
      %2629 = vmatprep.subr.mxu0 %v1777
      %2630 = vmatpush2.msra.mxu0 %v1776
      %2631 = vmatprep.subr.mxu0 %v1747
      %2632 = vmatpush2.msra.mxu0 %v1746
      %2633 = vmatprep.subr.mxu0 %v1717
      %2634 = vmatpush2.msra.mxu0 %v1716
      %2635 = vmatprep.mubr.f32.mxu0 %v1223
      %2636 = vmatmul.mubr.f32.gmra.mxu0 %v1222
      %v2637 = vpop.f32.mrf.mxu0
      %v2638 = vadd.f32 0.0, %v2637
      %v2639 = vpop.f32.mrf.mxu0
      %v2640 = vadd.f32 0.0, %v2639
      %2641 = vmatprep.mubr.f32.mxu0 %v1225
      %2642 = vmatmul.mubr.f32.gmra.mxu0 %v1224
      %v2643 = vpop.f32.mrf.mxu0
      %v2644 = vadd.f32 0.0, %v2643
      %v2645 = vpop.f32.mrf.mxu0
      %v2646 = vadd.f32 0.0, %v2645
      %2647 = vdwg.mxu0
      %2648 = vmatprep.subr.mxu0 %v1689
      %2649 = vmatpush1.msra.mxu0 %v1688
      %2650 = vmatprep.subr.mxu0 %v1659
      %2651 = vmatpush1.msra.mxu0 %v1658
      %2652 = vmatprep.subr.mxu0 %v1629
      %2653 = vmatpush1.msra.mxu0 %v1628
      %2654 = vmatprep.subr.mxu0 %v1599
      %2655 = vmatpush1.msra.mxu0 %v1598
      %2656 = vmatprep.subr.mxu0 %v1569
      %2657 = vmatpush1.msra.mxu0 %v1568
      %2658 = vmatprep.subr.mxu0 %v1539
      %2659 = vmatpush1.msra.mxu0 %v1538
      %2660 = vmatprep.subr.mxu0 %v1509
      %2661 = vmatpush1.msra.mxu0 %v1508
      %2662 = vmatprep.subr.mxu0 %v1479
      %2663 = vmatpush1.msra.mxu0 %v1478
      %2664 = vmatprep.subr.mxu0 %v1449
      %2665 = vmatpush1.msra.mxu0 %v1448
      %2666 = vmatprep.subr.mxu0 %v1419
      %2667 = vmatpush1.msra.mxu0 %v1418
      %2668 = vmatprep.subr.mxu0 %v1389
      %2669 = vmatpush1.msra.mxu0 %v1388
      %2670 = vmatprep.subr.mxu0 %v1359
      %2671 = vmatpush1.msra.mxu0 %v1358
      %2672 = vmatprep.subr.mxu0 %v1329
      %2673 = vmatpush1.msra.mxu0 %v1328
      %2674 = vmatprep.subr.mxu0 %v1299
      %2675 = vmatpush1.msra.mxu0 %v1298
      %2676 = vmatprep.subr.mxu0 %v1269
      %2677 = vmatpush1.msra.mxu0 %v1268
      %2678 = vmatprep.subr.mxu0 %v1239
      %2679 = vmatpush1.msra.mxu0 %v1238
      %2680 = vmatprep.subr.mxu0 %v2169
      %2681 = vmatpush2.msra.mxu0 %v2168
      %2682 = vmatprep.subr.mxu0 %v2139
      %2683 = vmatpush2.msra.mxu0 %v2138
      %2684 = vmatprep.subr.mxu0 %v2109
      %2685 = vmatpush2.msra.mxu0 %v2108
      %2686 = vmatprep.subr.mxu0 %v2079
      %2687 = vmatpush2.msra.mxu0 %v2078
      %2688 = vmatprep.subr.mxu0 %v2049
      %2689 = vmatpush2.msra.mxu0 %v2048
      %2690 = vmatprep.subr.mxu0 %v2019
      %2691 = vmatpush2.msra.mxu0 %v2018
      %2692 = vmatprep.subr.mxu0 %v1989
      %2693 = vmatpush2.msra.mxu0 %v1988
      %2694 = vmatprep.subr.mxu0 %v1959
      %2695 = vmatpush2.msra.mxu0 %v1958
      %2696 = vmatprep.subr.mxu0 %v1929
      %2697 = vmatpush2.msra.mxu0 %v1928
      %2698 = vmatprep.subr.mxu0 %v1899
      %2699 = vmatpush2.msra.mxu0 %v1898
      %2700 = vmatprep.subr.mxu0 %v1869
      %2701 = vmatpush2.msra.mxu0 %v1868
      %2702 = vmatprep.subr.mxu0 %v1839
      %2703 = vmatpush2.msra.mxu0 %v1838
      %2704 = vmatprep.subr.mxu0 %v1809
      %2705 = vmatpush2.msra.mxu0 %v1808
      %2706 = vmatprep.subr.mxu0 %v1779
      %2707 = vmatpush2.msra.mxu0 %v1778
      %2708 = vmatprep.subr.mxu0 %v1749
      %2709 = vmatpush2.msra.mxu0 %v1748
      %2710 = vmatprep.subr.mxu0 %v1719
      %2711 = vmatpush2.msra.mxu0 %v1718
      %2712 = vmatprep.mubr.f32.mxu0 %v1223
      %2713 = vmatmul.mubr.f32.gmra.mxu0 %v1222
      %v2714 = vpop.f32.mrf.mxu0
      %v2715 = vadd.f32 0.0, %v2714
      %v2716 = vpop.f32.mrf.mxu0
      %v2717 = vadd.f32 0.0, %v2716
      %2718 = vmatprep.mubr.f32.mxu0 %v1225
      %2719 = vmatmul.mubr.f32.gmra.mxu0 %v1224
      %v2720 = vpop.f32.mrf.mxu0
      %v2721 = vadd.f32 0.0, %v2720
      %v2722 = vpop.f32.mrf.mxu0
      %v2723 = vadd.f32 0.0, %v2722
      %2724 = vdwg.mxu0
      %2725 = vmatprep.subr.mxu0 %v1691
      %2726 = vmatpush1.msra.mxu0 %v1690
      %2727 = vmatprep.subr.mxu0 %v1661
      %2728 = vmatpush1.msra.mxu0 %v1660
      %2729 = vmatprep.subr.mxu0 %v1631
      %2730 = vmatpush1.msra.mxu0 %v1630
      %2731 = vmatprep.subr.mxu0 %v1601
      %2732 = vmatpush1.msra.mxu0 %v1600
      %2733 = vmatprep.subr.mxu0 %v1571
      %2734 = vmatpush1.msra.mxu0 %v1570
      %2735 = vmatprep.subr.mxu0 %v1541
      %2736 = vmatpush1.msra.mxu0 %v1540
      %2737 = vmatprep.subr.mxu0 %v1511
      %2738 = vmatpush1.msra.mxu0 %v1510
      %2739 = vmatprep.subr.mxu0 %v1481
      %2740 = vmatpush1.msra.mxu0 %v1480
      %2741 = vmatprep.subr.mxu0 %v1451
      %2742 = vmatpush1.msra.mxu0 %v1450
      %2743 = vmatprep.subr.mxu0 %v1421
      %2744 = vmatpush1.msra.mxu0 %v1420
      %2745 = vmatprep.subr.mxu0 %v1391
      %2746 = vmatpush1.msra.mxu0 %v1390
      %2747 = vmatprep.subr.mxu0 %v1361
      %2748 = vmatpush1.msra.mxu0 %v1360
      %2749 = vmatprep.subr.mxu0 %v1331
      %2750 = vmatpush1.msra.mxu0 %v1330
      %2751 = vmatprep.subr.mxu0 %v1301
      %2752 = vmatpush1.msra.mxu0 %v1300
      %2753 = vmatprep.subr.mxu0 %v1271
      %2754 = vmatpush1.msra.mxu0 %v1270
      %2755 = vmatprep.subr.mxu0 %v1241
      %2756 = vmatpush1.msra.mxu0 %v1240
      %2757 = vmatprep.subr.mxu0 %v2171
      %2758 = vmatpush2.msra.mxu0 %v2170
      %2759 = vmatprep.subr.mxu0 %v2141
      %2760 = vmatpush2.msra.mxu0 %v2140
      %2761 = vmatprep.subr.mxu0 %v2111
      %2762 = vmatpush2.msra.mxu0 %v2110
      %2763 = vmatprep.subr.mxu0 %v2081
      %2764 = vmatpush2.msra.mxu0 %v2080
      %2765 = vmatprep.subr.mxu0 %v2051
      %2766 = vmatpush2.msra.mxu0 %v2050
      %2767 = vmatprep.subr.mxu0 %v2021
      %2768 = vmatpush2.msra.mxu0 %v2020
      %2769 = vmatprep.subr.mxu0 %v1991
      %2770 = vmatpush2.msra.mxu0 %v1990
      %2771 = vmatprep.subr.mxu0 %v1961
      %2772 = vmatpush2.msra.mxu0 %v1960
      %2773 = vmatprep.subr.mxu0 %v1931
      %2774 = vmatpush2.msra.mxu0 %v1930
      %2775 = vmatprep.subr.mxu0 %v1901
      %2776 = vmatpush2.msra.mxu0 %v1900
      %2777 = vmatprep.subr.mxu0 %v1871
      %2778 = vmatpush2.msra.mxu0 %v1870
      %2779 = vmatprep.subr.mxu0 %v1841
      %2780 = vmatpush2.msra.mxu0 %v1840
      %2781 = vmatprep.subr.mxu0 %v1811
      %2782 = vmatpush2.msra.mxu0 %v1810
      %2783 = vmatprep.subr.mxu0 %v1781
      %2784 = vmatpush2.msra.mxu0 %v1780
      %2785 = vmatprep.subr.mxu0 %v1751
      %2786 = vmatpush2.msra.mxu0 %v1750
      %2787 = vmatprep.subr.mxu0 %v1721
      %2788 = vmatpush2.msra.mxu0 %v1720
      %2789 = vmatprep.mubr.f32.mxu0 %v1223
      %2790 = vmatmul.mubr.f32.gmra.mxu0 %v1222
      %v2791 = vpop.f32.mrf.mxu0
      %v2792 = vadd.f32 0.0, %v2791
      %v2793 = vpop.f32.mrf.mxu0
      %v2794 = vadd.f32 0.0, %v2793
      %2795 = vmatprep.mubr.f32.mxu0 %v1225
      %2796 = vmatmul.mubr.f32.gmra.mxu0 %v1224
      %v2797 = vpop.f32.mrf.mxu0
      %v2798 = vadd.f32 0.0, %v2797
      %v2799 = vpop.f32.mrf.mxu0
      %v2800 = vadd.f32 0.0, %v2799
      %2801 = vdwg.mxu0
      %2802 = vmatprep.subr.mxu0 %v1693
      %2803 = vmatpush1.msra.mxu0 %v1692
      %2804 = vmatprep.subr.mxu0 %v1663
      %2805 = vmatpush1.msra.mxu0 %v1662
      %2806 = vmatprep.subr.mxu0 %v1633
      %2807 = vmatpush1.msra.mxu0 %v1632
      %2808 = vmatprep.subr.mxu0 %v1603
      %2809 = vmatpush1.msra.mxu0 %v1602
      %2810 = vmatprep.subr.mxu0 %v1573
      %2811 = vmatpush1.msra.mxu0 %v1572
      %2812 = vmatprep.subr.mxu0 %v1543
      %2813 = vmatpush1.msra.mxu0 %v1542
      %2814 = vmatprep.subr.mxu0 %v1513
      %2815 = vmatpush1.msra.mxu0 %v1512
      %2816 = vmatprep.subr.mxu0 %v1483
      %2817 = vmatpush1.msra.mxu0 %v1482
      %2818 = vmatprep.subr.mxu0 %v1453
      %2819 = vmatpush1.msra.mxu0 %v1452
      %2820 = vmatprep.subr.mxu0 %v1423
      %2821 = vmatpush1.msra.mxu0 %v1422
      %2822 = vmatprep.subr.mxu0 %v1393
      %2823 = vmatpush1.msra.mxu0 %v1392
      %2824 = vmatprep.subr.mxu0 %v1363
      %2825 = vmatpush1.msra.mxu0 %v1362
      %2826 = vmatprep.subr.mxu0 %v1333
      %2827 = vmatpush1.msra.mxu0 %v1332
      %2828 = vmatprep.subr.mxu0 %v1303
      %2829 = vmatpush1.msra.mxu0 %v1302
      %2830 = vmatprep.subr.mxu0 %v1273
      %2831 = vmatpush1.msra.mxu0 %v1272
      %2832 = vmatprep.subr.mxu0 %v1243
      %2833 = vmatpush1.msra.mxu0 %v1242
      %2834 = vmatprep.subr.mxu0 %v2173
      %2835 = vmatpush2.msra.mxu0 %v2172
      %2836 = vmatprep.subr.mxu0 %v2143
      %2837 = vmatpush2.msra.mxu0 %v2142
      %2838 = vmatprep.subr.mxu0 %v2113
      %2839 = vmatpush2.msra.mxu0 %v2112
      %2840 = vmatprep.subr.mxu0 %v2083
      %2841 = vmatpush2.msra.mxu0 %v2082
      %2842 = vmatprep.subr.mxu0 %v2053
      %2843 = vmatpush2.msra.mxu0 %v2052
      %2844 = vmatprep.subr.mxu0 %v2023
      %2845 = vmatpush2.msra.mxu0 %v2022
      %2846 = vmatprep.subr.mxu0 %v1993
      %2847 = vmatpush2.msra.mxu0 %v1992
      %2848 = vmatprep.subr.mxu0 %v1963
      %2849 = vmatpush2.msra.mxu0 %v1962
      %2850 = vmatprep.subr.mxu0 %v1933
      %2851 = vmatpush2.msra.mxu0 %v1932
      %2852 = vmatprep.subr.mxu0 %v1903
      %2853 = vmatpush2.msra.mxu0 %v1902
      %2854 = vmatprep.subr.mxu0 %v1873
      %2855 = vmatpush2.msra.mxu0 %v1872
      %2856 = vmatprep.subr.mxu0 %v1843
      %2857 = vmatpush2.msra.mxu0 %v1842
      %2858 = vmatprep.subr.mxu0 %v1813
      %2859 = vmatpush2.msra.mxu0 %v1812
      %2860 = vmatprep.subr.mxu0 %v1783
      %2861 = vmatpush2.msra.mxu0 %v1782
      %2862 = vmatprep.subr.mxu0 %v1753
      %2863 = vmatpush2.msra.mxu0 %v1752
      %2864 = vmatprep.subr.mxu0 %v1723
      %2865 = vmatpush2.msra.mxu0 %v1722
      %2866 = vmatprep.mubr.f32.mxu0 %v1223
      %2867 = vmatmul.mubr.f32.gmra.mxu0 %v1222
      %v2868 = vpop.f32.mrf.mxu0
      %v2869 = vadd.f32 0.0, %v2868
      %v2870 = vpop.f32.mrf.mxu0
      %v2871 = vadd.f32 0.0, %v2870
      %2872 = vmatprep.mubr.f32.mxu0 %v1225
      %2873 = vmatmul.mubr.f32.gmra.mxu0 %v1224
      %v2874 = vpop.f32.mrf.mxu0
      %v2875 = vadd.f32 0.0, %v2874
      %v2876 = vpop.f32.mrf.mxu0
      %v2877 = vadd.f32 0.0, %v2876
      %2878 = vdwg.mxu0
      %2879 = vmatprep.subr.mxu0 %v1695
      %2880 = vmatpush1.msra.mxu0 %v1694
      %2881 = vmatprep.subr.mxu0 %v1665
      %2882 = vmatpush1.msra.mxu0 %v1664
      %2883 = vmatprep.subr.mxu0 %v1635
      %2884 = vmatpush1.msra.mxu0 %v1634
      %2885 = vmatprep.subr.mxu0 %v1605
      %2886 = vmatpush1.msra.mxu0 %v1604
      %2887 = vmatprep.subr.mxu0 %v1575
      %2888 = vmatpush1.msra.mxu0 %v1574
      %2889 = vmatprep.subr.mxu0 %v1545
      %2890 = vmatpush1.msra.mxu0 %v1544
      %2891 = vmatprep.subr.mxu0 %v1515
      %2892 = vmatpush1.msra.mxu0 %v1514
      %2893 = vmatprep.subr.mxu0 %v1485
      %2894 = vmatpush1.msra.mxu0 %v1484
      %2895 = vmatprep.subr.mxu0 %v1455
      %2896 = vmatpush1.msra.mxu0 %v1454
      %2897 = vmatprep.subr.mxu0 %v1425
      %2898 = vmatpush1.msra.mxu0 %v1424
      %2899 = vmatprep.subr.mxu0 %v1395
      %2900 = vmatpush1.msra.mxu0 %v1394
      %2901 = vmatprep.subr.mxu0 %v1365
      %2902 = vmatpush1.msra.mxu0 %v1364
      %2903 = vmatprep.subr.mxu0 %v1335
      %2904 = vmatpush1.msra.mxu0 %v1334
      %2905 = vmatprep.subr.mxu0 %v1305
      %2906 = vmatpush1.msra.mxu0 %v1304
      %2907 = vmatprep.subr.mxu0 %v1275
      %2908 = vmatpush1.msra.mxu0 %v1274
      %2909 = vmatprep.subr.mxu0 %v1245
      %2910 = vmatpush1.msra.mxu0 %v1244
      %2911 = vmatprep.subr.mxu0 %v2175
      %2912 = vmatpush2.msra.mxu0 %v2174
      %2913 = vmatprep.subr.mxu0 %v2145
      %2914 = vmatpush2.msra.mxu0 %v2144
      %2915 = vmatprep.subr.mxu0 %v2115
      %2916 = vmatpush2.msra.mxu0 %v2114
      %2917 = vmatprep.subr.mxu0 %v2085
      %2918 = vmatpush2.msra.mxu0 %v2084
      %2919 = vmatprep.subr.mxu0 %v2055
      %2920 = vmatpush2.msra.mxu0 %v2054
      %2921 = vmatprep.subr.mxu0 %v2025
      %2922 = vmatpush2.msra.mxu0 %v2024
      %2923 = vmatprep.subr.mxu0 %v1995
      %2924 = vmatpush2.msra.mxu0 %v1994
      %2925 = vmatprep.subr.mxu0 %v1965
      %2926 = vmatpush2.msra.mxu0 %v1964
      %2927 = vmatprep.subr.mxu0 %v1935
      %2928 = vmatpush2.msra.mxu0 %v1934
      %2929 = vmatprep.subr.mxu0 %v1905
      %2930 = vmatpush2.msra.mxu0 %v1904
      %2931 = vmatprep.subr.mxu0 %v1875
      %2932 = vmatpush2.msra.mxu0 %v1874
      %2933 = vmatprep.subr.mxu0 %v1845
      %2934 = vmatpush2.msra.mxu0 %v1844
      %2935 = vmatprep.subr.mxu0 %v1815
      %2936 = vmatpush2.msra.mxu0 %v1814
      %2937 = vmatprep.subr.mxu0 %v1785
      %2938 = vmatpush2.msra.mxu0 %v1784
      %2939 = vmatprep.subr.mxu0 %v1755
      %2940 = vmatpush2.msra.mxu0 %v1754
      %2941 = vmatprep.subr.mxu0 %v1725
      %2942 = vmatpush2.msra.mxu0 %v1724
      %2943 = vmatprep.mubr.f32.mxu0 %v1223
      %2944 = vmatmul.mubr.f32.gmra.mxu0 %v1222
      %v2945 = vpop.f32.mrf.mxu0
      %v2946 = vadd.f32 0.0, %v2945
      %v2947 = vpop.f32.mrf.mxu0
      %v2948 = vadd.f32 0.0, %v2947
      %2949 = vmatprep.mubr.f32.mxu0 %v1225
      %2950 = vmatmul.mubr.f32.gmra.mxu0 %v1224
      %v2951 = vpop.f32.mrf.mxu0
      %v2952 = vadd.f32 0.0, %v2951
      %v2953 = vpop.f32.mrf.mxu0
      %v2954 = vadd.f32 0.0, %v2953
      %2955 = vdwg.mxu0
      %2956 = vmatprep.subr.mxu0 %v1697
      %2957 = vmatpush1.msra.mxu0 %v1696
      %2958 = vmatprep.subr.mxu0 %v1667
      %2959 = vmatpush1.msra.mxu0 %v1666
      %2960 = vmatprep.subr.mxu0 %v1637
      %2961 = vmatpush1.msra.mxu0 %v1636
      %2962 = vmatprep.subr.mxu0 %v1607
      %2963 = vmatpush1.msra.mxu0 %v1606
      %2964 = vmatprep.subr.mxu0 %v1577
      %2965 = vmatpush1.msra.mxu0 %v1576
      %2966 = vmatprep.subr.mxu0 %v1547
      %2967 = vmatpush1.msra.mxu0 %v1546
      %2968 = vmatprep.subr.mxu0 %v1517
      %2969 = vmatpush1.msra.mxu0 %v1516
      %2970 = vmatprep.subr.mxu0 %v1487
      %2971 = vmatpush1.msra.mxu0 %v1486
      %2972 = vmatprep.subr.mxu0 %v1457
      %2973 = vmatpush1.msra.mxu0 %v1456
      %2974 = vmatprep.subr.mxu0 %v1427
      %2975 = vmatpush1.msra.mxu0 %v1426
      %2976 = vmatprep.subr.mxu0 %v1397
      %2977 = vmatpush1.msra.mxu0 %v1396
      %2978 = vmatprep.subr.mxu0 %v1367
      %2979 = vmatpush1.msra.mxu0 %v1366
      %2980 = vmatprep.subr.mxu0 %v1337
      %2981 = vmatpush1.msra.mxu0 %v1336
      %2982 = vmatprep.subr.mxu0 %v1307
      %2983 = vmatpush1.msra.mxu0 %v1306
      %2984 = vmatprep.subr.mxu0 %v1277
      %2985 = vmatpush1.msra.mxu0 %v1276
      %2986 = vmatprep.subr.mxu0 %v1247
      %2987 = vmatpush1.msra.mxu0 %v1246
      %2988 = vmatprep.subr.mxu0 %v2177
      %2989 = vmatpush2.msra.mxu0 %v2176
      %2990 = vmatprep.subr.mxu0 %v2147
      %2991 = vmatpush2.msra.mxu0 %v2146
      %2992 = vmatprep.subr.mxu0 %v2117
      %2993 = vmatpush2.msra.mxu0 %v2116
      %2994 = vmatprep.subr.mxu0 %v2087
      %2995 = vmatpush2.msra.mxu0 %v2086
      %2996 = vmatprep.subr.mxu0 %v2057
      %2997 = vmatpush2.msra.mxu0 %v2056
      %2998 = vmatprep.subr.mxu0 %v2027
      %2999 = vmatpush2.msra.mxu0 %v2026
      %3000 = vmatprep.subr.mxu0 %v1997
      %3001 = vmatpush2.msra.mxu0 %v1996
      %3002 = vmatprep.subr.mxu0 %v1967
      %3003 = vmatpush2.msra.mxu0 %v1966
      %3004 = vmatprep.subr.mxu0 %v1937
      %3005 = vmatpush2.msra.mxu0 %v1936
      %3006 = vmatprep.subr.mxu0 %v1907
      %3007 = vmatpush2.msra.mxu0 %v1906
      %3008 = vmatprep.subr.mxu0 %v1877
      %3009 = vmatpush2.msra.mxu0 %v1876
      %3010 = vmatprep.subr.mxu0 %v1847
      %3011 = vmatpush2.msra.mxu0 %v1846
      %3012 = vmatprep.subr.mxu0 %v1817
      %3013 = vmatpush2.msra.mxu0 %v1816
      %3014 = vmatprep.subr.mxu0 %v1787
      %3015 = vmatpush2.msra.mxu0 %v1786
      %3016 = vmatprep.subr.mxu0 %v1757
      %3017 = vmatpush2.msra.mxu0 %v1756
      %3018 = vmatprep.subr.mxu0 %v1727
      %3019 = vmatpush2.msra.mxu0 %v1726
      %3020 = vmatprep.mubr.f32.mxu0 %v1223
      %3021 = vmatmul.mubr.f32.gmra.mxu0 %v1222
      %v3022 = vpop.f32.mrf.mxu0
      %v3023 = vadd.f32 0.0, %v3022
      %v3024 = vpop.f32.mrf.mxu0
      %v3025 = vadd.f32 0.0, %v3024
      %3026 = vmatprep.mubr.f32.mxu0 %v1225
      %3027 = vmatmul.mubr.f32.gmra.mxu0 %v1224
      %v3028 = vpop.f32.mrf.mxu0
      %v3029 = vadd.f32 0.0, %v3028
      %v3030 = vpop.f32.mrf.mxu0
      %v3031 = vadd.f32 0.0, %v3030
      %3032 = vdwg.mxu0
      %3033 = vmatprep.subr.mxu0 %v1699
      %3034 = vmatpush1.msra.mxu0 %v1698
      %3035 = vmatprep.subr.mxu0 %v1669
      %3036 = vmatpush1.msra.mxu0 %v1668
      %3037 = vmatprep.subr.mxu0 %v1639
      %3038 = vmatpush1.msra.mxu0 %v1638
      %3039 = vmatprep.subr.mxu0 %v1609
      %3040 = vmatpush1.msra.mxu0 %v1608
      %3041 = vmatprep.subr.mxu0 %v1579
      %3042 = vmatpush1.msra.mxu0 %v1578
      %3043 = vmatprep.subr.mxu0 %v1549
      %3044 = vmatpush1.msra.mxu0 %v1548
      %3045 = vmatprep.subr.mxu0 %v1519
      %3046 = vmatpush1.msra.mxu0 %v1518
      %3047 = vmatprep.subr.mxu0 %v1489
      %3048 = vmatpush1.msra.mxu0 %v1488
      %3049 = vmatprep.subr.mxu0 %v1459
      %3050 = vmatpush1.msra.mxu0 %v1458
      %3051 = vmatprep.subr.mxu0 %v1429
      %3052 = vmatpush1.msra.mxu0 %v1428
      %3053 = vmatprep.subr.mxu0 %v1399
      %3054 = vmatpush1.msra.mxu0 %v1398
      %3055 = vmatprep.subr.mxu0 %v1369
      %3056 = vmatpush1.msra.mxu0 %v1368
      %3057 = vmatprep.subr.mxu0 %v1339
      %3058 = vmatpush1.msra.mxu0 %v1338
      %3059 = vmatprep.subr.mxu0 %v1309
      %3060 = vmatpush1.msra.mxu0 %v1308
      %3061 = vmatprep.subr.mxu0 %v1279
      %3062 = vmatpush1.msra.mxu0 %v1278
      %3063 = vmatprep.subr.mxu0 %v1249
      %3064 = vmatpush1.msra.mxu0 %v1248
      %3065 = vmatprep.subr.mxu0 %v2179
      %3066 = vmatpush2.msra.mxu0 %v2178
      %3067 = vmatprep.subr.mxu0 %v2149
      %3068 = vmatpush2.msra.mxu0 %v2148
      %3069 = vmatprep.subr.mxu0 %v2119
      %3070 = vmatpush2.msra.mxu0 %v2118
      %3071 = vmatprep.subr.mxu0 %v2089
      %3072 = vmatpush2.msra.mxu0 %v2088
      %3073 = vmatprep.subr.mxu0 %v2059
      %3074 = vmatpush2.msra.mxu0 %v2058
      %3075 = vmatprep.subr.mxu0 %v2029
      %3076 = vmatpush2.msra.mxu0 %v2028
      %3077 = vmatprep.subr.mxu0 %v1999
      %3078 = vmatpush2.msra.mxu0 %v1998
      %3079 = vmatprep.subr.mxu0 %v1969
      %3080 = vmatpush2.msra.mxu0 %v1968
      %3081 = vmatprep.subr.mxu0 %v1939
      %3082 = vmatpush2.msra.mxu0 %v1938
      %3083 = vmatprep.subr.mxu0 %v1909
      %3084 = vmatpush2.msra.mxu0 %v1908
      %3085 = vmatprep.subr.mxu0 %v1879
      %3086 = vmatpush2.msra.mxu0 %v1878
      %3087 = vmatprep.subr.mxu0 %v1849
      %3088 = vmatpush2.msra.mxu0 %v1848
      %3089 = vmatprep.subr.mxu0 %v1819
      %3090 = vmatpush2.msra.mxu0 %v1818
      %3091 = vmatprep.subr.mxu0 %v1789
      %3092 = vmatpush2.msra.mxu0 %v1788
      %3093 = vmatprep.subr.mxu0 %v1759
      %3094 = vmatpush2.msra.mxu0 %v1758
      %3095 = vmatprep.subr.mxu0 %v1729
      %3096 = vmatpush2.msra.mxu0 %v1728
      %3097 = vmatprep.mubr.f32.mxu0 %v1223
      %3098 = vmatmul.mubr.f32.gmra.mxu0 %v1222
      %v3099 = vpop.f32.mrf.mxu0
      %v3100 = vadd.f32 0.0, %v3099
      %v3101 = vpop.f32.mrf.mxu0
      %v3102 = vadd.f32 0.0, %v3101
      %3103 = vmatprep.mubr.f32.mxu0 %v1225
      %3104 = vmatmul.mubr.f32.gmra.mxu0 %v1224
      %v3105 = vpop.f32.mrf.mxu0
      %v3106 = vadd.f32 0.0, %v3105
      %v3107 = vpop.f32.mrf.mxu0
      %v3108 = vadd.f32 0.0, %v3107
      %3109 = vdwg.mxu0
      %3110 = vmatprep.subr.mxu0 %v1701
      %3111 = vmatpush1.msra.mxu0 %v1700
      %3112 = vmatprep.subr.mxu0 %v1671
      %3113 = vmatpush1.msra.mxu0 %v1670
      %3114 = vmatprep.subr.mxu0 %v1641
      %3115 = vmatpush1.msra.mxu0 %v1640
      %3116 = vmatprep.subr.mxu0 %v1611
      %3117 = vmatpush1.msra.mxu0 %v1610
      %3118 = vmatprep.subr.mxu0 %v1581
      %3119 = vmatpush1.msra.mxu0 %v1580
      %3120 = vmatprep.subr.mxu0 %v1551
      %3121 = vmatpush1.msra.mxu0 %v1550
      %3122 = vmatprep.subr.mxu0 %v1521
      %3123 = vmatpush1.msra.mxu0 %v1520
      %3124 = vmatprep.subr.mxu0 %v1491
      %3125 = vmatpush1.msra.mxu0 %v1490
      %3126 = vmatprep.subr.mxu0 %v1461
      %3127 = vmatpush1.msra.mxu0 %v1460
      %3128 = vmatprep.subr.mxu0 %v1431
      %3129 = vmatpush1.msra.mxu0 %v1430
      %3130 = vmatprep.subr.mxu0 %v1401
      %3131 = vmatpush1.msra.mxu0 %v1400
      %3132 = vmatprep.subr.mxu0 %v1371
      %3133 = vmatpush1.msra.mxu0 %v1370
      %3134 = vmatprep.subr.mxu0 %v1341
      %3135 = vmatpush1.msra.mxu0 %v1340
      %3136 = vmatprep.subr.mxu0 %v1311
      %3137 = vmatpush1.msra.mxu0 %v1310
      %3138 = vmatprep.subr.mxu0 %v1281
      %3139 = vmatpush1.msra.mxu0 %v1280
      %3140 = vmatprep.subr.mxu0 %v1251
      %3141 = vmatpush1.msra.mxu0 %v1250
      %3142 = vmatprep.subr.mxu0 %v2181
      %3143 = vmatpush2.msra.mxu0 %v2180
      %3144 = vmatprep.subr.mxu0 %v2151
      %3145 = vmatpush2.msra.mxu0 %v2150
      %3146 = vmatprep.subr.mxu0 %v2121
      %3147 = vmatpush2.msra.mxu0 %v2120
      %3148 = vmatprep.subr.mxu0 %v2091
      %3149 = vmatpush2.msra.mxu0 %v2090
      %3150 = vmatprep.subr.mxu0 %v2061
      %3151 = vmatpush2.msra.mxu0 %v2060
      %3152 = vmatprep.subr.mxu0 %v2031
      %3153 = vmatpush2.msra.mxu0 %v2030
      %3154 = vmatprep.subr.mxu0 %v2001
      %3155 = vmatpush2.msra.mxu0 %v2000
      %3156 = vmatprep.subr.mxu0 %v1971
      %3157 = vmatpush2.msra.mxu0 %v1970
      %3158 = vmatprep.subr.mxu0 %v1941
      %3159 = vmatpush2.msra.mxu0 %v1940
      %3160 = vmatprep.subr.mxu0 %v1911
      %3161 = vmatpush2.msra.mxu0 %v1910
      %3162 = vmatprep.subr.mxu0 %v1881
      %3163 = vmatpush2.msra.mxu0 %v1880
      %3164 = vmatprep.subr.mxu0 %v1851
      %3165 = vmatpush2.msra.mxu0 %v1850
      %3166 = vmatprep.subr.mxu0 %v1821
      %3167 = vmatpush2.msra.mxu0 %v1820
      %3168 = vmatprep.subr.mxu0 %v1791
      %3169 = vmatpush2.msra.mxu0 %v1790
      %3170 = vmatprep.subr.mxu0 %v1761
      %3171 = vmatpush2.msra.mxu0 %v1760
      %3172 = vmatprep.subr.mxu0 %v1731
      %3173 = vmatpush2.msra.mxu0 %v1730
      %3174 = vmatprep.mubr.f32.mxu0 %v1223
      %3175 = vmatmul.mubr.f32.gmra.mxu0 %v1222
      %v3176 = vpop.f32.mrf.mxu0
      %v3177 = vadd.f32 0.0, %v3176
      %v3178 = vpop.f32.mrf.mxu0
      %v3179 = vadd.f32 0.0, %v3178
      %3180 = vmatprep.mubr.f32.mxu0 %v1225
      %3181 = vmatmul.mubr.f32.gmra.mxu0 %v1224
      %v3182 = vpop.f32.mrf.mxu0
      %v3183 = vadd.f32 0.0, %v3182
      %v3184 = vpop.f32.mrf.mxu0
      %v3185 = vadd.f32 0.0, %v3184
      %3186 = vdwg.mxu0
      %3187 = vmatprep.subr.mxu0 %v1703
      %3188 = vmatpush1.msra.mxu0 %v1702
      %3189 = vmatprep.subr.mxu0 %v1673
      %3190 = vmatpush1.msra.mxu0 %v1672
      %3191 = vmatprep.subr.mxu0 %v1643
      %3192 = vmatpush1.msra.mxu0 %v1642
      %3193 = vmatprep.subr.mxu0 %v1613
      %3194 = vmatpush1.msra.mxu0 %v1612
      %3195 = vmatprep.subr.mxu0 %v1583
      %3196 = vmatpush1.msra.mxu0 %v1582
      %3197 = vmatprep.subr.mxu0 %v1553
      %3198 = vmatpush1.msra.mxu0 %v1552
      %3199 = vmatprep.subr.mxu0 %v1523
      %3200 = vmatpush1.msra.mxu0 %v1522
      %3201 = vmatprep.subr.mxu0 %v1493
      %3202 = vmatpush1.msra.mxu0 %v1492
      %3203 = vmatprep.subr.mxu0 %v1463
      %3204 = vmatpush1.msra.mxu0 %v1462
      %3205 = vmatprep.subr.mxu0 %v1433
      %3206 = vmatpush1.msra.mxu0 %v1432
      %3207 = vmatprep.subr.mxu0 %v1403
      %3208 = vmatpush1.msra.mxu0 %v1402
      %3209 = vmatprep.subr.mxu0 %v1373
      %3210 = vmatpush1.msra.mxu0 %v1372
      %3211 = vmatprep.subr.mxu0 %v1343
      %3212 = vmatpush1.msra.mxu0 %v1342
      %3213 = vmatprep.subr.mxu0 %v1313
      %3214 = vmatpush1.msra.mxu0 %v1312
      %3215 = vmatprep.subr.mxu0 %v1283
      %3216 = vmatpush1.msra.mxu0 %v1282
      %3217 = vmatprep.subr.mxu0 %v1253
      %3218 = vmatpush1.msra.mxu0 %v1252
      %3219 = vmatprep.subr.mxu0 %v2183
      %3220 = vmatpush2.msra.mxu0 %v2182
      %3221 = vmatprep.subr.mxu0 %v2153
      %3222 = vmatpush2.msra.mxu0 %v2152
      %3223 = vmatprep.subr.mxu0 %v2123
      %3224 = vmatpush2.msra.mxu0 %v2122
      %3225 = vmatprep.subr.mxu0 %v2093
      %3226 = vmatpush2.msra.mxu0 %v2092
      %3227 = vmatprep.subr.mxu0 %v2063
      %3228 = vmatpush2.msra.mxu0 %v2062
      %3229 = vmatprep.subr.mxu0 %v2033
      %3230 = vmatpush2.msra.mxu0 %v2032
      %3231 = vmatprep.subr.mxu0 %v2003
      %3232 = vmatpush2.msra.mxu0 %v2002
      %3233 = vmatprep.subr.mxu0 %v1973
      %3234 = vmatpush2.msra.mxu0 %v1972
      %3235 = vmatprep.subr.mxu0 %v1943
      %3236 = vmatpush2.msra.mxu0 %v1942
      %3237 = vmatprep.subr.mxu0 %v1913
      %3238 = vmatpush2.msra.mxu0 %v1912
      %3239 = vmatprep.subr.mxu0 %v1883
      %3240 = vmatpush2.msra.mxu0 %v1882
      %3241 = vmatprep.subr.mxu0 %v1853
      %3242 = vmatpush2.msra.mxu0 %v1852
      %3243 = vmatprep.subr.mxu0 %v1823
      %3244 = vmatpush2.msra.mxu0 %v1822
      %3245 = vmatprep.subr.mxu0 %v1793
      %3246 = vmatpush2.msra.mxu0 %v1792
      %3247 = vmatprep.subr.mxu0 %v1763
      %3248 = vmatpush2.msra.mxu0 %v1762
      %3249 = vmatprep.subr.mxu0 %v1733
      %3250 = vmatpush2.msra.mxu0 %v1732
      %3251 = vmatprep.mubr.f32.mxu0 %v1223
      %3252 = vmatmul.mubr.f32.gmra.mxu0 %v1222
      %v3253 = vpop.f32.mrf.mxu0
      %v3254 = vadd.f32 0.0, %v3253
      %v3255 = vpop.f32.mrf.mxu0
      %v3256 = vadd.f32 0.0, %v3255
      %3257 = vmatprep.mubr.f32.mxu0 %v1225
      %3258 = vmatmul.mubr.f32.gmra.mxu0 %v1224
      %v3259 = vpop.f32.mrf.mxu0
      %v3260 = vadd.f32 0.0, %v3259
      %v3261 = vpop.f32.mrf.mxu0
      %v3262 = vadd.f32 0.0, %v3261
      %3263 = vdwg.mxu0
      %3264 = vmatprep.subr.mxu0 %v1705
      %3265 = vmatpush1.msra.mxu0 %v1704
      %3266 = vmatprep.subr.mxu0 %v1675
      %3267 = vmatpush1.msra.mxu0 %v1674
      %3268 = vmatprep.subr.mxu0 %v1645
      %3269 = vmatpush1.msra.mxu0 %v1644
      %3270 = vmatprep.subr.mxu0 %v1615
      %3271 = vmatpush1.msra.mxu0 %v1614
      %3272 = vmatprep.subr.mxu0 %v1585
      %3273 = vmatpush1.msra.mxu0 %v1584
      %3274 = vmatprep.subr.mxu0 %v1555
      %3275 = vmatpush1.msra.mxu0 %v1554
      %3276 = vmatprep.subr.mxu0 %v1525
      %3277 = vmatpush1.msra.mxu0 %v1524
      %3278 = vmatprep.subr.mxu0 %v1495
      %3279 = vmatpush1.msra.mxu0 %v1494
      %3280 = vmatprep.subr.mxu0 %v1465
      %3281 = vmatpush1.msra.mxu0 %v1464
      %3282 = vmatprep.subr.mxu0 %v1435
      %3283 = vmatpush1.msra.mxu0 %v1434
      %3284 = vmatprep.subr.mxu0 %v1405
      %3285 = vmatpush1.msra.mxu0 %v1404
      %3286 = vmatprep.subr.mxu0 %v1375
      %3287 = vmatpush1.msra.mxu0 %v1374
      %3288 = vmatprep.subr.mxu0 %v1345
      %3289 = vmatpush1.msra.mxu0 %v1344
      %3290 = vmatprep.subr.mxu0 %v1315
      %3291 = vmatpush1.msra.mxu0 %v1314
      %3292 = vmatprep.subr.mxu0 %v1285
      %3293 = vmatpush1.msra.mxu0 %v1284
      %3294 = vmatprep.subr.mxu0 %v1255
      %3295 = vmatpush1.msra.mxu0 %v1254
      %3296 = vmatprep.subr.mxu0 %v2185
      %3297 = vmatpush2.msra.mxu0 %v2184
      %3298 = vmatprep.subr.mxu0 %v2155
      %3299 = vmatpush2.msra.mxu0 %v2154
      %3300 = vmatprep.subr.mxu0 %v2125
      %3301 = vmatpush2.msra.mxu0 %v2124
      %3302 = vmatprep.subr.mxu0 %v2095
      %3303 = vmatpush2.msra.mxu0 %v2094
      %3304 = vmatprep.subr.mxu0 %v2065
      %3305 = vmatpush2.msra.mxu0 %v2064
      %3306 = vmatprep.subr.mxu0 %v2035
      %3307 = vmatpush2.msra.mxu0 %v2034
      %3308 = vmatprep.subr.mxu0 %v2005
      %3309 = vmatpush2.msra.mxu0 %v2004
      %3310 = vmatprep.subr.mxu0 %v1975
      %3311 = vmatpush2.msra.mxu0 %v1974
      %3312 = vmatprep.subr.mxu0 %v1945
      %3313 = vmatpush2.msra.mxu0 %v1944
      %3314 = vmatprep.subr.mxu0 %v1915
      %3315 = vmatpush2.msra.mxu0 %v1914
      %3316 = vmatprep.subr.mxu0 %v1885
      %3317 = vmatpush2.msra.mxu0 %v1884
      %3318 = vmatprep.subr.mxu0 %v1855
      %3319 = vmatpush2.msra.mxu0 %v1854
      %3320 = vmatprep.subr.mxu0 %v1825
      %3321 = vmatpush2.msra.mxu0 %v1824
      %3322 = vmatprep.subr.mxu0 %v1795
      %3323 = vmatpush2.msra.mxu0 %v1794
      %3324 = vmatprep.subr.mxu0 %v1765
      %3325 = vmatpush2.msra.mxu0 %v1764
      %3326 = vmatprep.subr.mxu0 %v1735
      %3327 = vmatpush2.msra.mxu0 %v1734
      %3328 = vmatprep.mubr.f32.mxu0 %v1223
      %3329 = vmatmul.mubr.f32.gmra.mxu0 %v1222
      %v3330 = vpop.f32.mrf.mxu0
      %v3331 = vadd.f32 0.0, %v3330
      %v3332 = vpop.f32.mrf.mxu0
      %v3333 = vadd.f32 0.0, %v3332
      %3334 = vmatprep.mubr.f32.mxu0 %v1225
      %3335 = vmatmul.mubr.f32.gmra.mxu0 %v1224
      %v3336 = vpop.f32.mrf.mxu0
      %v3337 = vadd.f32 0.0, %v3336
      %v3338 = vpop.f32.mrf.mxu0
      %v3339 = vadd.f32 0.0, %v3338
      %3340 = vdwg.mxu0
      %3341 = vmatprep.subr.mxu0 %v713
      %3342 = vmatpush1.msra.mxu0 %v712
      %3343 = vmatprep.subr.mxu0 %v683
      %3344 = vmatpush1.msra.mxu0 %v682
      %3345 = vmatprep.subr.mxu0 %v653
      %3346 = vmatpush1.msra.mxu0 %v652
      %3347 = vmatprep.subr.mxu0 %v623
      %3348 = vmatpush1.msra.mxu0 %v622
      %3349 = vmatprep.subr.mxu0 %v593
      %3350 = vmatpush1.msra.mxu0 %v592
      %3351 = vmatprep.subr.mxu0 %v563
      %3352 = vmatpush1.msra.mxu0 %v562
      %3353 = vmatprep.subr.mxu0 %v533
      %3354 = vmatpush1.msra.mxu0 %v532
      %3355 = vmatprep.subr.mxu0 %v503
      %3356 = vmatpush1.msra.mxu0 %v502
      %3357 = vmatprep.subr.mxu0 %v473
      %3358 = vmatpush1.msra.mxu0 %v472
      %3359 = vmatprep.subr.mxu0 %v443
      %3360 = vmatpush1.msra.mxu0 %v442
      %3361 = vmatprep.subr.mxu0 %v413
      %3362 = vmatpush1.msra.mxu0 %v412
      %3363 = vmatprep.subr.mxu0 %v383
      %3364 = vmatpush1.msra.mxu0 %v382
      %3365 = vmatprep.subr.mxu0 %v353
      %3366 = vmatpush1.msra.mxu0 %v352
      %3367 = vmatprep.subr.mxu0 %v323
      %3368 = vmatpush1.msra.mxu0 %v322
      %3369 = vmatprep.subr.mxu0 %v293
      %3370 = vmatpush1.msra.mxu0 %v292
      %3371 = vmatprep.subr.mxu0 %v263
      %3372 = vmatpush1.msra.mxu0 %v262
      %3373 = vmatprep.subr.mxu0 %v1193
      %3374 = vmatpush2.msra.mxu0 %v1192
      %3375 = vmatprep.subr.mxu0 %v1163
      %3376 = vmatpush2.msra.mxu0 %v1162
      %3377 = vmatprep.subr.mxu0 %v1133
      %3378 = vmatpush2.msra.mxu0 %v1132
      %3379 = vmatprep.subr.mxu0 %v1103
      %3380 = vmatpush2.msra.mxu0 %v1102
      %3381 = vmatprep.subr.mxu0 %v1073
      %3382 = vmatpush2.msra.mxu0 %v1072
      %3383 = vmatprep.subr.mxu0 %v1043
      %3384 = vmatpush2.msra.mxu0 %v1042
      %3385 = vmatprep.subr.mxu0 %v1013
      %3386 = vmatpush2.msra.mxu0 %v1012
      %3387 = vmatprep.subr.mxu0 %v983
      %3388 = vmatpush2.msra.mxu0 %v982
      %3389 = vmatprep.subr.mxu0 %v953
      %3390 = vmatpush2.msra.mxu0 %v952
      %3391 = vmatprep.subr.mxu0 %v923
      %3392 = vmatpush2.msra.mxu0 %v922
      %3393 = vmatprep.subr.mxu0 %v893
      %3394 = vmatpush2.msra.mxu0 %v892
      %3395 = vmatprep.subr.mxu0 %v863
      %3396 = vmatpush2.msra.mxu0 %v862
      %3397 = vmatprep.subr.mxu0 %v833
      %3398 = vmatpush2.msra.mxu0 %v832
      %3399 = vmatprep.subr.mxu0 %v803
      %3400 = vmatpush2.msra.mxu0 %v802
      %3401 = vmatprep.subr.mxu0 %v773
      %3402 = vmatpush2.msra.mxu0 %v772
      %3403 = vmatprep.subr.mxu0 %v743
      %3404 = vmatpush2.msra.mxu0 %v742
      %3405 = vmatprep.mubr.f32.mxu0 %v259
      %3406 = vmatmul.mubr.f32.gmra.mxu0 %v258
      %v3407 = vpop.f32.mrf.mxu0
      %v3408 = vadd.f32 %v2253, %v3407
      %v3409 = vpop.f32.mrf.mxu0
      %v3410 = vadd.f32 %v2255, %v3409
      %3411 = vmatprep.mubr.f32.mxu0 %v261
      %3412 = vmatmul.mubr.f32.gmra.mxu0 %v260
      %v3413 = vpop.f32.mrf.mxu0
      %v3414 = vadd.f32 %v2259, %v3413
      %v3415 = vpop.f32.mrf.mxu0
      %v3416 = vadd.f32 %v2261, %v3415
      %3417 = vdwg.mxu0
      %3418 = vmatprep.subr.mxu0 %v715
      %3419 = vmatpush1.msra.mxu0 %v714
      %3420 = vmatprep.subr.mxu0 %v685
      %3421 = vmatpush1.msra.mxu0 %v684
      %3422 = vmatprep.subr.mxu0 %v655
      %3423 = vmatpush1.msra.mxu0 %v654
      %3424 = vmatprep.subr.mxu0 %v625
      %3425 = vmatpush1.msra.mxu0 %v624
      %3426 = vmatprep.subr.mxu0 %v595
      %3427 = vmatpush1.msra.mxu0 %v594
      %3428 = vmatprep.subr.mxu0 %v565
      %3429 = vmatpush1.msra.mxu0 %v564
      %3430 = vmatprep.subr.mxu0 %v535
      %3431 = vmatpush1.msra.mxu0 %v534
      %3432 = vmatprep.subr.mxu0 %v505
      %3433 = vmatpush1.msra.mxu0 %v504
      %3434 = vmatprep.subr.mxu0 %v475
      %3435 = vmatpush1.msra.mxu0 %v474
      %3436 = vmatprep.subr.mxu0 %v445
      %3437 = vmatpush1.msra.mxu0 %v444
      %3438 = vmatprep.subr.mxu0 %v415
      %3439 = vmatpush1.msra.mxu0 %v414
      %3440 = vmatprep.subr.mxu0 %v385
      %3441 = vmatpush1.msra.mxu0 %v384
      %3442 = vmatprep.subr.mxu0 %v355
      %3443 = vmatpush1.msra.mxu0 %v354
      %3444 = vmatprep.subr.mxu0 %v325
      %3445 = vmatpush1.msra.mxu0 %v324
      %3446 = vmatprep.subr.mxu0 %v295
      %3447 = vmatpush1.msra.mxu0 %v294
      %3448 = vmatprep.subr.mxu0 %v265
      %3449 = vmatpush1.msra.mxu0 %v264
      %3450 = vmatprep.subr.mxu0 %v1195
      %3451 = vmatpush2.msra.mxu0 %v1194
      %3452 = vmatprep.subr.mxu0 %v1165
      %3453 = vmatpush2.msra.mxu0 %v1164
      %3454 = vmatprep.subr.mxu0 %v1135
      %3455 = vmatpush2.msra.mxu0 %v1134
      %3456 = vmatprep.subr.mxu0 %v1105
      %3457 = vmatpush2.msra.mxu0 %v1104
      %3458 = vmatprep.subr.mxu0 %v1075
      %3459 = vmatpush2.msra.mxu0 %v1074
      %3460 = vmatprep.subr.mxu0 %v1045
      %3461 = vmatpush2.msra.mxu0 %v1044
      %3462 = vmatprep.subr.mxu0 %v1015
      %3463 = vmatpush2.msra.mxu0 %v1014
      %3464 = vmatprep.subr.mxu0 %v985
      %3465 = vmatpush2.msra.mxu0 %v984
      %3466 = vmatprep.subr.mxu0 %v955
      %3467 = vmatpush2.msra.mxu0 %v954
      %3468 = vmatprep.subr.mxu0 %v925
      %3469 = vmatpush2.msra.mxu0 %v924
      %3470 = vmatprep.subr.mxu0 %v895
      %3471 = vmatpush2.msra.mxu0 %v894
      %3472 = vmatprep.subr.mxu0 %v865
      %3473 = vmatpush2.msra.mxu0 %v864
      %3474 = vmatprep.subr.mxu0 %v835
      %3475 = vmatpush2.msra.mxu0 %v834
      %3476 = vmatprep.subr.mxu0 %v805
      %3477 = vmatpush2.msra.mxu0 %v804
      %3478 = vmatprep.subr.mxu0 %v775
      %3479 = vmatpush2.msra.mxu0 %v774
      %3480 = vmatprep.subr.mxu0 %v745
      %3481 = vmatpush2.msra.mxu0 %v744
      %3482 = vmatprep.mubr.f32.mxu0 %v259
      %3483 = vmatmul.mubr.f32.gmra.mxu0 %v258
      %v3484 = vpop.f32.mrf.mxu0
      %v3485 = vadd.f32 %v2330, %v3484
      %v3486 = vpop.f32.mrf.mxu0
      %v3487 = vadd.f32 %v2332, %v3486
      %3488 = vmatprep.mubr.f32.mxu0 %v261
      %3489 = vmatmul.mubr.f32.gmra.mxu0 %v260
      %v3490 = vpop.f32.mrf.mxu0
      %v3491 = vadd.f32 %v2336, %v3490
      %v3492 = vpop.f32.mrf.mxu0
      %v3493 = vadd.f32 %v2338, %v3492
      %3494 = vdwg.mxu0
      %3495 = vmatprep.subr.mxu0 %v717
      %3496 = vmatpush1.msra.mxu0 %v716
      %3497 = vmatprep.subr.mxu0 %v687
      %3498 = vmatpush1.msra.mxu0 %v686
      %3499 = vmatprep.subr.mxu0 %v657
      %3500 = vmatpush1.msra.mxu0 %v656
      %3501 = vmatprep.subr.mxu0 %v627
      %3502 = vmatpush1.msra.mxu0 %v626
      %3503 = vmatprep.subr.mxu0 %v597
      %3504 = vmatpush1.msra.mxu0 %v596
      %3505 = vmatprep.subr.mxu0 %v567
      %3506 = vmatpush1.msra.mxu0 %v566
      %3507 = vmatprep.subr.mxu0 %v537
      %3508 = vmatpush1.msra.mxu0 %v536
      %3509 = vmatprep.subr.mxu0 %v507
      %3510 = vmatpush1.msra.mxu0 %v506
      %3511 = vmatprep.subr.mxu0 %v477
      %3512 = vmatpush1.msra.mxu0 %v476
      %3513 = vmatprep.subr.mxu0 %v447
      %3514 = vmatpush1.msra.mxu0 %v446
      %3515 = vmatprep.subr.mxu0 %v417
      %3516 = vmatpush1.msra.mxu0 %v416
      %3517 = vmatprep.subr.mxu0 %v387
      %3518 = vmatpush1.msra.mxu0 %v386
      %3519 = vmatprep.subr.mxu0 %v357
      %3520 = vmatpush1.msra.mxu0 %v356
      %3521 = vmatprep.subr.mxu0 %v327
      %3522 = vmatpush1.msra.mxu0 %v326
      %3523 = vmatprep.subr.mxu0 %v297
      %3524 = vmatpush1.msra.mxu0 %v296
      %3525 = vmatprep.subr.mxu0 %v267
      %3526 = vmatpush1.msra.mxu0 %v266
      %3527 = vmatprep.subr.mxu0 %v1197
      %3528 = vmatpush2.msra.mxu0 %v1196
      %3529 = vmatprep.subr.mxu0 %v1167
      %3530 = vmatpush2.msra.mxu0 %v1166
      %3531 = vmatprep.subr.mxu0 %v1137
      %3532 = vmatpush2.msra.mxu0 %v1136
      %3533 = vmatprep.subr.mxu0 %v1107
      %3534 = vmatpush2.msra.mxu0 %v1106
      %3535 = vmatprep.subr.mxu0 %v1077
      %3536 = vmatpush2.msra.mxu0 %v1076
      %3537 = vmatprep.subr.mxu0 %v1047
      %3538 = vmatpush2.msra.mxu0 %v1046
      %3539 = vmatprep.subr.mxu0 %v1017
      %3540 = vmatpush2.msra.mxu0 %v1016
      %3541 = vmatprep.subr.mxu0 %v987
      %3542 = vmatpush2.msra.mxu0 %v986
      %3543 = vmatprep.subr.mxu0 %v957
      %3544 = vmatpush2.msra.mxu0 %v956
      %3545 = vmatprep.subr.mxu0 %v927
      %3546 = vmatpush2.msra.mxu0 %v926
      %3547 = vmatprep.subr.mxu0 %v897
      %3548 = vmatpush2.msra.mxu0 %v896
      %3549 = vmatprep.subr.mxu0 %v867
      %3550 = vmatpush2.msra.mxu0 %v866
      %3551 = vmatprep.subr.mxu0 %v837
      %3552 = vmatpush2.msra.mxu0 %v836
      %3553 = vmatprep.subr.mxu0 %v807
      %3554 = vmatpush2.msra.mxu0 %v806
      %3555 = vmatprep.subr.mxu0 %v777
      %3556 = vmatpush2.msra.mxu0 %v776
      %3557 = vmatprep.subr.mxu0 %v747
      %3558 = vmatpush2.msra.mxu0 %v746
      %3559 = vmatprep.mubr.f32.mxu0 %v259
      %3560 = vmatmul.mubr.f32.gmra.mxu0 %v258
      %v3561 = vpop.f32.mrf.mxu0
      %v3562 = vadd.f32 %v2407, %v3561
      %v3563 = vpop.f32.mrf.mxu0
      %v3564 = vadd.f32 %v2409, %v3563
      %3565 = vmatprep.mubr.f32.mxu0 %v261
      %3566 = vmatmul.mubr.f32.gmra.mxu0 %v260
      %v3567 = vpop.f32.mrf.mxu0
      %v3568 = vadd.f32 %v2413, %v3567
      %v3569 = vpop.f32.mrf.mxu0
      %v3570 = vadd.f32 %v2415, %v3569
      %3571 = vdwg.mxu0
      %3572 = vmatprep.subr.mxu0 %v719
      %3573 = vmatpush1.msra.mxu0 %v718
      %3574 = vmatprep.subr.mxu0 %v689
      %3575 = vmatpush1.msra.mxu0 %v688
      %3576 = vmatprep.subr.mxu0 %v659
      %3577 = vmatpush1.msra.mxu0 %v658
      %3578 = vmatprep.subr.mxu0 %v629
      %3579 = vmatpush1.msra.mxu0 %v628
      %3580 = vmatprep.subr.mxu0 %v599
      %3581 = vmatpush1.msra.mxu0 %v598
      %3582 = vmatprep.subr.mxu0 %v569
      %3583 = vmatpush1.msra.mxu0 %v568
      %3584 = vmatprep.subr.mxu0 %v539
      %3585 = vmatpush1.msra.mxu0 %v538
      %3586 = vmatprep.subr.mxu0 %v509
      %3587 = vmatpush1.msra.mxu0 %v508
      %3588 = vmatprep.subr.mxu0 %v479
      %3589 = vmatpush1.msra.mxu0 %v478
      %3590 = vmatprep.subr.mxu0 %v449
      %3591 = vmatpush1.msra.mxu0 %v448
      %3592 = vmatprep.subr.mxu0 %v419
      %3593 = vmatpush1.msra.mxu0 %v418
      %3594 = vmatprep.subr.mxu0 %v389
      %3595 = vmatpush1.msra.mxu0 %v388
      %3596 = vmatprep.subr.mxu0 %v359
      %3597 = vmatpush1.msra.mxu0 %v358
      %3598 = vmatprep.subr.mxu0 %v329
      %3599 = vmatpush1.msra.mxu0 %v328
      %3600 = vmatprep.subr.mxu0 %v299
      %3601 = vmatpush1.msra.mxu0 %v298
      %3602 = vmatprep.subr.mxu0 %v269
      %3603 = vmatpush1.msra.mxu0 %v268
      %3604 = vmatprep.subr.mxu0 %v1199
      %3605 = vmatpush2.msra.mxu0 %v1198
      %3606 = vmatprep.subr.mxu0 %v1169
      %3607 = vmatpush2.msra.mxu0 %v1168
      %3608 = vmatprep.subr.mxu0 %v1139
      %3609 = vmatpush2.msra.mxu0 %v1138
      %3610 = vmatprep.subr.mxu0 %v1109
      %3611 = vmatpush2.msra.mxu0 %v1108
      %3612 = vmatprep.subr.mxu0 %v1079
      %3613 = vmatpush2.msra.mxu0 %v1078
      %3614 = vmatprep.subr.mxu0 %v1049
      %3615 = vmatpush2.msra.mxu0 %v1048
      %3616 = vmatprep.subr.mxu0 %v1019
      %3617 = vmatpush2.msra.mxu0 %v1018
      %3618 = vmatprep.subr.mxu0 %v989
      %3619 = vmatpush2.msra.mxu0 %v988
      %3620 = vmatprep.subr.mxu0 %v959
      %3621 = vmatpush2.msra.mxu0 %v958
      %3622 = vmatprep.subr.mxu0 %v929
      %3623 = vmatpush2.msra.mxu0 %v928
      %3624 = vmatprep.subr.mxu0 %v899
      %3625 = vmatpush2.msra.mxu0 %v898
      %3626 = vmatprep.subr.mxu0 %v869
      %3627 = vmatpush2.msra.mxu0 %v868
      %3628 = vmatprep.subr.mxu0 %v839
      %3629 = vmatpush2.msra.mxu0 %v838
      %3630 = vmatprep.subr.mxu0 %v809
      %3631 = vmatpush2.msra.mxu0 %v808
      %3632 = vmatprep.subr.mxu0 %v779
      %3633 = vmatpush2.msra.mxu0 %v778
      %3634 = vmatprep.subr.mxu0 %v749
      %3635 = vmatpush2.msra.mxu0 %v748
      %3636 = vmatprep.mubr.f32.mxu0 %v259
      %3637 = vmatmul.mubr.f32.gmra.mxu0 %v258
      %v3638 = vpop.f32.mrf.mxu0
      %v3639 = vadd.f32 %v2484, %v3638
      %v3640 = vpop.f32.mrf.mxu0
      %v3641 = vadd.f32 %v2486, %v3640
      %3642 = vmatprep.mubr.f32.mxu0 %v261
      %3643 = vmatmul.mubr.f32.gmra.mxu0 %v260
      %v3644 = vpop.f32.mrf.mxu0
      %v3645 = vadd.f32 %v2490, %v3644
      %v3646 = vpop.f32.mrf.mxu0
      %v3647 = vadd.f32 %v2492, %v3646
      %3648 = vdwg.mxu0
      %3649 = vmatprep.subr.mxu0 %v721
      %3650 = vmatpush1.msra.mxu0 %v720
      %3651 = vmatprep.subr.mxu0 %v691
      %3652 = vmatpush1.msra.mxu0 %v690
      %3653 = vmatprep.subr.mxu0 %v661
      %3654 = vmatpush1.msra.mxu0 %v660
      %3655 = vmatprep.subr.mxu0 %v631
      %3656 = vmatpush1.msra.mxu0 %v630
      %3657 = vmatprep.subr.mxu0 %v601
      %3658 = vmatpush1.msra.mxu0 %v600
      %3659 = vmatprep.subr.mxu0 %v571
      %3660 = vmatpush1.msra.mxu0 %v570
      %3661 = vmatprep.subr.mxu0 %v541
      %3662 = vmatpush1.msra.mxu0 %v540
      %3663 = vmatprep.subr.mxu0 %v511
      %3664 = vmatpush1.msra.mxu0 %v510
      %3665 = vmatprep.subr.mxu0 %v481
      %3666 = vmatpush1.msra.mxu0 %v480
      %3667 = vmatprep.subr.mxu0 %v451
      %3668 = vmatpush1.msra.mxu0 %v450
      %3669 = vmatprep.subr.mxu0 %v421
      %3670 = vmatpush1.msra.mxu0 %v420
      %3671 = vmatprep.subr.mxu0 %v391
      %3672 = vmatpush1.msra.mxu0 %v390
      %3673 = vmatprep.subr.mxu0 %v361
      %3674 = vmatpush1.msra.mxu0 %v360
      %3675 = vmatprep.subr.mxu0 %v331
      %3676 = vmatpush1.msra.mxu0 %v330
      %3677 = vmatprep.subr.mxu0 %v301
      %3678 = vmatpush1.msra.mxu0 %v300
      %3679 = vmatprep.subr.mxu0 %v271
      %3680 = vmatpush1.msra.mxu0 %v270
      %3681 = vmatprep.subr.mxu0 %v1201
      %3682 = vmatpush2.msra.mxu0 %v1200
      %3683 = vmatprep.subr.mxu0 %v1171
      %3684 = vmatpush2.msra.mxu0 %v1170
      %3685 = vmatprep.subr.mxu0 %v1141
      %3686 = vmatpush2.msra.mxu0 %v1140
      %3687 = vmatprep.subr.mxu0 %v1111
      %3688 = vmatpush2.msra.mxu0 %v1110
      %3689 = vmatprep.subr.mxu0 %v1081
      %3690 = vmatpush2.msra.mxu0 %v1080
      %3691 = vmatprep.subr.mxu0 %v1051
      %3692 = vmatpush2.msra.mxu0 %v1050
      %3693 = vmatprep.subr.mxu0 %v1021
      %3694 = vmatpush2.msra.mxu0 %v1020
      %3695 = vmatprep.subr.mxu0 %v991
      %3696 = vmatpush2.msra.mxu0 %v990
      %3697 = vmatprep.subr.mxu0 %v961
      %3698 = vmatpush2.msra.mxu0 %v960
      %3699 = vmatprep.subr.mxu0 %v931
      %3700 = vmatpush2.msra.mxu0 %v930
      %3701 = vmatprep.subr.mxu0 %v901
      %3702 = vmatpush2.msra.mxu0 %v900
      %3703 = vmatprep.subr.mxu0 %v871
      %3704 = vmatpush2.msra.mxu0 %v870
      %3705 = vmatprep.subr.mxu0 %v841
      %3706 = vmatpush2.msra.mxu0 %v840
      %3707 = vmatprep.subr.mxu0 %v811
      %3708 = vmatpush2.msra.mxu0 %v810
      %3709 = vmatprep.subr.mxu0 %v781
      %3710 = vmatpush2.msra.mxu0 %v780
      %3711 = vmatprep.subr.mxu0 %v751
      %3712 = vmatpush2.msra.mxu0 %v750
      %3713 = vmatprep.mubr.f32.mxu0 %v259
      %3714 = vmatmul.mubr.f32.gmra.mxu0 %v258
      %v3715 = vpop.f32.mrf.mxu0
      %v3716 = vadd.f32 %v2561, %v3715
      %v3717 = vpop.f32.mrf.mxu0
      %v3718 = vadd.f32 %v2563, %v3717
      %3719 = vmatprep.mubr.f32.mxu0 %v261
      %3720 = vmatmul.mubr.f32.gmra.mxu0 %v260
      %v3721 = vpop.f32.mrf.mxu0
      %v3722 = vadd.f32 %v2567, %v3721
      %v3723 = vpop.f32.mrf.mxu0
      %v3724 = vadd.f32 %v2569, %v3723
      %3725 = vdwg.mxu0
      %3726 = vmatprep.subr.mxu0 %v723
      %3727 = vmatpush1.msra.mxu0 %v722
      %3728 = vmatprep.subr.mxu0 %v693
      %3729 = vmatpush1.msra.mxu0 %v692
      %3730 = vmatprep.subr.mxu0 %v663
      %3731 = vmatpush1.msra.mxu0 %v662
      %3732 = vmatprep.subr.mxu0 %v633
      %3733 = vmatpush1.msra.mxu0 %v632
      %3734 = vmatprep.subr.mxu0 %v603
      %3735 = vmatpush1.msra.mxu0 %v602
      %3736 = vmatprep.subr.mxu0 %v573
      %3737 = vmatpush1.msra.mxu0 %v572
      %3738 = vmatprep.subr.mxu0 %v543
      %3739 = vmatpush1.msra.mxu0 %v542
      %3740 = vmatprep.subr.mxu0 %v513
      %3741 = vmatpush1.msra.mxu0 %v512
      %3742 = vmatprep.subr.mxu0 %v483
      %3743 = vmatpush1.msra.mxu0 %v482
      %3744 = vmatprep.subr.mxu0 %v453
      %3745 = vmatpush1.msra.mxu0 %v452
      %3746 = vmatprep.subr.mxu0 %v423
      %3747 = vmatpush1.msra.mxu0 %v422
      %3748 = vmatprep.subr.mxu0 %v393
      %3749 = vmatpush1.msra.mxu0 %v392
      %3750 = vmatprep.subr.mxu0 %v363
      %3751 = vmatpush1.msra.mxu0 %v362
      %3752 = vmatprep.subr.mxu0 %v333
      %3753 = vmatpush1.msra.mxu0 %v332
      %3754 = vmatprep.subr.mxu0 %v303
      %3755 = vmatpush1.msra.mxu0 %v302
      %3756 = vmatprep.subr.mxu0 %v273
      %3757 = vmatpush1.msra.mxu0 %v272
      %3758 = vmatprep.subr.mxu0 %v1203
      %3759 = vmatpush2.msra.mxu0 %v1202
      %3760 = vmatprep.subr.mxu0 %v1173
      %3761 = vmatpush2.msra.mxu0 %v1172
      %3762 = vmatprep.subr.mxu0 %v1143
      %3763 = vmatpush2.msra.mxu0 %v1142
      %3764 = vmatprep.subr.mxu0 %v1113
      %3765 = vmatpush2.msra.mxu0 %v1112
      %3766 = vmatprep.subr.mxu0 %v1083
      %3767 = vmatpush2.msra.mxu0 %v1082
      %3768 = vmatprep.subr.mxu0 %v1053
      %3769 = vmatpush2.msra.mxu0 %v1052
      %3770 = vmatprep.subr.mxu0 %v1023
      %3771 = vmatpush2.msra.mxu0 %v1022
      %3772 = vmatprep.subr.mxu0 %v993
      %3773 = vmatpush2.msra.mxu0 %v992
      %3774 = vmatprep.subr.mxu0 %v963
      %3775 = vmatpush2.msra.mxu0 %v962
      %3776 = vmatprep.subr.mxu0 %v933
      %3777 = vmatpush2.msra.mxu0 %v932
      %3778 = vmatprep.subr.mxu0 %v903
      %3779 = vmatpush2.msra.mxu0 %v902
      %3780 = vmatprep.subr.mxu0 %v873
      %3781 = vmatpush2.msra.mxu0 %v872
      %3782 = vmatprep.subr.mxu0 %v843
      %3783 = vmatpush2.msra.mxu0 %v842
      %3784 = vmatprep.subr.mxu0 %v813
      %3785 = vmatpush2.msra.mxu0 %v812
      %3786 = vmatprep.subr.mxu0 %v783
      %3787 = vmatpush2.msra.mxu0 %v782
      %3788 = vmatprep.subr.mxu0 %v753
      %3789 = vmatpush2.msra.mxu0 %v752
      %3790 = vmatprep.mubr.f32.mxu0 %v259
      %3791 = vmatmul.mubr.f32.gmra.mxu0 %v258
      %v3792 = vpop.f32.mrf.mxu0
      %v3793 = vadd.f32 %v2638, %v3792
      %v3794 = vpop.f32.mrf.mxu0
      %v3795 = vadd.f32 %v2640, %v3794
      %3796 = vmatprep.mubr.f32.mxu0 %v261
      %3797 = vmatmul.mubr.f32.gmra.mxu0 %v260
      %v3798 = vpop.f32.mrf.mxu0
      %v3799 = vadd.f32 %v2644, %v3798
      %v3800 = vpop.f32.mrf.mxu0
      %v3801 = vadd.f32 %v2646, %v3800
      %3802 = vdwg.mxu0
      %3803 = vmatprep.subr.mxu0 %v725
      %3804 = vmatpush1.msra.mxu0 %v724
      %3805 = vmatprep.subr.mxu0 %v695
      %3806 = vmatpush1.msra.mxu0 %v694
      %3807 = vmatprep.subr.mxu0 %v665
      %3808 = vmatpush1.msra.mxu0 %v664
      %3809 = vmatprep.subr.mxu0 %v635
      %3810 = vmatpush1.msra.mxu0 %v634
      %3811 = vmatprep.subr.mxu0 %v605
      %3812 = vmatpush1.msra.mxu0 %v604
      %3813 = vmatprep.subr.mxu0 %v575
      %3814 = vmatpush1.msra.mxu0 %v574
      %3815 = vmatprep.subr.mxu0 %v545
      %3816 = vmatpush1.msra.mxu0 %v544
      %3817 = vmatprep.subr.mxu0 %v515
      %3818 = vmatpush1.msra.mxu0 %v514
      %3819 = vmatprep.subr.mxu0 %v485
      %3820 = vmatpush1.msra.mxu0 %v484
      %3821 = vmatprep.subr.mxu0 %v455
      %3822 = vmatpush1.msra.mxu0 %v454
      %3823 = vmatprep.subr.mxu0 %v425
      %3824 = vmatpush1.msra.mxu0 %v424
      %3825 = vmatprep.subr.mxu0 %v395
      %3826 = vmatpush1.msra.mxu0 %v394
      %3827 = vmatprep.subr.mxu0 %v365
      %3828 = vmatpush1.msra.mxu0 %v364
      %3829 = vmatprep.subr.mxu0 %v335
      %3830 = vmatpush1.msra.mxu0 %v334
      %3831 = vmatprep.subr.mxu0 %v305
      %3832 = vmatpush1.msra.mxu0 %v304
      %3833 = vmatprep.subr.mxu0 %v275
      %3834 = vmatpush1.msra.mxu0 %v274
      %3835 = vmatprep.subr.mxu0 %v1205
      %3836 = vmatpush2.msra.mxu0 %v1204
      %3837 = vmatprep.subr.mxu0 %v1175
      %3838 = vmatpush2.msra.mxu0 %v1174
      %3839 = vmatprep.subr.mxu0 %v1145
      %3840 = vmatpush2.msra.mxu0 %v1144
      %3841 = vmatprep.subr.mxu0 %v1115
      %3842 = vmatpush2.msra.mxu0 %v1114
      %3843 = vmatprep.subr.mxu0 %v1085
      %3844 = vmatpush2.msra.mxu0 %v1084
      %3845 = vmatprep.subr.mxu0 %v1055
      %3846 = vmatpush2.msra.mxu0 %v1054
      %3847 = vmatprep.subr.mxu0 %v1025
      %3848 = vmatpush2.msra.mxu0 %v1024
      %3849 = vmatprep.subr.mxu0 %v995
      %3850 = vmatpush2.msra.mxu0 %v994
      %3851 = vmatprep.subr.mxu0 %v965
      %3852 = vmatpush2.msra.mxu0 %v964
      %3853 = vmatprep.subr.mxu0 %v935
      %3854 = vmatpush2.msra.mxu0 %v934
      %3855 = vmatprep.subr.mxu0 %v905
      %3856 = vmatpush2.msra.mxu0 %v904
      %3857 = vmatprep.subr.mxu0 %v875
      %3858 = vmatpush2.msra.mxu0 %v874
      %3859 = vmatprep.subr.mxu0 %v845
      %3860 = vmatpush2.msra.mxu0 %v844
      %3861 = vmatprep.subr.mxu0 %v815
      %3862 = vmatpush2.msra.mxu0 %v814
      %3863 = vmatprep.subr.mxu0 %v785
      %3864 = vmatpush2.msra.mxu0 %v784
      %3865 = vmatprep.subr.mxu0 %v755
      %3866 = vmatpush2.msra.mxu0 %v754
      %3867 = vmatprep.mubr.f32.mxu0 %v259
      %3868 = vmatmul.mubr.f32.gmra.mxu0 %v258
      %v3869 = vpop.f32.mrf.mxu0
      %v3870 = vadd.f32 %v2715, %v3869
      %v3871 = vpop.f32.mrf.mxu0
      %v3872 = vadd.f32 %v2717, %v3871
      %3873 = vmatprep.mubr.f32.mxu0 %v261
      %3874 = vmatmul.mubr.f32.gmra.mxu0 %v260
      %v3875 = vpop.f32.mrf.mxu0
      %v3876 = vadd.f32 %v2721, %v3875
      %v3877 = vpop.f32.mrf.mxu0
      %v3878 = vadd.f32 %v2723, %v3877
      %3879 = vdwg.mxu0
      %3880 = vmatprep.subr.mxu0 %v727
      %3881 = vmatpush1.msra.mxu0 %v726
      %3882 = vmatprep.subr.mxu0 %v697
      %3883 = vmatpush1.msra.mxu0 %v696
      %3884 = vmatprep.subr.mxu0 %v667
      %3885 = vmatpush1.msra.mxu0 %v666
      %3886 = vmatprep.subr.mxu0 %v637
      %3887 = vmatpush1.msra.mxu0 %v636
      %3888 = vmatprep.subr.mxu0 %v607
      %3889 = vmatpush1.msra.mxu0 %v606
      %3890 = vmatprep.subr.mxu0 %v577
      %3891 = vmatpush1.msra.mxu0 %v576
      %3892 = vmatprep.subr.mxu0 %v547
      %3893 = vmatpush1.msra.mxu0 %v546
      %3894 = vmatprep.subr.mxu0 %v517
      %3895 = vmatpush1.msra.mxu0 %v516
      %3896 = vmatprep.subr.mxu0 %v487
      %3897 = vmatpush1.msra.mxu0 %v486
      %3898 = vmatprep.subr.mxu0 %v457
      %3899 = vmatpush1.msra.mxu0 %v456
      %3900 = vmatprep.subr.mxu0 %v427
      %3901 = vmatpush1.msra.mxu0 %v426
      %3902 = vmatprep.subr.mxu0 %v397
      %3903 = vmatpush1.msra.mxu0 %v396
      %3904 = vmatprep.subr.mxu0 %v367
      %3905 = vmatpush1.msra.mxu0 %v366
      %3906 = vmatprep.subr.mxu0 %v337
      %3907 = vmatpush1.msra.mxu0 %v336
      %3908 = vmatprep.subr.mxu0 %v307
      %3909 = vmatpush1.msra.mxu0 %v306
      %3910 = vmatprep.subr.mxu0 %v277
      %3911 = vmatpush1.msra.mxu0 %v276
      %3912 = vmatprep.subr.mxu0 %v1207
      %3913 = vmatpush2.msra.mxu0 %v1206
      %3914 = vmatprep.subr.mxu0 %v1177
      %3915 = vmatpush2.msra.mxu0 %v1176
      %3916 = vmatprep.subr.mxu0 %v1147
      %3917 = vmatpush2.msra.mxu0 %v1146
      %3918 = vmatprep.subr.mxu0 %v1117
      %3919 = vmatpush2.msra.mxu0 %v1116
      %3920 = vmatprep.subr.mxu0 %v1087
      %3921 = vmatpush2.msra.mxu0 %v1086
      %3922 = vmatprep.subr.mxu0 %v1057
      %3923 = vmatpush2.msra.mxu0 %v1056
      %3924 = vmatprep.subr.mxu0 %v1027
      %3925 = vmatpush2.msra.mxu0 %v1026
      %3926 = vmatprep.subr.mxu0 %v997
      %3927 = vmatpush2.msra.mxu0 %v996
      %3928 = vmatprep.subr.mxu0 %v967
      %3929 = vmatpush2.msra.mxu0 %v966
      %3930 = vmatprep.subr.mxu0 %v937
      %3931 = vmatpush2.msra.mxu0 %v936
      %3932 = vmatprep.subr.mxu0 %v907
      %3933 = vmatpush2.msra.mxu0 %v906
      %3934 = vmatprep.subr.mxu0 %v877
      %3935 = vmatpush2.msra.mxu0 %v876
      %3936 = vmatprep.subr.mxu0 %v847
      %3937 = vmatpush2.msra.mxu0 %v846
      %3938 = vmatprep.subr.mxu0 %v817
      %3939 = vmatpush2.msra.mxu0 %v816
      %3940 = vmatprep.subr.mxu0 %v787
      %3941 = vmatpush2.msra.mxu0 %v786
      %3942 = vmatprep.subr.mxu0 %v757
      %3943 = vmatpush2.msra.mxu0 %v756
      %3944 = vmatprep.mubr.f32.mxu0 %v259
      %3945 = vmatmul.mubr.f32.gmra.mxu0 %v258
      %v3946 = vpop.f32.mrf.mxu0
      %v3947 = vadd.f32 %v2792, %v3946
      %v3948 = vpop.f32.mrf.mxu0
      %v3949 = vadd.f32 %v2794, %v3948
      %3950 = vmatprep.mubr.f32.mxu0 %v261
      %3951 = vmatmul.mubr.f32.gmra.mxu0 %v260
      %v3952 = vpop.f32.mrf.mxu0
      %v3953 = vadd.f32 %v2798, %v3952
      %v3954 = vpop.f32.mrf.mxu0
      %v3955 = vadd.f32 %v2800, %v3954
      %3956 = vdwg.mxu0
      %3957 = vmatprep.subr.mxu0 %v729
      %3958 = vmatpush1.msra.mxu0 %v728
      %3959 = vmatprep.subr.mxu0 %v699
      %3960 = vmatpush1.msra.mxu0 %v698
      %3961 = vmatprep.subr.mxu0 %v669
      %3962 = vmatpush1.msra.mxu0 %v668
      %3963 = vmatprep.subr.mxu0 %v639
      %3964 = vmatpush1.msra.mxu0 %v638
      %3965 = vmatprep.subr.mxu0 %v609
      %3966 = vmatpush1.msra.mxu0 %v608
      %3967 = vmatprep.subr.mxu0 %v579
      %3968 = vmatpush1.msra.mxu0 %v578
      %3969 = vmatprep.subr.mxu0 %v549
      %3970 = vmatpush1.msra.mxu0 %v548
      %3971 = vmatprep.subr.mxu0 %v519
      %3972 = vmatpush1.msra.mxu0 %v518
      %3973 = vmatprep.subr.mxu0 %v489
      %3974 = vmatpush1.msra.mxu0 %v488
      %3975 = vmatprep.subr.mxu0 %v459
      %3976 = vmatpush1.msra.mxu0 %v458
      %3977 = vmatprep.subr.mxu0 %v429
      %3978 = vmatpush1.msra.mxu0 %v428
      %3979 = vmatprep.subr.mxu0 %v399
      %3980 = vmatpush1.msra.mxu0 %v398
      %3981 = vmatprep.subr.mxu0 %v369
      %3982 = vmatpush1.msra.mxu0 %v368
      %3983 = vmatprep.subr.mxu0 %v339
      %3984 = vmatpush1.msra.mxu0 %v338
      %3985 = vmatprep.subr.mxu0 %v309
      %3986 = vmatpush1.msra.mxu0 %v308
      %3987 = vmatprep.subr.mxu0 %v279
      %3988 = vmatpush1.msra.mxu0 %v278
      %3989 = vmatprep.subr.mxu0 %v1209
      %3990 = vmatpush2.msra.mxu0 %v1208
      %3991 = vmatprep.subr.mxu0 %v1179
      %3992 = vmatpush2.msra.mxu0 %v1178
      %3993 = vmatprep.subr.mxu0 %v1149
      %3994 = vmatpush2.msra.mxu0 %v1148
      %3995 = vmatprep.subr.mxu0 %v1119
      %3996 = vmatpush2.msra.mxu0 %v1118
      %3997 = vmatprep.subr.mxu0 %v1089
      %3998 = vmatpush2.msra.mxu0 %v1088
      %3999 = vmatprep.subr.mxu0 %v1059
      %4000 = vmatpush2.msra.mxu0 %v1058
      %4001 = vmatprep.subr.mxu0 %v1029
      %4002 = vmatpush2.msra.mxu0 %v1028
      %4003 = vmatprep.subr.mxu0 %v999
      %4004 = vmatpush2.msra.mxu0 %v998
      %4005 = vmatprep.subr.mxu0 %v969
      %4006 = vmatpush2.msra.mxu0 %v968
      %4007 = vmatprep.subr.mxu0 %v939
      %4008 = vmatpush2.msra.mxu0 %v938
      %4009 = vmatprep.subr.mxu0 %v909
      %4010 = vmatpush2.msra.mxu0 %v908
      %4011 = vmatprep.subr.mxu0 %v879
      %4012 = vmatpush2.msra.mxu0 %v878
      %4013 = vmatprep.subr.mxu0 %v849
      %4014 = vmatpush2.msra.mxu0 %v848
      %4015 = vmatprep.subr.mxu0 %v819
      %4016 = vmatpush2.msra.mxu0 %v818
      %4017 = vmatprep.subr.mxu0 %v789
      %4018 = vmatpush2.msra.mxu0 %v788
      %4019 = vmatprep.subr.mxu0 %v759
      %4020 = vmatpush2.msra.mxu0 %v758
      %4021 = vmatprep.mubr.f32.mxu0 %v259
      %4022 = vmatmul.mubr.f32.gmra.mxu0 %v258
      %v4023 = vpop.f32.mrf.mxu0
      %v4024 = vadd.f32 %v2869, %v4023
      %v4025 = vpop.f32.mrf.mxu0
      %v4026 = vadd.f32 %v2871, %v4025
      %4027 = vmatprep.mubr.f32.mxu0 %v261
      %4028 = vmatmul.mubr.f32.gmra.mxu0 %v260
      %v4029 = vpop.f32.mrf.mxu0
      %v4030 = vadd.f32 %v2875, %v4029
      %v4031 = vpop.f32.mrf.mxu0
      %v4032 = vadd.f32 %v2877, %v4031
      %4033 = vdwg.mxu0
      %4034 = vmatprep.subr.mxu0 %v731
      %4035 = vmatpush1.msra.mxu0 %v730
      %4036 = vmatprep.subr.mxu0 %v701
      %4037 = vmatpush1.msra.mxu0 %v700
      %4038 = vmatprep.subr.mxu0 %v671
      %4039 = vmatpush1.msra.mxu0 %v670
      %4040 = vmatprep.subr.mxu0 %v641
      %4041 = vmatpush1.msra.mxu0 %v640
      %4042 = vmatprep.subr.mxu0 %v611
      %4043 = vmatpush1.msra.mxu0 %v610
      %4044 = vmatprep.subr.mxu0 %v581
      %4045 = vmatpush1.msra.mxu0 %v580
      %4046 = vmatprep.subr.mxu0 %v551
      %4047 = vmatpush1.msra.mxu0 %v550
      %4048 = vmatprep.subr.mxu0 %v521
      %4049 = vmatpush1.msra.mxu0 %v520
      %4050 = vmatprep.subr.mxu0 %v491
      %4051 = vmatpush1.msra.mxu0 %v490
      %4052 = vmatprep.subr.mxu0 %v461
      %4053 = vmatpush1.msra.mxu0 %v460
      %4054 = vmatprep.subr.mxu0 %v431
      %4055 = vmatpush1.msra.mxu0 %v430
      %4056 = vmatprep.subr.mxu0 %v401
      %4057 = vmatpush1.msra.mxu0 %v400
      %4058 = vmatprep.subr.mxu0 %v371
      %4059 = vmatpush1.msra.mxu0 %v370
      %4060 = vmatprep.subr.mxu0 %v341
      %4061 = vmatpush1.msra.mxu0 %v340
      %4062 = vmatprep.subr.mxu0 %v311
      %4063 = vmatpush1.msra.mxu0 %v310
      %4064 = vmatprep.subr.mxu0 %v281
      %4065 = vmatpush1.msra.mxu0 %v280
      %4066 = vmatprep.subr.mxu0 %v1211
      %4067 = vmatpush2.msra.mxu0 %v1210
      %4068 = vmatprep.subr.mxu0 %v1181
      %4069 = vmatpush2.msra.mxu0 %v1180
      %4070 = vmatprep.subr.mxu0 %v1151
      %4071 = vmatpush2.msra.mxu0 %v1150
      %4072 = vmatprep.subr.mxu0 %v1121
      %4073 = vmatpush2.msra.mxu0 %v1120
      %4074 = vmatprep.subr.mxu0 %v1091
      %4075 = vmatpush2.msra.mxu0 %v1090
      %4076 = vmatprep.subr.mxu0 %v1061
      %4077 = vmatpush2.msra.mxu0 %v1060
      %4078 = vmatprep.subr.mxu0 %v1031
      %4079 = vmatpush2.msra.mxu0 %v1030
      %4080 = vmatprep.subr.mxu0 %v1001
      %4081 = vmatpush2.msra.mxu0 %v1000
      %4082 = vmatprep.subr.mxu0 %v971
      %4083 = vmatpush2.msra.mxu0 %v970
      %4084 = vmatprep.subr.mxu0 %v941
      %4085 = vmatpush2.msra.mxu0 %v940
      %4086 = vmatprep.subr.mxu0 %v911
      %4087 = vmatpush2.msra.mxu0 %v910
      %4088 = vmatprep.subr.mxu0 %v881
      %4089 = vmatpush2.msra.mxu0 %v880
      %4090 = vmatprep.subr.mxu0 %v851
      %4091 = vmatpush2.msra.mxu0 %v850
      %4092 = vmatprep.subr.mxu0 %v821
      %4093 = vmatpush2.msra.mxu0 %v820
      %4094 = vmatprep.subr.mxu0 %v791
      %4095 = vmatpush2.msra.mxu0 %v790
      %4096 = vmatprep.subr.mxu0 %v761
      %4097 = vmatpush2.msra.mxu0 %v760
      %4098 = vmatprep.mubr.f32.mxu0 %v259
      %4099 = vmatmul.mubr.f32.gmra.mxu0 %v258
      %v4100 = vpop.f32.mrf.mxu0
      %v4101 = vadd.f32 %v2946, %v4100
      %v4102 = vpop.f32.mrf.mxu0
      %v4103 = vadd.f32 %v2948, %v4102
      %4104 = vmatprep.mubr.f32.mxu0 %v261
      %4105 = vmatmul.mubr.f32.gmra.mxu0 %v260
      %v4106 = vpop.f32.mrf.mxu0
      %v4107 = vadd.f32 %v2952, %v4106
      %v4108 = vpop.f32.mrf.mxu0
      %v4109 = vadd.f32 %v2954, %v4108
      %4110 = vdwg.mxu0
      %4111 = vmatprep.subr.mxu0 %v733
      %4112 = vmatpush1.msra.mxu0 %v732
      %4113 = vmatprep.subr.mxu0 %v703
      %4114 = vmatpush1.msra.mxu0 %v702
      %4115 = vmatprep.subr.mxu0 %v673
      %4116 = vmatpush1.msra.mxu0 %v672
      %4117 = vmatprep.subr.mxu0 %v643
      %4118 = vmatpush1.msra.mxu0 %v642
      %4119 = vmatprep.subr.mxu0 %v613
      %4120 = vmatpush1.msra.mxu0 %v612
      %4121 = vmatprep.subr.mxu0 %v583
      %4122 = vmatpush1.msra.mxu0 %v582
      %4123 = vmatprep.subr.mxu0 %v553
      %4124 = vmatpush1.msra.mxu0 %v552
      %4125 = vmatprep.subr.mxu0 %v523
      %4126 = vmatpush1.msra.mxu0 %v522
      %4127 = vmatprep.subr.mxu0 %v493
      %4128 = vmatpush1.msra.mxu0 %v492
      %4129 = vmatprep.subr.mxu0 %v463
      %4130 = vmatpush1.msra.mxu0 %v462
      %4131 = vmatprep.subr.mxu0 %v433
      %4132 = vmatpush1.msra.mxu0 %v432
      %4133 = vmatprep.subr.mxu0 %v403
      %4134 = vmatpush1.msra.mxu0 %v402
      %4135 = vmatprep.subr.mxu0 %v373
      %4136 = vmatpush1.msra.mxu0 %v372
      %4137 = vmatprep.subr.mxu0 %v343
      %4138 = vmatpush1.msra.mxu0 %v342
      %4139 = vmatprep.subr.mxu0 %v313
      %4140 = vmatpush1.msra.mxu0 %v312
      %4141 = vmatprep.subr.mxu0 %v283
      %4142 = vmatpush1.msra.mxu0 %v282
      %4143 = vmatprep.subr.mxu0 %v1213
      %4144 = vmatpush2.msra.mxu0 %v1212
      %4145 = vmatprep.subr.mxu0 %v1183
      %4146 = vmatpush2.msra.mxu0 %v1182
      %4147 = vmatprep.subr.mxu0 %v1153
      %4148 = vmatpush2.msra.mxu0 %v1152
      %4149 = vmatprep.subr.mxu0 %v1123
      %4150 = vmatpush2.msra.mxu0 %v1122
      %4151 = vmatprep.subr.mxu0 %v1093
      %4152 = vmatpush2.msra.mxu0 %v1092
      %4153 = vmatprep.subr.mxu0 %v1063
      %4154 = vmatpush2.msra.mxu0 %v1062
      %4155 = vmatprep.subr.mxu0 %v1033
      %4156 = vmatpush2.msra.mxu0 %v1032
      %4157 = vmatprep.subr.mxu0 %v1003
      %4158 = vmatpush2.msra.mxu0 %v1002
      %4159 = vmatprep.subr.mxu0 %v973
      %4160 = vmatpush2.msra.mxu0 %v972
      %4161 = vmatprep.subr.mxu0 %v943
      %4162 = vmatpush2.msra.mxu0 %v942
      %4163 = vmatprep.subr.mxu0 %v913
      %4164 = vmatpush2.msra.mxu0 %v912
      %4165 = vmatprep.subr.mxu0 %v883
      %4166 = vmatpush2.msra.mxu0 %v882
      %4167 = vmatprep.subr.mxu0 %v853
      %4168 = vmatpush2.msra.mxu0 %v852
      %4169 = vmatprep.subr.mxu0 %v823
      %4170 = vmatpush2.msra.mxu0 %v822
      %4171 = vmatprep.subr.mxu0 %v793
      %4172 = vmatpush2.msra.mxu0 %v792
      %4173 = vmatprep.subr.mxu0 %v763
      %4174 = vmatpush2.msra.mxu0 %v762
      %4175 = vmatprep.mubr.f32.mxu0 %v259
      %4176 = vmatmul.mubr.f32.gmra.mxu0 %v258
      %v4177 = vpop.f32.mrf.mxu0
      %v4178 = vadd.f32 %v3023, %v4177
      %v4179 = vpop.f32.mrf.mxu0
      %v4180 = vadd.f32 %v3025, %v4179
      %4181 = vmatprep.mubr.f32.mxu0 %v261
      %4182 = vmatmul.mubr.f32.gmra.mxu0 %v260
      %v4183 = vpop.f32.mrf.mxu0
      %v4184 = vadd.f32 %v3029, %v4183
      %v4185 = vpop.f32.mrf.mxu0
      %v4186 = vadd.f32 %v3031, %v4185
      %4187 = vdwg.mxu0
      %4188 = vmatprep.subr.mxu0 %v735
      %4189 = vmatpush1.msra.mxu0 %v734
      %4190 = vmatprep.subr.mxu0 %v705
      %4191 = vmatpush1.msra.mxu0 %v704
      %4192 = vmatprep.subr.mxu0 %v675
      %4193 = vmatpush1.msra.mxu0 %v674
      %4194 = vmatprep.subr.mxu0 %v645
      %4195 = vmatpush1.msra.mxu0 %v644
      %4196 = vmatprep.subr.mxu0 %v615
      %4197 = vmatpush1.msra.mxu0 %v614
      %4198 = vmatprep.subr.mxu0 %v585
      %4199 = vmatpush1.msra.mxu0 %v584
      %4200 = vmatprep.subr.mxu0 %v555
      %4201 = vmatpush1.msra.mxu0 %v554
      %4202 = vmatprep.subr.mxu0 %v525
      %4203 = vmatpush1.msra.mxu0 %v524
      %4204 = vmatprep.subr.mxu0 %v495
      %4205 = vmatpush1.msra.mxu0 %v494
      %4206 = vmatprep.subr.mxu0 %v465
      %4207 = vmatpush1.msra.mxu0 %v464
      %4208 = vmatprep.subr.mxu0 %v435
      %4209 = vmatpush1.msra.mxu0 %v434
      %4210 = vmatprep.subr.mxu0 %v405
      %4211 = vmatpush1.msra.mxu0 %v404
      %4212 = vmatprep.subr.mxu0 %v375
      %4213 = vmatpush1.msra.mxu0 %v374
      %4214 = vmatprep.subr.mxu0 %v345
      %4215 = vmatpush1.msra.mxu0 %v344
      %4216 = vmatprep.subr.mxu0 %v315
      %4217 = vmatpush1.msra.mxu0 %v314
      %4218 = vmatprep.subr.mxu0 %v285
      %4219 = vmatpush1.msra.mxu0 %v284
      %4220 = vmatprep.subr.mxu0 %v1215
      %4221 = vmatpush2.msra.mxu0 %v1214
      %4222 = vmatprep.subr.mxu0 %v1185
      %4223 = vmatpush2.msra.mxu0 %v1184
      %4224 = vmatprep.subr.mxu0 %v1155
      %4225 = vmatpush2.msra.mxu0 %v1154
      %4226 = vmatprep.subr.mxu0 %v1125
      %4227 = vmatpush2.msra.mxu0 %v1124
      %4228 = vmatprep.subr.mxu0 %v1095
      %4229 = vmatpush2.msra.mxu0 %v1094
      %4230 = vmatprep.subr.mxu0 %v1065
      %4231 = vmatpush2.msra.mxu0 %v1064
      %4232 = vmatprep.subr.mxu0 %v1035
      %4233 = vmatpush2.msra.mxu0 %v1034
      %4234 = vmatprep.subr.mxu0 %v1005
      %4235 = vmatpush2.msra.mxu0 %v1004
      %4236 = vmatprep.subr.mxu0 %v975
      %4237 = vmatpush2.msra.mxu0 %v974
      %4238 = vmatprep.subr.mxu0 %v945
      %4239 = vmatpush2.msra.mxu0 %v944
      %4240 = vmatprep.subr.mxu0 %v915
      %4241 = vmatpush2.msra.mxu0 %v914
      %4242 = vmatprep.subr.mxu0 %v885
      %4243 = vmatpush2.msra.mxu0 %v884
      %4244 = vmatprep.subr.mxu0 %v855
      %4245 = vmatpush2.msra.mxu0 %v854
      %4246 = vmatprep.subr.mxu0 %v825
      %4247 = vmatpush2.msra.mxu0 %v824
      %4248 = vmatprep.subr.mxu0 %v795
      %4249 = vmatpush2.msra.mxu0 %v794
      %4250 = vmatprep.subr.mxu0 %v765
      %4251 = vmatpush2.msra.mxu0 %v764
      %4252 = vmatprep.mubr.f32.mxu0 %v259
      %4253 = vmatmul.mubr.f32.gmra.mxu0 %v258
      %v4254 = vpop.f32.mrf.mxu0
      %v4255 = vadd.f32 %v3100, %v4254
      %v4256 = vpop.f32.mrf.mxu0
      %v4257 = vadd.f32 %v3102, %v4256
      %4258 = vmatprep.mubr.f32.mxu0 %v261
      %4259 = vmatmul.mubr.f32.gmra.mxu0 %v260
      %v4260 = vpop.f32.mrf.mxu0
      %v4261 = vadd.f32 %v3106, %v4260
      %v4262 = vpop.f32.mrf.mxu0
      %v4263 = vadd.f32 %v3108, %v4262
      %4264 = vdwg.mxu0
      %4265 = vmatprep.subr.mxu0 %v737
      %4266 = vmatpush1.msra.mxu0 %v736
      %4267 = vmatprep.subr.mxu0 %v707
      %4268 = vmatpush1.msra.mxu0 %v706
      %4269 = vmatprep.subr.mxu0 %v677
      %4270 = vmatpush1.msra.mxu0 %v676
      %4271 = vmatprep.subr.mxu0 %v647
      %4272 = vmatpush1.msra.mxu0 %v646
      %4273 = vmatprep.subr.mxu0 %v617
      %4274 = vmatpush1.msra.mxu0 %v616
      %4275 = vmatprep.subr.mxu0 %v587
      %4276 = vmatpush1.msra.mxu0 %v586
      %4277 = vmatprep.subr.mxu0 %v557
      %4278 = vmatpush1.msra.mxu0 %v556
      %4279 = vmatprep.subr.mxu0 %v527
      %4280 = vmatpush1.msra.mxu0 %v526
      %4281 = vmatprep.subr.mxu0 %v497
      %4282 = vmatpush1.msra.mxu0 %v496
      %4283 = vmatprep.subr.mxu0 %v467
      %4284 = vmatpush1.msra.mxu0 %v466
      %4285 = vmatprep.subr.mxu0 %v437
      %4286 = vmatpush1.msra.mxu0 %v436
      %4287 = vmatprep.subr.mxu0 %v407
      %4288 = vmatpush1.msra.mxu0 %v406
      %4289 = vmatprep.subr.mxu0 %v377
      %4290 = vmatpush1.msra.mxu0 %v376
      %4291 = vmatprep.subr.mxu0 %v347
      %4292 = vmatpush1.msra.mxu0 %v346
      %4293 = vmatprep.subr.mxu0 %v317
      %4294 = vmatpush1.msra.mxu0 %v316
      %4295 = vmatprep.subr.mxu0 %v287
      %4296 = vmatpush1.msra.mxu0 %v286
      %4297 = vmatprep.subr.mxu0 %v1217
      %4298 = vmatpush2.msra.mxu0 %v1216
      %4299 = vmatprep.subr.mxu0 %v1187
      %4300 = vmatpush2.msra.mxu0 %v1186
      %4301 = vmatprep.subr.mxu0 %v1157
      %4302 = vmatpush2.msra.mxu0 %v1156
      %4303 = vmatprep.subr.mxu0 %v1127
      %4304 = vmatpush2.msra.mxu0 %v1126
      %4305 = vmatprep.subr.mxu0 %v1097
      %4306 = vmatpush2.msra.mxu0 %v1096
      %4307 = vmatprep.subr.mxu0 %v1067
      %4308 = vmatpush2.msra.mxu0 %v1066
      %4309 = vmatprep.subr.mxu0 %v1037
      %4310 = vmatpush2.msra.mxu0 %v1036
      %4311 = vmatprep.subr.mxu0 %v1007
      %4312 = vmatpush2.msra.mxu0 %v1006
      %4313 = vmatprep.subr.mxu0 %v977
      %4314 = vmatpush2.msra.mxu0 %v976
      %4315 = vmatprep.subr.mxu0 %v947
      %4316 = vmatpush2.msra.mxu0 %v946
      %4317 = vmatprep.subr.mxu0 %v917
      %4318 = vmatpush2.msra.mxu0 %v916
      %4319 = vmatprep.subr.mxu0 %v887
      %4320 = vmatpush2.msra.mxu0 %v886
      %4321 = vmatprep.subr.mxu0 %v857
      %4322 = vmatpush2.msra.mxu0 %v856
      %4323 = vmatprep.subr.mxu0 %v827
      %4324 = vmatpush2.msra.mxu0 %v826
      %4325 = vmatprep.subr.mxu0 %v797
      %4326 = vmatpush2.msra.mxu0 %v796
      %4327 = vmatprep.subr.mxu0 %v767
      %4328 = vmatpush2.msra.mxu0 %v766
      %4329 = vmatprep.mubr.f32.mxu0 %v259
      %4330 = vmatmul.mubr.f32.gmra.mxu0 %v258
      %v4331 = vpop.f32.mrf.mxu0
      %v4332 = vadd.f32 %v3177, %v4331
      %v4333 = vpop.f32.mrf.mxu0
      %v4334 = vadd.f32 %v3179, %v4333
      %4335 = vmatprep.mubr.f32.mxu0 %v261
      %4336 = vmatmul.mubr.f32.gmra.mxu0 %v260
      %v4337 = vpop.f32.mrf.mxu0
      %v4338 = vadd.f32 %v3183, %v4337
      %v4339 = vpop.f32.mrf.mxu0
      %v4340 = vadd.f32 %v3185, %v4339
      %4341 = vdwg.mxu0
      %4342 = vmatprep.subr.mxu0 %v739
      %4343 = vmatpush1.msra.mxu0 %v738
      %4344 = vmatprep.subr.mxu0 %v709
      %4345 = vmatpush1.msra.mxu0 %v708
      %4346 = vmatprep.subr.mxu0 %v679
      %4347 = vmatpush1.msra.mxu0 %v678
      %4348 = vmatprep.subr.mxu0 %v649
      %4349 = vmatpush1.msra.mxu0 %v648
      %4350 = vmatprep.subr.mxu0 %v619
      %4351 = vmatpush1.msra.mxu0 %v618
      %4352 = vmatprep.subr.mxu0 %v589
      %4353 = vmatpush1.msra.mxu0 %v588
      %4354 = vmatprep.subr.mxu0 %v559
      %4355 = vmatpush1.msra.mxu0 %v558
      %4356 = vmatprep.subr.mxu0 %v529
      %4357 = vmatpush1.msra.mxu0 %v528
      %4358 = vmatprep.subr.mxu0 %v499
      %4359 = vmatpush1.msra.mxu0 %v498
      %4360 = vmatprep.subr.mxu0 %v469
      %4361 = vmatpush1.msra.mxu0 %v468
      %4362 = vmatprep.subr.mxu0 %v439
      %4363 = vmatpush1.msra.mxu0 %v438
      %4364 = vmatprep.subr.mxu0 %v409
      %4365 = vmatpush1.msra.mxu0 %v408
      %4366 = vmatprep.subr.mxu0 %v379
      %4367 = vmatpush1.msra.mxu0 %v378
      %4368 = vmatprep.subr.mxu0 %v349
      %4369 = vmatpush1.msra.mxu0 %v348
      %4370 = vmatprep.subr.mxu0 %v319
      %4371 = vmatpush1.msra.mxu0 %v318
      %4372 = vmatprep.subr.mxu0 %v289
      %4373 = vmatpush1.msra.mxu0 %v288
      %4374 = vmatprep.subr.mxu0 %v1219
      %4375 = vmatpush2.msra.mxu0 %v1218
      %4376 = vmatprep.subr.mxu0 %v1189
      %4377 = vmatpush2.msra.mxu0 %v1188
      %4378 = vmatprep.subr.mxu0 %v1159
      %4379 = vmatpush2.msra.mxu0 %v1158
      %4380 = vmatprep.subr.mxu0 %v1129
      %4381 = vmatpush2.msra.mxu0 %v1128
      %4382 = vmatprep.subr.mxu0 %v1099
      %4383 = vmatpush2.msra.mxu0 %v1098
      %4384 = vmatprep.subr.mxu0 %v1069
      %4385 = vmatpush2.msra.mxu0 %v1068
      %4386 = vmatprep.subr.mxu0 %v1039
      %4387 = vmatpush2.msra.mxu0 %v1038
      %4388 = vmatprep.subr.mxu0 %v1009
      %4389 = vmatpush2.msra.mxu0 %v1008
      %4390 = vmatprep.subr.mxu0 %v979
      %4391 = vmatpush2.msra.mxu0 %v978
      %4392 = vmatprep.subr.mxu0 %v949
      %4393 = vmatpush2.msra.mxu0 %v948
      %4394 = vmatprep.subr.mxu0 %v919
      %4395 = vmatpush2.msra.mxu0 %v918
      %4396 = vmatprep.subr.mxu0 %v889
      %4397 = vmatpush2.msra.mxu0 %v888
      %4398 = vmatprep.subr.mxu0 %v859
      %4399 = vmatpush2.msra.mxu0 %v858
      %4400 = vmatprep.subr.mxu0 %v829
      %4401 = vmatpush2.msra.mxu0 %v828
      %4402 = vmatprep.subr.mxu0 %v799
      %4403 = vmatpush2.msra.mxu0 %v798
      %4404 = vmatprep.subr.mxu0 %v769
      %4405 = vmatpush2.msra.mxu0 %v768
      %4406 = vmatprep.mubr.f32.mxu0 %v259
      %4407 = vmatmul.mubr.f32.gmra.mxu0 %v258
      %v4408 = vpop.f32.mrf.mxu0
      %v4409 = vadd.f32 %v3254, %v4408
      %v4410 = vpop.f32.mrf.mxu0
      %v4411 = vadd.f32 %v3256, %v4410
      %4412 = vmatprep.mubr.f32.mxu0 %v261
      %4413 = vmatmul.mubr.f32.gmra.mxu0 %v260
      %v4414 = vpop.f32.mrf.mxu0
      %v4415 = vadd.f32 %v3260, %v4414
      %v4416 = vpop.f32.mrf.mxu0
      %v4417 = vadd.f32 %v3262, %v4416
      %4418 = vdwg.mxu0
      %4419 = vmatprep.subr.mxu0 %v741
      %4420 = vmatpush1.msra.mxu0 %v740
      %4421 = vmatprep.subr.mxu0 %v711
      %4422 = vmatpush1.msra.mxu0 %v710
      %4423 = vmatprep.subr.mxu0 %v681
      %4424 = vmatpush1.msra.mxu0 %v680
      %4425 = vmatprep.subr.mxu0 %v651
      %4426 = vmatpush1.msra.mxu0 %v650
      %4427 = vmatprep.subr.mxu0 %v621
      %4428 = vmatpush1.msra.mxu0 %v620
      %4429 = vmatprep.subr.mxu0 %v591
      %4430 = vmatpush1.msra.mxu0 %v590
      %4431 = vmatprep.subr.mxu0 %v561
      %4432 = vmatpush1.msra.mxu0 %v560
      %4433 = vmatprep.subr.mxu0 %v531
      %4434 = vmatpush1.msra.mxu0 %v530
      %4435 = vmatprep.subr.mxu0 %v501
      %4436 = vmatpush1.msra.mxu0 %v500
      %4437 = vmatprep.subr.mxu0 %v471
      %4438 = vmatpush1.msra.mxu0 %v470
      %4439 = vmatprep.subr.mxu0 %v441
      %4440 = vmatpush1.msra.mxu0 %v440
      %4441 = vmatprep.subr.mxu0 %v411
      %4442 = vmatpush1.msra.mxu0 %v410
      %4443 = vmatprep.subr.mxu0 %v381
      %4444 = vmatpush1.msra.mxu0 %v380
      %4445 = vmatprep.subr.mxu0 %v351
      %4446 = vmatpush1.msra.mxu0 %v350
      %4447 = vmatprep.subr.mxu0 %v321
      %4448 = vmatpush1.msra.mxu0 %v320
      %4449 = vmatprep.subr.mxu0 %v291
      %4450 = vmatpush1.msra.mxu0 %v290
      %4451 = vmatprep.subr.mxu0 %v1221
      %4452 = vmatpush2.msra.mxu0 %v1220
      %4453 = vmatprep.subr.mxu0 %v1191
      %4454 = vmatpush2.msra.mxu0 %v1190
      %4455 = vmatprep.subr.mxu0 %v1161
      %4456 = vmatpush2.msra.mxu0 %v1160
      %4457 = vmatprep.subr.mxu0 %v1131
      %4458 = vmatpush2.msra.mxu0 %v1130
      %4459 = vmatprep.subr.mxu0 %v1101
      %4460 = vmatpush2.msra.mxu0 %v1100
      %4461 = vmatprep.subr.mxu0 %v1071
      %4462 = vmatpush2.msra.mxu0 %v1070
      %4463 = vmatprep.subr.mxu0 %v1041
      %4464 = vmatpush2.msra.mxu0 %v1040
      %4465 = vmatprep.subr.mxu0 %v1011
      %4466 = vmatpush2.msra.mxu0 %v1010
      %4467 = vmatprep.subr.mxu0 %v981
      %4468 = vmatpush2.msra.mxu0 %v980
      %4469 = vmatprep.subr.mxu0 %v951
      %4470 = vmatpush2.msra.mxu0 %v950
      %4471 = vmatprep.subr.mxu0 %v921
      %4472 = vmatpush2.msra.mxu0 %v920
      %4473 = vmatprep.subr.mxu0 %v891
      %4474 = vmatpush2.msra.mxu0 %v890
      %4475 = vmatprep.subr.mxu0 %v861
      %4476 = vmatpush2.msra.mxu0 %v860
      %4477 = vmatprep.subr.mxu0 %v831
      %4478 = vmatpush2.msra.mxu0 %v830
      %4479 = vmatprep.subr.mxu0 %v801
      %4480 = vmatpush2.msra.mxu0 %v800
      %4481 = vmatprep.subr.mxu0 %v771
      %4482 = vmatpush2.msra.mxu0 %v770
      %4483 = vmatprep.mubr.f32.mxu0 %v259
      %4484 = vmatmul.mubr.f32.gmra.mxu0 %v258
      %v4485 = vpop.f32.mrf.mxu0
      %v4486 = vadd.f32 %v3331, %v4485
      %v4487 = vpop.f32.mrf.mxu0
      %v4488 = vadd.f32 %v3333, %v4487
      %4489 = vmatprep.mubr.f32.mxu0 %v261
      %4490 = vmatmul.mubr.f32.gmra.mxu0 %v260
      %v4491 = vpop.f32.mrf.mxu0
      %v4492 = vadd.f32 %v3337, %v4491
      %v4493 = vpop.f32.mrf.mxu0
      %v4494 = vadd.f32 %v3339, %v4493
      %4495 = vdwg.mxu0
      %v4496 = vld [vmem:[%s4] sm:$0xff]
      %v4497 = vld [vmem:[%s4 + $0x8] sm:$0xff]
      %v4498 = vld [vmem:[%s4 + $0x10] sm:$0xff]
      %v4499 = vld [vmem:[%s4 + $0x18] sm:$0x3f]
      %v4504 = vlaneseq
      %v4505 = vshrl.u32 %v4504, 7
      %v4506 = vsub.s32 0, %v4505
      %v4507 = vrot.slane %v4496, %v4506
      %v4508 = vlaneseq
      %v4509 = vshrl.u32 %v4508, 7
      %v4510 = vsub.s32 1, %v4509
      %v4511 = vrot.slane %v4496, %v4510
      %v4512 = vlaneseq
      %v4513 = vshrl.u32 %v4512, 7
      %v4514 = vsub.s32 2, %v4513
      %v4515 = vrot.slane %v4496, %v4514
      %v4516 = vlaneseq
      %v4517 = vshrl.u32 %v4516, 7
      %v4518 = vsub.s32 3, %v4517
      %v4519 = vrot.slane %v4496, %v4518
      %v4520 = vlaneseq
      %v4521 = vshrl.u32 %v4520, 7
      %v4522 = vsub.s32 4, %v4521
      %v4523 = vrot.slane %v4496, %v4522
      %v4524 = vlaneseq
      %v4525 = vshrl.u32 %v4524, 7
      %v4526 = vsub.s32 5, %v4525
      %v4527 = vrot.slane %v4496, %v4526
      %v4528 = vlaneseq
      %v4529 = vshrl.u32 %v4528, 7
      %v4530 = vsub.s32 6, %v4529
      %v4531 = vrot.slane %v4496, %v4530
      %v4532 = vlaneseq
      %v4533 = vshrl.u32 %v4532, 7
      %v4534 = vsub.s32 7, %v4533
      %v4535 = vrot.slane %v4496, %v4534
      %v4536 = vlaneseq
      %v4537 = vshrl.u32 %v4536, 7
      %v4538 = vsub.s32 0, %v4537
      %v4539 = vrot.slane %v4497, %v4538
      %v4540 = vlaneseq
      %v4541 = vshrl.u32 %v4540, 7
      %v4542 = vsub.s32 1, %v4541
      %v4543 = vrot.slane %v4497, %v4542
      %v4544 = vlaneseq
      %v4545 = vshrl.u32 %v4544, 7
      %v4546 = vsub.s32 2, %v4545
      %v4547 = vrot.slane %v4497, %v4546
      %v4548 = vlaneseq
      %v4549 = vshrl.u32 %v4548, 7
      %v4550 = vsub.s32 3, %v4549
      %v4551 = vrot.slane %v4497, %v4550
      %v4552 = vlaneseq
      %v4553 = vshrl.u32 %v4552, 7
      %v4554 = vsub.s32 4, %v4553
      %v4555 = vrot.slane %v4497, %v4554
      %v4556 = vlaneseq
      %v4557 = vshrl.u32 %v4556, 7
      %v4558 = vsub.s32 5, %v4557
      %v4559 = vrot.slane %v4497, %v4558
      %v4560 = vlaneseq
      %v4561 = vshrl.u32 %v4560, 7
      %v4562 = vsub.s32 6, %v4561
      %v4563 = vrot.slane %v4497, %v4562
      %v4564 = vlaneseq
      %v4565 = vshrl.u32 %v4564, 7
      %v4566 = vsub.s32 7, %v4565
      %v4567 = vrot.slane %v4497, %v4566
      %v4568 = vlaneseq
      %v4569 = vshrl.u32 %v4568, 7
      %v4570 = vsub.s32 0, %v4569
      %v4571 = vrot.slane %v4498, %v4570
      %v4572 = vlaneseq
      %v4573 = vshrl.u32 %v4572, 7
      %v4574 = vsub.s32 1, %v4573
      %v4575 = vrot.slane %v4498, %v4574
      %v4576 = vlaneseq
      %v4577 = vshrl.u32 %v4576, 7
      %v4578 = vsub.s32 2, %v4577
      %v4579 = vrot.slane %v4498, %v4578
      %v4580 = vlaneseq
      %v4581 = vshrl.u32 %v4580, 7
      %v4582 = vsub.s32 3, %v4581
      %v4583 = vrot.slane %v4498, %v4582
      %v4584 = vlaneseq
      %v4585 = vshrl.u32 %v4584, 7
      %v4586 = vsub.s32 4, %v4585
      %v4587 = vrot.slane %v4498, %v4586
      %v4588 = vlaneseq
      %v4589 = vshrl.u32 %v4588, 7
      %v4590 = vsub.s32 5, %v4589
      %v4591 = vrot.slane %v4498, %v4590
      %v4592 = vlaneseq
      %v4593 = vshrl.u32 %v4592, 7
      %v4594 = vsub.s32 6, %v4593
      %v4595 = vrot.slane %v4498, %v4594
      %v4596 = vlaneseq
      %v4597 = vshrl.u32 %v4596, 7
      %v4598 = vsub.s32 7, %v4597
      %v4599 = vrot.slane %v4498, %v4598
      %v4600 = vlaneseq
      %v4601 = vshrl.u32 %v4600, 7
      %v4602 = vsub.s32 0, %v4601
      %v4603 = vrot.slane %v4499, %v4602
      %v4604 = vlaneseq
      %v4605 = vshrl.u32 %v4604, 7
      %v4606 = vsub.s32 1, %v4605
      %v4607 = vrot.slane %v4499, %v4606
      %v4608 = vlaneseq
      %v4609 = vshrl.u32 %v4608, 7
      %v4610 = vsub.s32 2, %v4609
      %v4611 = vrot.slane %v4499, %v4610
      %v4612 = vlaneseq
      %v4613 = vshrl.u32 %v4612, 7
      %v4614 = vsub.s32 3, %v4613
      %v4615 = vrot.slane %v4499, %v4614
      %v4616 = vlaneseq
      %v4617 = vshrl.u32 %v4616, 7
      %v4618 = vsub.s32 4, %v4617
      %v4619 = vrot.slane %v4499, %v4618
      %v4620 = vlaneseq
      %v4621 = vshrl.u32 %v4620, 7
      %v4622 = vsub.s32 5, %v4621
      %v4623 = vrot.slane %v4499, %v4622
      %v4654 = vadd.f32 %v3408, %v4507
      %v4655 = vadd.f32 %v3410, %v4511
      %v4656 = vadd.f32 %v3485, %v4515
      %v4657 = vadd.f32 %v3487, %v4519
      %v4658 = vadd.f32 %v3562, %v4523
      %v4659 = vadd.f32 %v3564, %v4527
      %v4660 = vadd.f32 %v3639, %v4531
      %v4661 = vadd.f32 %v3641, %v4535
      %v4662 = vadd.f32 %v3716, %v4539
      %v4663 = vadd.f32 %v3718, %v4543
      %v4664 = vadd.f32 %v3793, %v4547
      %v4665 = vadd.f32 %v3795, %v4551
      %v4666 = vadd.f32 %v3870, %v4555
      %v4667 = vadd.f32 %v3872, %v4559
      %v4668 = vadd.f32 %v3947, %v4563
      %v4669 = vadd.f32 %v3949, %v4567
      %v4670 = vadd.f32 %v4024, %v4571
      %v4671 = vadd.f32 %v4026, %v4575
      %v4672 = vadd.f32 %v4101, %v4579
      %v4673 = vadd.f32 %v4103, %v4583
      %v4674 = vadd.f32 %v4178, %v4587
      %v4675 = vadd.f32 %v4180, %v4591
      %v4676 = vadd.f32 %v4255, %v4595
      %v4677 = vadd.f32 %v4257, %v4599
      %v4678 = vadd.f32 %v4332, %v4603
      %v4679 = vadd.f32 %v4334, %v4607
      %v4680 = vadd.f32 %v4409, %v4611
      %v4681 = vadd.f32 %v4411, %v4615
      %v4682 = vadd.f32 %v4486, %v4619
      %v4683 = vadd.f32 %v4488, %v4623
      %v4684 = vadd.f32 %v3414, %v4507
      %v4685 = vadd.f32 %v3416, %v4511
      %v4686 = vadd.f32 %v3491, %v4515
      %v4687 = vadd.f32 %v3493, %v4519
      %v4688 = vadd.f32 %v3568, %v4523
      %v4689 = vadd.f32 %v3570, %v4527
      %v4690 = vadd.f32 %v3645, %v4531
      %v4691 = vadd.f32 %v3647, %v4535
      %v4692 = vadd.f32 %v3722, %v4539
      %v4693 = vadd.f32 %v3724, %v4543
      %v4694 = vadd.f32 %v3799, %v4547
      %v4695 = vadd.f32 %v3801, %v4551
      %v4696 = vadd.f32 %v3876, %v4555
      %v4697 = vadd.f32 %v3878, %v4559
      %v4698 = vadd.f32 %v3953, %v4563
      %v4699 = vadd.f32 %v3955, %v4567
      %v4700 = vadd.f32 %v4030, %v4571
      %v4701 = vadd.f32 %v4032, %v4575
      %v4702 = vadd.f32 %v4107, %v4579
      %v4703 = vadd.f32 %v4109, %v4583
      %v4704 = vadd.f32 %v4184, %v4587
      %v4705 = vadd.f32 %v4186, %v4591
      %v4706 = vadd.f32 %v4261, %v4595
      %v4707 = vadd.f32 %v4263, %v4599
      %v4708 = vadd.f32 %v4338, %v4603
      %v4709 = vadd.f32 %v4340, %v4607
      %v4710 = vadd.f32 %v4415, %v4611
      %v4711 = vadd.f32 %v4417, %v4615
      %v4712 = vadd.f32 %v4492, %v4619
      %v4713 = vadd.f32 %v4494, %v4623
      %4714 = vst [vmem:[%s256] sm:$0xff] %v4654
      %4715 = vst [vmem:[%s256 + $0x8] sm:$0xff] %v4655
      %4716 = vst [vmem:[%s256 + $0x10] sm:$0xff] %v4656
      %4717 = vst [vmem:[%s256 + $0x18] sm:$0xff] %v4657
      %4718 = vst [vmem:[%s256 + $0x20] sm:$0xff] %v4658
      %4719 = vst [vmem:[%s256 + $0x28] sm:$0xff] %v4659
      %4720 = vst [vmem:[%s256 + $0x30] sm:$0xff] %v4660
      %4721 = vst [vmem:[%s256 + $0x38] sm:$0xff] %v4661
      %4722 = vst [vmem:[%s256 + $0x40] sm:$0xff] %v4662
      %4723 = vst [vmem:[%s256 + $0x48] sm:$0xff] %v4663
      %4724 = vst [vmem:[%s256 + $0x50] sm:$0xff] %v4664
      %4725 = vst [vmem:[%s256 + $0x58] sm:$0xff] %v4665
      %4726 = vst [vmem:[%s256 + $0x60] sm:$0xff] %v4666
      %4727 = vst [vmem:[%s256 + $0x68] sm:$0xff] %v4667
      %4728 = vst [vmem:[%s256 + $0x70] sm:$0xff] %v4668
      %4729 = vst [vmem:[%s256 + $0x78] sm:$0xff] %v4669
      %4730 = vst [vmem:[%s256 + $0x80] sm:$0xff] %v4670
      %4731 = vst [vmem:[%s256 + $0x88] sm:$0xff] %v4671
      %4732 = vst [vmem:[%s256 + $0x90] sm:$0xff] %v4672
      %4733 = vst [vmem:[%s256 + $0x98] sm:$0xff] %v4673
      %4734 = vst [vmem:[%s256 + $0xa0] sm:$0xff] %v4674
      %4735 = vst [vmem:[%s256 + $0xa8] sm:$0xff] %v4675
      %4736 = vst [vmem:[%s256 + $0xb0] sm:$0xff] %v4676
      %4737 = vst [vmem:[%s256 + $0xb8] sm:$0xff] %v4677
      %4738 = vst [vmem:[%s256 + $0xc0] sm:$0xff] %v4678
      %4739 = vst [vmem:[%s256 + $0xc8] sm:$0xff] %v4679
      %4740 = vst [vmem:[%s256 + $0xd0] sm:$0xff] %v4680
      %4741 = vst [vmem:[%s256 + $0xd8] sm:$0xff] %v4681
      %4742 = vst [vmem:[%s256 + $0xe0] sm:$0xff] %v4682
      %4743 = vst [vmem:[%s256 + $0xe8] sm:$0xff] %v4683
      %4744 = vst [vmem:[%s256 + $0xf0] sm:$0xff] %v4684
      %4745 = vst [vmem:[%s256 + $0xf8] sm:$0xff] %v4685
      %4746 = vst [vmem:[%s256 + $0x100] sm:$0xff] %v4686
      %4747 = vst [vmem:[%s256 + $0x108] sm:$0xff] %v4687
      %4748 = vst [vmem:[%s256 + $0x110] sm:$0xff] %v4688
      %4749 = vst [vmem:[%s256 + $0x118] sm:$0xff] %v4689
      %4750 = vst [vmem:[%s256 + $0x120] sm:$0xff] %v4690
      %4751 = vst [vmem:[%s256 + $0x128] sm:$0xff] %v4691
      %4752 = vst [vmem:[%s256 + $0x130] sm:$0xff] %v4692
      %4753 = vst [vmem:[%s256 + $0x138] sm:$0xff] %v4693
      %4754 = vst [vmem:[%s256 + $0x140] sm:$0xff] %v4694
      %4755 = vst [vmem:[%s256 + $0x148] sm:$0xff] %v4695
      %4756 = vst [vmem:[%s256 + $0x150] sm:$0xff] %v4696
      %4757 = vst [vmem:[%s256 + $0x158] sm:$0xff] %v4697
      %4758 = vst [vmem:[%s256 + $0x160] sm:$0xff] %v4698
      %4759 = vst [vmem:[%s256 + $0x168] sm:$0xff] %v4699
      %4760 = vst [vmem:[%s256 + $0x170] sm:$0xff] %v4700
      %4761 = vst [vmem:[%s256 + $0x178] sm:$0xff] %v4701
      %4762 = vst [vmem:[%s256 + $0x180] sm:$0xff] %v4702
      %4763 = vst [vmem:[%s256 + $0x188] sm:$0xff] %v4703
      %4764 = vst [vmem:[%s256 + $0x190] sm:$0xff] %v4704
      %4765 = vst [vmem:[%s256 + $0x198] sm:$0xff] %v4705
      %4766 = vst [vmem:[%s256 + $0x1a0] sm:$0xff] %v4706
      %4767 = vst [vmem:[%s256 + $0x1a8] sm:$0xff] %v4707
      %4768 = vst [vmem:[%s256 + $0x1b0] sm:$0xff] %v4708
      %4769 = vst [vmem:[%s256 + $0x1b8] sm:$0xff] %v4709
      %4770 = vst [vmem:[%s256 + $0x1c0] sm:$0xff] %v4710
      %4771 = vst [vmem:[%s256 + $0x1c8] sm:$0xff] %v4711
      %4772 = vst [vmem:[%s256 + $0x1d0] sm:$0xff] %v4712
      %4773 = vst [vmem:[%s256 + $0x1d8] sm:$0xff] %v4713
      %s4774 = smul.u32 2, %s16
      %p4775 = scmp.lt.s32.totalorder %s4774, 3
      %s4776 = scalar_select %p4775, %s4774, 3
      %s4777 = smul.addr %s4776, 30
      %s4778 = smul.addr %s4777, 8
      %s4779 = scalar_lea.vmem %s5, %s4778
      // Predicated region
      $region41: #{upsample_forward.1} parent=39 // pred_check
        %p4780 = pneg %p149
      $region42: #{upsample_forward.1} parent=39 // pred_check_branch
        %4782 = sbr.rel (%p4780) target = $region44
      $region43: #{upsample_forward.1} parent=39 // pred_region
        %s4783 = smul.u32 2, %s16
      $region44: #{upsample_forward.1} parent=39 // pred_fallthru
        _
    $region40: #{upsample_forward.1} parent=5 // pred_fallthru
      _
    %p4784 = scmp.le.s32.totalorder 2, %s11
    // Predicated region
    $region45: #{upsample_forward.1} parent=5 // pred_check
      %p4785 = pneg %p4784
    $region46: #{upsample_forward.1} parent=5 // pred_check_branch
      %4787 = sbr.rel (%p4785) target = $region48
    $region47: #{upsample_forward.1} parent=5 // pred_region
      %s4788 = ssub.s32 %s11, 2
      // Predicated region
      $region49: #{upsample_forward.1} parent=47 // pred_check
        %p4789 = pneg %p155
      $region50: #{upsample_forward.1} parent=47 // pred_check_branch
        %4791 = sbr.rel (%p4789) target = $region52
      $region51: #{upsample_forward.1} parent=47 // pred_region
        %s4792 = smul.u32 2, %s17
        %p4793 = scmp.lt.s32.totalorder %s4792, 3
        %s4794 = scalar_select %p4793, %s4792, 3
        %s4795 = smul.addr %s4794, 30
        %s4796 = smul.addr %s4795, 8
        %s4797 = scalar_lea.vmem %s5, %s4796
      $region52: #{upsample_forward.1} parent=47 // pred_fallthru
        _
    $region48: #{upsample_forward.1} parent=5 // pred_fallthru
      _
  $region6: #{upsample_forward.1} parent=0 // loop_footer
    %s15 = sadd.s32 1, %s11
  $region7: #{upsample_forward.1} parent=0 // loop_footer_branch
    %10 = sbr.rel target = $region3
  $region8: #{upsample_forward.1} parent=0 // loop_exit
    _

</llo_original>
